<compile_context>
chip_gen: v6e
topology: v6e:2x2x1
jax: 0.10.0
libtpu: 0.0.40
codegen_flags: <defaults>
</compile_context>

<pallas_src>
import functools

import jax
import jax.numpy as jnp
import numpy as np
from jax import lax
from jax.experimental import pallas as pl
from jax.experimental.pallas import tpu as pltpu

# ---- hyper-parameters (small, consistent with the module's __init__) ----------
N_LAYERS = 2                    # args['Trans_n_layers']
D_TOKEN = 32                    # args['Trans_d_token']
N_HEADS = 4                     # args['Trans_n_heads']
D_HEAD = D_TOKEN // N_HEADS
D_HIDDEN = int(D_TOKEN * 0.3)   # d_ffn_factor = 0.3 -> 9
HIDDEN_PAD = 16                 # FFN hidden zero-padded 9 -> 16 (math preserving)
N_CLASSES = 1                   # args['n_classes']
OUT_PAD = 128                   # lane-dense output width (column 0 holds the logit)
SEQ = 8                         # number of tokens (cat_num features + CLS)
BATCH = 2
LN_EPS = 1e-5
CLAMP_VAL = 1.0e9
NEG_BIG = -1e30

# ---- column offsets inside the single packed parameter slab (36, 288) ---------
C_QKV = 0                                   # (32, 96)  W_q | W_k | W_v
C_WO = 3 * D_TOKEN                          # (32, 32)  W_out
C_WF = 4 * D_TOKEN                          # (32, 128) classifier weight (padded)
C_W0 = 4 * D_TOKEN + OUT_PAD                # (32, 16)  linear0 weight (padded)
C_W1T = C_W0 + HIDDEN_PAD                   # (32, 16)  linear1 weight, TRANSPOSED
P_COLS = C_W1T + HIDDEN_PAD                 # 288
R_VEC = D_TOKEN                             # bias / LN vectors start at row 32
P_ROWS = R_VEC + 4                          # 36


def _layer_norm(v, g, b):
    mu = jnp.mean(v, axis=-1, keepdims=True)
    var = jnp.mean((v - mu) ** 2, axis=-1, keepdims=True)
    return (v - mu) * lax.rsqrt(var + LN_EPS) * g + b


def _clamp(v):
    return jnp.clip(v, -CLAMP_VAL, CLAMP_VAL)


def transformer_kernel(x_ref, p_ref, out_ref, *, seq):
    D, H, DH, HP = D_TOKEN, N_HEADS, D_HEAD, HIDDEN_PAD
    bs = x_ref.shape[0]
    batch = bs // seq

    x = x_ref[...]                                         # (B*S, D) flat slab

    # ---- packed parameter slab (static lane/sublane slices) ------------------
    wqkv = p_ref[0:D, C_QKV:C_QKV + 3 * D]                 # (D, 3D)
    wo = p_ref[0:D, C_WO:C_WO + D]                         # (D, D)
    wf = p_ref[0:D, C_WF:C_WF + OUT_PAD]                   # (D, 128) zero-padded
    w0 = p_ref[0:D, C_W0:C_W0 + HP]                        # (D, HP)
    w1t = p_ref[0:D, C_W1T:C_W1T + HP]                     # (D, HP) == W1^T padded
    b_qkv = p_ref[R_VEC:R_VEC + 1, 0:3 * D]
    bo = p_ref[R_VEC:R_VEC + 1, 3 * D:4 * D]
    g0 = p_ref[R_VEC + 1:R_VEC + 2, 0:D]
    be0 = p_ref[R_VEC + 1:R_VEC + 2, D:2 * D]
    g1 = p_ref[R_VEC + 1:R_VEC + 2, 2 * D:3 * D]
    be1 = p_ref[R_VEC + 1:R_VEC + 2, 3 * D:4 * D]
    gf = p_ref[R_VEC + 2:R_VEC + 3, 0:D]
    bef = p_ref[R_VEC + 2:R_VEC + 3, D:2 * D]
    bb0 = p_ref[R_VEC + 2:R_VEC + 3, 2 * D:2 * D + HP]
    bb1 = p_ref[R_VEC + 2:R_VEC + 3, 3 * D:4 * D]
    bf = p_ref[R_VEC + 3:R_VEC + 4, 0:OUT_PAD]             # (1, 128) zero-padded

    scale = 1.0 / jnp.sqrt(jnp.float32(DH))

    # Block-diagonal additive mask: both batch elements share a single
    # q@k^T / softmax / attn@v per head; cross-batch logits are pushed to -inf.
    ridx = lax.broadcasted_iota(jnp.int32, (bs, bs), 0)
    cidx = lax.broadcasted_iota(jnp.int32, (bs, bs), 1)
    blocks = []
    for b in range(batch):
        in_r = (ridx >= b * seq) & (ridx < (b + 1) * seq)
        in_c = (cidx >= b * seq) & (cidx < (b + 1) * seq)
        blocks.append(in_r & in_c)
    same_batch = functools.reduce(jnp.logical_or, blocks)
    attn_mask = jnp.where(same_batch, jnp.float32(0.0), jnp.float32(NEG_BIG))

    def cls_rows(v):  # (B*S, D) -> (B, D); row b*seq is batch b's CLS token
        return jnp.concatenate(
            [v[b * seq:b * seq + 1, :] for b in range(batch)], axis=0)

    for layer in range(N_LAYERS):
        is_last = layer + 1 == N_LAYERS
        # ---------------- attention block (pre-normalization) ----------------
        xr = _layer_norm(_clamp(x), g0, be0)
        qkv = jnp.dot(xr, wqkv, preferred_element_type=jnp.float32) + b_qkv
        heads = []
        for h in range(H):
            qh = qkv[:, h * DH:(h + 1) * DH]
            kh = qkv[:, D + h * DH:D + (h + 1) * DH]
            vh = qkv[:, 2 * D + h * DH:2 * D + (h + 1) * DH]
            # q @ k^T without an explicit transpose ("nt" dot_general).
            logits = lax.dot_general(qh, kh, (((1,), (1,)), ((), ())),
                                     preferred_element_type=jnp.float32)
            logits = logits * scale + attn_mask
            m = jnp.max(logits, axis=-1, keepdims=True)
            p = jnp.exp(logits - m)
            inv = pl.reciprocal(jnp.sum(p, axis=-1, keepdims=True), approx=True)
            heads.append(jnp.dot(p * inv, vh,
                                 preferred_element_type=jnp.float32))
        ao = jnp.concatenate(heads, axis=-1)               # (rows, D)
        ao = jnp.dot(ao, wo, preferred_element_type=jnp.float32) + bo
        if is_last:
            # Only the CLS rows reach the classifier; every later op is
            # row-wise, so narrowing here is exactly equivalent to the torch
            # (B,S,D) + (B,1,D) broadcast followed by x[:, 0].
            x = cls_rows(x)
            ao = cls_rows(ao)
        x = _layer_norm(_clamp(x + ao), g0, be0)
        # ---------------- feed-forward block (pre-normalization) -------------
        xr = _layer_norm(_clamp(x), g1, be1)
        hdn = jnp.maximum(
            jnp.dot(xr, w0, preferred_element_type=jnp.float32) + bb0, 0.0)
        # TODO(synk): nn.Dropout is identity here (eval-mode forward).
        ff = lax.dot_general(hdn, w1t, (((1,), (1,)), ((), ())),
                             preferred_element_type=jnp.float32) + bb1
        x = _layer_norm(_clamp(x + ff), g1, be1)

    # ------------- classifier head: fc(activation(norm(cls))) ----------------
    z = jnp.maximum(_layer_norm(x, gf, bef), 0.0)
    out_ref[...] = jnp.dot(z, wf, preferred_element_type=jnp.float32) + bf


def pack_params(params):
    """Pack the 20 logical parameters into ONE lane-aligned (36, 288) slab."""
    D, HP = D_TOKEN, HIDDEN_PAD
    f32 = jnp.float32
    wqkv = jnp.concatenate([params["wq"], params["wk"], params["wv"]], axis=1)
    wf_pad = jnp.zeros((D, OUT_PAD), f32).at[:, :N_CLASSES].set(params["wf"])
    w0_pad = jnp.zeros((D, HP), f32).at[:, :D_HIDDEN].set(params["w0"])
    w1t_pad = jnp.zeros((D, HP), f32).at[:, :D_HIDDEN].set(params["w1"].T)
    w_rows = jnp.concatenate(
        [wqkv, params["wo"], wf_pad, w0_pad, w1t_pad], axis=1)        # (32, 288)
    bb0_slot = jnp.zeros((1, D), f32).at[:, :D_HIDDEN].set(params["bb0"])
    bf_pad = jnp.zeros((1, OUT_PAD), f32).at[:, :N_CLASSES].set(params["bf"])
    vec_rows = jnp.concatenate([
        jnp.concatenate([params["bq"], params["bk"], params["bv"], params["bo"]], axis=1),
        jnp.concatenate([params["g0"], params["be0"], params["g1"], params["be1"]], axis=1),
        jnp.concatenate([params["gf"], params["bef"], bb0_slot, params["bb1"]], axis=1),
        bf_pad,
    ], axis=0)                                                        # (4, 128)
    vec_rows = jnp.pad(vec_rows, ((0, 0), (0, P_COLS - vec_rows.shape[1])))
    return jnp.concatenate([w_rows, vec_rows], axis=0)                # (36, 288)


@jax.jit
def transformer_forward(x, pslab):
    batch, seq, d = x.shape
    x_flat = x.reshape(batch * seq, d)
    vmem = pl.BlockSpec(memory_space=pltpu.MemorySpace.VMEM)
    out = pl.pallas_call(
        functools.partial(transformer_kernel, seq=seq),
        out_shape=jax.ShapeDtypeStruct((batch, OUT_PAD), jnp.float32),
        in_specs=[vmem, vmem],
        out_specs=vmem,
    )(x_flat, pslab)
    logits = out[:, :N_CLASSES]
    # mirrors torch .squeeze(-1): drops the axis only when n_classes == 1
    return jnp.squeeze(logits, axis=-1) if N_CLASSES == 1 else logits


def init_params(key):
    def linear(k, d_in, d_out):
        kw, kb = jax.random.split(k)
        bound = 1.0 / (d_in ** 0.5)
        w = jax.random.uniform(kw, (d_in, d_out), jnp.float32, -bound, bound)
        b = jax.random.uniform(kb, (1, d_out), jnp.float32, -bound, bound)
        return w, b

    ks = jax.random.split(key, 7)
    wq, bq = linear(ks[0], D_TOKEN, D_TOKEN)
    wk, bk = linear(ks[1], D_TOKEN, D_TOKEN)
    wv, bv = linear(ks[2], D_TOKEN, D_TOKEN)
    wo, bo = linear(ks[3], D_TOKEN, D_TOKEN)
    w0, bb0 = linear(ks[4], D_TOKEN, D_HIDDEN)
    w1, bb1 = linear(ks[5], D_HIDDEN, D_TOKEN)
    wf, bf = linear(ks[6], D_TOKEN, N_CLASSES)
    ones = jnp.ones((1, D_TOKEN), jnp.float32)
    zeros = jnp.zeros((1, D_TOKEN), jnp.float32)
    return {
        "wq": wq, "bq": bq, "wk": wk, "bk": bk, "wv": wv, "bv": bv,
        "wo": wo, "bo": bo,
        "g0": ones, "be0": zeros,
        "w0": w0, "bb0": bb0, "w1": w1, "bb1": bb1,
        "g1": ones, "be1": zeros,
        "gf": ones, "bef": zeros,
        "wf": wf, "bf": bf,
    }


def reference_forward(x, p):
    """Pure-JAX mirror of the torch forward (for a loose sanity check)."""
    def ln(v, g, b):
        mu = jnp.mean(v, axis=-1, keepdims=True)
        var = jnp.mean((v - mu) ** 2, axis=-1, keepdims=True)
        return (v - mu) / jnp.sqrt(var + LN_EPS) * g + b

    def clamp(v):
        return jnp.clip(v, -CLAMP_VAL, CLAMP_VAL)

    def mha(xq, xkv):
        q = xq @ p["wq"] + p["bq"]
        k = xkv @ p["wk"] + p["bk"]
        v = xkv @ p["wv"] + p["bv"]
        b_, sq, _ = q.shape
        s_ = k.shape[1]
        qh = q.reshape(b_, sq, N_HEADS, D_HEAD).transpose(0, 2, 1, 3)
        kh = k.reshape(b_, s_, N_HEADS, D_HEAD).transpose(0, 2, 1, 3)
        vh = v.reshape(b_, s_, N_HEADS, D_HEAD).transpose(0, 2, 1, 3)
        logits = jnp.einsum("bhqd,bhkd->bhqk", qh, kh) / jnp.sqrt(float(D_HEAD))
        attn = jax.nn.softmax(logits, axis=-1)
        o = jnp.einsum("bhqk,bhkd->bhqd", attn, vh)
        o = o.transpose(0, 2, 1, 3).reshape(b_, sq, D_TOKEN)
        return o @ p["wo"] + p["bo"]

    for layer in range(N_LAYERS):
        is_last = layer + 1 == N_LAYERS
        xr = ln(clamp(x), p["g0"], p["be0"])
        xr = mha(xr[:, :1] if is_last else xr, xr)
        x = x + xr
        x = ln(clamp(x), p["g0"], p["be0"])
        xr = ln(clamp(x), p["g1"], p["be1"])
        xr = jnp.maximum(xr @ p["w0"] + p["bb0"], 0.0)
        xr = xr @ p["w1"] + p["bb1"]
        x = x + xr
        x = ln(clamp(x), p["g1"], p["be1"])
    cls = x[:, 0]
    z = jnp.maximum(ln(cls, p["gf"], p["bef"]), 0.0)
    out = z @ p["wf"] + p["bf"]
    return jnp.squeeze(out, axis=-1) if N_CLASSES == 1 else out


if __name__ == "__main__":
    key = jax.random.PRNGKey(0)
    k_x, k_p = jax.random.split(key)
    x = jax.random.normal(k_x, (BATCH, SEQ, D_TOKEN), jnp.float32)
    params = init_params(k_p)
    pslab = pack_params(params)
    assert pslab.shape == (P_ROWS, P_COLS), pslab.shape

    out = transformer_forward(x, pslab)
    out = jax.block_until_ready(out)
    assert out.shape == (BATCH,), out.shape
    assert bool(jnp.all(jnp.isfinite(out)))

    ref = reference_forward(x, params)
    np.testing.assert_allclose(np.asarray(out), np.asarray(ref),
                               rtol=2e-2, atol=2e-2)
    print("KERNEL_OK")
</pallas_src>

<mosaic_0001>
module attributes {stable_mosaic.version = 11 : i64} {
  func.func @transformer_kernel(%arg0: memref<16x32xf32, #tpu.memory_space<vmem>>, %arg1: memref<36x288xf32, #tpu.memory_space<vmem>>, %arg2: memref<2x128xf32, #tpu.memory_space<vmem>>) attributes {dimension_semantics = [], scalar_prefetch = 0 : i64, scratch_operands = 0 : i64, tpu.core_type = #tpu.core_type<tc>} {
    %c0 = arith.constant 0 : index
    %c0_0 = arith.constant 0 : index
    %0 = vector.load %arg0[%c0, %c0_0] : memref<16x32xf32, #tpu.memory_space<vmem>>, vector<16x32xf32>
    %c0_1 = arith.constant 0 : index
    %c0_2 = arith.constant 0 : index
    %1 = vector.load %arg1[%c0_1, %c0_2] : memref<36x288xf32, #tpu.memory_space<vmem>>, vector<32x96xf32>
    %c0_3 = arith.constant 0 : index
    %c96 = arith.constant 96 : index
    %2 = vector.load %arg1[%c0_3, %c96] : memref<36x288xf32, #tpu.memory_space<vmem>>, vector<32x32xf32>
    %c0_4 = arith.constant 0 : index
    %c128 = arith.constant 128 : index
    %3 = vector.load %arg1[%c0_4, %c128] : memref<36x288xf32, #tpu.memory_space<vmem>>, vector<32x128xf32>
    %c0_5 = arith.constant 0 : index
    %c256 = arith.constant 256 : index
    %4 = vector.load %arg1[%c0_5, %c256] : memref<36x288xf32, #tpu.memory_space<vmem>>, vector<32x16xf32>
    %c0_6 = arith.constant 0 : index
    %c272 = arith.constant 272 : index
    %5 = vector.load %arg1[%c0_6, %c272] : memref<36x288xf32, #tpu.memory_space<vmem>>, vector<32x16xf32>
    %c32 = arith.constant 32 : index
    %c0_7 = arith.constant 0 : index
    %6 = vector.load %arg1[%c32, %c0_7] : memref<36x288xf32, #tpu.memory_space<vmem>>, vector<1x96xf32>
    %c32_8 = arith.constant 32 : index
    %c96_9 = arith.constant 96 : index
    %7 = vector.load %arg1[%c32_8, %c96_9] : memref<36x288xf32, #tpu.memory_space<vmem>>, vector<1x32xf32>
    %c33 = arith.constant 33 : index
    %c0_10 = arith.constant 0 : index
    %8 = vector.load %arg1[%c33, %c0_10] : memref<36x288xf32, #tpu.memory_space<vmem>>, vector<1x32xf32>
    %c33_11 = arith.constant 33 : index
    %c32_12 = arith.constant 32 : index
    %9 = vector.load %arg1[%c33_11, %c32_12] : memref<36x288xf32, #tpu.memory_space<vmem>>, vector<1x32xf32>
    %c33_13 = arith.constant 33 : index
    %c64 = arith.constant 64 : index
    %10 = vector.load %arg1[%c33_13, %c64] : memref<36x288xf32, #tpu.memory_space<vmem>>, vector<1x32xf32>
    %c33_14 = arith.constant 33 : index
    %c96_15 = arith.constant 96 : index
    %11 = vector.load %arg1[%c33_14, %c96_15] : memref<36x288xf32, #tpu.memory_space<vmem>>, vector<1x32xf32>
    %c34 = arith.constant 34 : index
    %c0_16 = arith.constant 0 : index
    %12 = vector.load %arg1[%c34, %c0_16] : memref<36x288xf32, #tpu.memory_space<vmem>>, vector<1x32xf32>
    %c34_17 = arith.constant 34 : index
    %c32_18 = arith.constant 32 : index
    %13 = vector.load %arg1[%c34_17, %c32_18] : memref<36x288xf32, #tpu.memory_space<vmem>>, vector<1x32xf32>
    %c34_19 = arith.constant 34 : index
    %c64_20 = arith.constant 64 : index
    %14 = vector.load %arg1[%c34_19, %c64_20] : memref<36x288xf32, #tpu.memory_space<vmem>>, vector<1x16xf32>
    %c34_21 = arith.constant 34 : index
    %c96_22 = arith.constant 96 : index
    %15 = vector.load %arg1[%c34_21, %c96_22] : memref<36x288xf32, #tpu.memory_space<vmem>>, vector<1x32xf32>
    %c35 = arith.constant 35 : index
    %c0_23 = arith.constant 0 : index
    %16 = vector.load %arg1[%c35, %c0_23] : memref<36x288xf32, #tpu.memory_space<vmem>>, vector<1x128xf32>
    %cst = arith.constant 8.000000e+00 : f32
    %17 = math.sqrt %cst : f32
    %cst_24 = arith.constant 1.000000e+00 : f32
    %18 = arith.divf %cst_24, %17 : f32
    %19 = tpu.iota {dimensions = array<i32: 0>} : vector<16x16xi32>
    %20 = tpu.iota {dimensions = array<i32: 1>} : vector<16x16xi32>
    %c0_i32 = arith.constant 0 : i32
    %21 = vector.broadcast %c0_i32 : i32 to vector<16x16xi32>
    %22 = arith.cmpi sge, %19, %21 : vector<16x16xi32>
    %c8_i32 = arith.constant 8 : i32
    %23 = vector.broadcast %c8_i32 : i32 to vector<16x16xi32>
    %24 = arith.cmpi slt, %19, %23 : vector<16x16xi32>
    %25 = arith.andi %22, %24 : vector<16x16xi1>
    %c0_i32_25 = arith.constant 0 : i32
    %26 = vector.broadcast %c0_i32_25 : i32 to vector<16x16xi32>
    %27 = arith.cmpi sge, %20, %26 : vector<16x16xi32>
    %c8_i32_26 = arith.constant 8 : i32
    %28 = vector.broadcast %c8_i32_26 : i32 to vector<16x16xi32>
    %29 = arith.cmpi slt, %20, %28 : vector<16x16xi32>
    %30 = arith.andi %27, %29 : vector<16x16xi1>
    %31 = arith.andi %25, %30 : vector<16x16xi1>
    %c8_i32_27 = arith.constant 8 : i32
    %32 = vector.broadcast %c8_i32_27 : i32 to vector<16x16xi32>
    %33 = arith.cmpi sge, %19, %32 : vector<16x16xi32>
    %c16_i32 = arith.constant 16 : i32
    %34 = vector.broadcast %c16_i32 : i32 to vector<16x16xi32>
    %35 = arith.cmpi slt, %19, %34 : vector<16x16xi32>
    %36 = arith.andi %33, %35 : vector<16x16xi1>
    %c8_i32_28 = arith.constant 8 : i32
    %37 = vector.broadcast %c8_i32_28 : i32 to vector<16x16xi32>
    %38 = arith.cmpi sge, %20, %37 : vector<16x16xi32>
    %c16_i32_29 = arith.constant 16 : i32
    %39 = vector.broadcast %c16_i32_29 : i32 to vector<16x16xi32>
    %40 = arith.cmpi slt, %20, %39 : vector<16x16xi32>
    %41 = arith.andi %38, %40 : vector<16x16xi1>
    %42 = arith.andi %36, %41 : vector<16x16xi1>
    %43 = arith.ori %31, %42 : vector<16x16xi1>
    %cst_30 = arith.constant 0.000000e+00 : f32
    %cst_31 = arith.constant -1.000000e+30 : f32
    %44 = vector.broadcast %cst_30 : f32 to vector<16x16xf32>
    %45 = vector.broadcast %cst_31 : f32 to vector<16x16xf32>
    %46 = arith.select %43, %44, %45 : vector<16x16xi1>, vector<16x16xf32>
    %cst_32 = arith.constant -1.000000e+09 : f32
    %cst_33 = arith.constant 1.000000e+09 : f32
    %47 = vector.broadcast %cst_32 : f32 to vector<16x32xf32>
    %48 = arith.maximumf %47, %0 : vector<16x32xf32>
    %49 = vector.broadcast %cst_33 : f32 to vector<16x32xf32>
    %50 = arith.minimumf %49, %48 : vector<16x32xf32>
    %cst_34 = arith.constant dense<0.000000e+00> : vector<16xf32>
    %51 = vector.multi_reduction <add>, %50, %cst_34 [1] : vector<16x32xf32> to vector<16xf32>
    %52 = vector.shape_cast %51 : vector<16xf32> to vector<16x1xf32>
    %cst_35 = arith.constant 3.200000e+01 : f32
    %53 = vector.broadcast %cst_35 : f32 to vector<16x1xf32>
    %54 = arith.divf %52, %53 : vector<16x1xf32>
    %55 = vector.broadcast %54 : vector<16x1xf32> to vector<16x32xf32>
    %56 = arith.subf %50, %55 : vector<16x32xf32>
    %57 = arith.mulf %56, %56 : vector<16x32xf32>
    %cst_36 = arith.constant dense<0.000000e+00> : vector<16xf32>
    %58 = vector.multi_reduction <add>, %57, %cst_36 [1] : vector<16x32xf32> to vector<16xf32>
    %59 = vector.shape_cast %58 : vector<16xf32> to vector<16x1xf32>
    %cst_37 = arith.constant 3.200000e+01 : f32
    %60 = vector.broadcast %cst_37 : f32 to vector<16x1xf32>
    %61 = arith.divf %59, %60 : vector<16x1xf32>
    %62 = vector.broadcast %54 : vector<16x1xf32> to vector<16x32xf32>
    %63 = arith.subf %50, %62 : vector<16x32xf32>
    %cst_38 = arith.constant 9.99999974E-6 : f32
    %64 = vector.broadcast %cst_38 : f32 to vector<16x1xf32>
    %65 = arith.addf %61, %64 : vector<16x1xf32>
    %66 = math.rsqrt %65 : vector<16x1xf32>
    %67 = vector.broadcast %66 : vector<16x1xf32> to vector<16x32xf32>
    %68 = arith.mulf %63, %67 : vector<16x32xf32>
    %69 = vector.broadcast %8 : vector<1x32xf32> to vector<16x32xf32>
    %70 = arith.mulf %68, %69 : vector<16x32xf32>
    %71 = vector.broadcast %9 : vector<1x32xf32> to vector<16x32xf32>
    %72 = arith.addf %70, %71 : vector<16x32xf32>
    %cst_39 = arith.constant dense<0.000000e+00> : vector<16x96xf32>
    %73 = tpu.matmul %72, %1, %cst_39 {dimension_numbers = #tpu.dot_dimension_numbers<[1], [0], [0], [1], [0, 0, 1, 1], [], []>} : vector<16x32xf32>, vector<32x96xf32>, vector<16x96xf32> -> vector<16x96xf32>
    %74 = vector.broadcast %6 : vector<1x96xf32> to vector<16x96xf32>
    %75 = arith.addf %73, %74 : vector<16x96xf32>
    %76 = vector.extract_strided_slice %75 {offsets = [0, 0], sizes = [16, 8], strides = [1, 1]} : vector<16x96xf32> to vector<16x8xf32>
    %77 = vector.extract_strided_slice %75 {offsets = [0, 32], sizes = [16, 8], strides = [1, 1]} : vector<16x96xf32> to vector<16x8xf32>
    %78 = vector.extract_strided_slice %75 {offsets = [0, 64], sizes = [16, 8], strides = [1, 1]} : vector<16x96xf32> to vector<16x8xf32>
    %cst_40 = arith.constant dense<0.000000e+00> : vector<16x16xf32>
    %79 = tpu.matmul %76, %77, %cst_40 {dimension_numbers = #tpu.dot_dimension_numbers<[1], [1], [0], [0], [0, 0, 1, 0], [], []>} : vector<16x8xf32>, vector<16x8xf32>, vector<16x16xf32> -> vector<16x16xf32>
    %80 = vector.broadcast %18 : f32 to vector<16x16xf32>
    %81 = arith.mulf %79, %80 : vector<16x16xf32>
    %82 = arith.addf %81, %46 : vector<16x16xf32>
    %cst_41 = arith.constant dense<0xFF800000> : vector<16xf32>
    %83 = vector.multi_reduction <maximumf>, %82, %cst_41 [1] : vector<16x16xf32> to vector<16xf32>
    %84 = vector.shape_cast %83 : vector<16xf32> to vector<16x1xf32>
    %85 = vector.broadcast %84 : vector<16x1xf32> to vector<16x16xf32>
    %86 = arith.subf %82, %85 : vector<16x16xf32>
    %87 = math.exp %86 : vector<16x16xf32>
    %cst_42 = arith.constant dense<0.000000e+00> : vector<16xf32>
    %88 = vector.multi_reduction <add>, %87, %cst_42 [1] : vector<16x16xf32> to vector<16xf32>
    %89 = vector.shape_cast %88 : vector<16xf32> to vector<16x1xf32>
    %90 = tpu.reciprocal %89 {approx = true} : vector<16x1xf32> -> vector<16x1xf32>
    %91 = vector.broadcast %90 : vector<16x1xf32> to vector<16x16xf32>
    %92 = arith.mulf %87, %91 : vector<16x16xf32>
    %cst_43 = arith.constant dense<0.000000e+00> : vector<16x8xf32>
    %93 = tpu.matmul %92, %78, %cst_43 {dimension_numbers = #tpu.dot_dimension_numbers<[1], [0], [0], [1], [0, 0, 1, 1], [], []>} : vector<16x16xf32>, vector<16x8xf32>, vector<16x8xf32> -> vector<16x8xf32>
    %94 = vector.extract_strided_slice %75 {offsets = [0, 8], sizes = [16, 8], strides = [1, 1]} : vector<16x96xf32> to vector<16x8xf32>
    %95 = vector.extract_strided_slice %75 {offsets = [0, 40], sizes = [16, 8], strides = [1, 1]} : vector<16x96xf32> to vector<16x8xf32>
    %96 = vector.extract_strided_slice %75 {offsets = [0, 72], sizes = [16, 8], strides = [1, 1]} : vector<16x96xf32> to vector<16x8xf32>
    %cst_44 = arith.constant dense<0.000000e+00> : vector<16x16xf32>
    %97 = tpu.matmul %94, %95, %cst_44 {dimension_numbers = #tpu.dot_dimension_numbers<[1], [1], [0], [0], [0, 0, 1, 0], [], []>} : vector<16x8xf32>, vector<16x8xf32>, vector<16x16xf32> -> vector<16x16xf32>
    %98 = vector.broadcast %18 : f32 to vector<16x16xf32>
    %99 = arith.mulf %97, %98 : vector<16x16xf32>
    %100 = arith.addf %99, %46 : vector<16x16xf32>
    %cst_45 = arith.constant dense<0xFF800000> : vector<16xf32>
    %101 = vector.multi_reduction <maximumf>, %100, %cst_45 [1] : vector<16x16xf32> to vector<16xf32>
    %102 = vector.shape_cast %101 : vector<16xf32> to vector<16x1xf32>
    %103 = vector.broadcast %102 : vector<16x1xf32> to vector<16x16xf32>
    %104 = arith.subf %100, %103 : vector<16x16xf32>
    %105 = math.exp %104 : vector<16x16xf32>
    %cst_46 = arith.constant dense<0.000000e+00> : vector<16xf32>
    %106 = vector.multi_reduction <add>, %105, %cst_46 [1] : vector<16x16xf32> to vector<16xf32>
    %107 = vector.shape_cast %106 : vector<16xf32> to vector<16x1xf32>
    %108 = tpu.reciprocal %107 {approx = true} : vector<16x1xf32> -> vector<16x1xf32>
    %109 = vector.broadcast %108 : vector<16x1xf32> to vector<16x16xf32>
    %110 = arith.mulf %105, %109 : vector<16x16xf32>
    %cst_47 = arith.constant dense<0.000000e+00> : vector<16x8xf32>
    %111 = tpu.matmul %110, %96, %cst_47 {dimension_numbers = #tpu.dot_dimension_numbers<[1], [0], [0], [1], [0, 0, 1, 1], [], []>} : vector<16x16xf32>, vector<16x8xf32>, vector<16x8xf32> -> vector<16x8xf32>
    %112 = vector.extract_strided_slice %75 {offsets = [0, 16], sizes = [16, 8], strides = [1, 1]} : vector<16x96xf32> to vector<16x8xf32>
    %113 = vector.extract_strided_slice %75 {offsets = [0, 48], sizes = [16, 8], strides = [1, 1]} : vector<16x96xf32> to vector<16x8xf32>
    %114 = vector.extract_strided_slice %75 {offsets = [0, 80], sizes = [16, 8], strides = [1, 1]} : vector<16x96xf32> to vector<16x8xf32>
    %cst_48 = arith.constant dense<0.000000e+00> : vector<16x16xf32>
    %115 = tpu.matmul %112, %113, %cst_48 {dimension_numbers = #tpu.dot_dimension_numbers<[1], [1], [0], [0], [0, 0, 1, 0], [], []>} : vector<16x8xf32>, vector<16x8xf32>, vector<16x16xf32> -> vector<16x16xf32>
    %116 = vector.broadcast %18 : f32 to vector<16x16xf32>
    %117 = arith.mulf %115, %116 : vector<16x16xf32>
    %118 = arith.addf %117, %46 : vector<16x16xf32>
    %cst_49 = arith.constant dense<0xFF800000> : vector<16xf32>
    %119 = vector.multi_reduction <maximumf>, %118, %cst_49 [1] : vector<16x16xf32> to vector<16xf32>
    %120 = vector.shape_cast %119 : vector<16xf32> to vector<16x1xf32>
    %121 = vector.broadcast %120 : vector<16x1xf32> to vector<16x16xf32>
    %122 = arith.subf %118, %121 : vector<16x16xf32>
    %123 = math.exp %122 : vector<16x16xf32>
    %cst_50 = arith.constant dense<0.000000e+00> : vector<16xf32>
    %124 = vector.multi_reduction <add>, %123, %cst_50 [1] : vector<16x16xf32> to vector<16xf32>
    %125 = vector.shape_cast %124 : vector<16xf32> to vector<16x1xf32>
    %126 = tpu.reciprocal %125 {approx = true} : vector<16x1xf32> -> vector<16x1xf32>
    %127 = vector.broadcast %126 : vector<16x1xf32> to vector<16x16xf32>
    %128 = arith.mulf %123, %127 : vector<16x16xf32>
    %cst_51 = arith.constant dense<0.000000e+00> : vector<16x8xf32>
    %129 = tpu.matmul %128, %114, %cst_51 {dimension_numbers = #tpu.dot_dimension_numbers<[1], [0], [0], [1], [0, 0, 1, 1], [], []>} : vector<16x16xf32>, vector<16x8xf32>, vector<16x8xf32> -> vector<16x8xf32>
    %130 = vector.extract_strided_slice %75 {offsets = [0, 24], sizes = [16, 8], strides = [1, 1]} : vector<16x96xf32> to vector<16x8xf32>
    %131 = vector.extract_strided_slice %75 {offsets = [0, 56], sizes = [16, 8], strides = [1, 1]} : vector<16x96xf32> to vector<16x8xf32>
    %132 = vector.extract_strided_slice %75 {offsets = [0, 88], sizes = [16, 8], strides = [1, 1]} : vector<16x96xf32> to vector<16x8xf32>
    %cst_52 = arith.constant dense<0.000000e+00> : vector<16x16xf32>
    %133 = tpu.matmul %130, %131, %cst_52 {dimension_numbers = #tpu.dot_dimension_numbers<[1], [1], [0], [0], [0, 0, 1, 0], [], []>} : vector<16x8xf32>, vector<16x8xf32>, vector<16x16xf32> -> vector<16x16xf32>
    %134 = vector.broadcast %18 : f32 to vector<16x16xf32>
    %135 = arith.mulf %133, %134 : vector<16x16xf32>
    %136 = arith.addf %135, %46 : vector<16x16xf32>
    %cst_53 = arith.constant dense<0xFF800000> : vector<16xf32>
    %137 = vector.multi_reduction <maximumf>, %136, %cst_53 [1] : vector<16x16xf32> to vector<16xf32>
    %138 = vector.shape_cast %137 : vector<16xf32> to vector<16x1xf32>
    %139 = vector.broadcast %138 : vector<16x1xf32> to vector<16x16xf32>
    %140 = arith.subf %136, %139 : vector<16x16xf32>
    %141 = math.exp %140 : vector<16x16xf32>
    %cst_54 = arith.constant dense<0.000000e+00> : vector<16xf32>
    %142 = vector.multi_reduction <add>, %141, %cst_54 [1] : vector<16x16xf32> to vector<16xf32>
    %143 = vector.shape_cast %142 : vector<16xf32> to vector<16x1xf32>
    %144 = tpu.reciprocal %143 {approx = true} : vector<16x1xf32> -> vector<16x1xf32>
    %145 = vector.broadcast %144 : vector<16x1xf32> to vector<16x16xf32>
    %146 = arith.mulf %141, %145 : vector<16x16xf32>
    %cst_55 = arith.constant dense<0.000000e+00> : vector<16x8xf32>
    %147 = tpu.matmul %146, %132, %cst_55 {dimension_numbers = #tpu.dot_dimension_numbers<[1], [0], [0], [1], [0, 0, 1, 1], [], []>} : vector<16x16xf32>, vector<16x8xf32>, vector<16x8xf32> -> vector<16x8xf32>
    %148 = tpu.concatenate %93, %111, %129, %147 in 1 : vector<16x8xf32>, vector<16x8xf32>, vector<16x8xf32>, vector<16x8xf32> -> vector<16x32xf32>
    %cst_56 = arith.constant dense<0.000000e+00> : vector<16x32xf32>
    %149 = tpu.matmul %148, %2, %cst_56 {dimension_numbers = #tpu.dot_dimension_numbers<[1], [0], [0], [1], [0, 0, 1, 1], [], []>} : vector<16x32xf32>, vector<32x32xf32>, vector<16x32xf32> -> vector<16x32xf32>
    %150 = vector.broadcast %7 : vector<1x32xf32> to vector<16x32xf32>
    %151 = arith.addf %149, %150 : vector<16x32xf32>
    %152 = arith.addf %0, %151 : vector<16x32xf32>
    %cst_57 = arith.constant -1.000000e+09 : f32
    %cst_58 = arith.constant 1.000000e+09 : f32
    %153 = vector.broadcast %cst_57 : f32 to vector<16x32xf32>
    %154 = arith.maximumf %153, %152 : vector<16x32xf32>
    %155 = vector.broadcast %cst_58 : f32 to vector<16x32xf32>
    %156 = arith.minimumf %155, %154 : vector<16x32xf32>
    %cst_59 = arith.constant dense<0.000000e+00> : vector<16xf32>
    %157 = vector.multi_reduction <add>, %156, %cst_59 [1] : vector<16x32xf32> to vector<16xf32>
    %158 = vector.shape_cast %157 : vector<16xf32> to vector<16x1xf32>
    %cst_60 = arith.constant 3.200000e+01 : f32
    %159 = vector.broadcast %cst_60 : f32 to vector<16x1xf32>
    %160 = arith.divf %158, %159 : vector<16x1xf32>
    %161 = vector.broadcast %160 : vector<16x1xf32> to vector<16x32xf32>
    %162 = arith.subf %156, %161 : vector<16x32xf32>
    %163 = arith.mulf %162, %162 : vector<16x32xf32>
    %cst_61 = arith.constant dense<0.000000e+00> : vector<16xf32>
    %164 = vector.multi_reduction <add>, %163, %cst_61 [1] : vector<16x32xf32> to vector<16xf32>
    %165 = vector.shape_cast %164 : vector<16xf32> to vector<16x1xf32>
    %cst_62 = arith.constant 3.200000e+01 : f32
    %166 = vector.broadcast %cst_62 : f32 to vector<16x1xf32>
    %167 = arith.divf %165, %166 : vector<16x1xf32>
    %168 = vector.broadcast %160 : vector<16x1xf32> to vector<16x32xf32>
    %169 = arith.subf %156, %168 : vector<16x32xf32>
    %cst_63 = arith.constant 9.99999974E-6 : f32
    %170 = vector.broadcast %cst_63 : f32 to vector<16x1xf32>
    %171 = arith.addf %167, %170 : vector<16x1xf32>
    %172 = math.rsqrt %171 : vector<16x1xf32>
    %173 = vector.broadcast %172 : vector<16x1xf32> to vector<16x32xf32>
    %174 = arith.mulf %169, %173 : vector<16x32xf32>
    %175 = vector.broadcast %8 : vector<1x32xf32> to vector<16x32xf32>
    %176 = arith.mulf %174, %175 : vector<16x32xf32>
    %177 = vector.broadcast %9 : vector<1x32xf32> to vector<16x32xf32>
    %178 = arith.addf %176, %177 : vector<16x32xf32>
    %cst_64 = arith.constant -1.000000e+09 : f32
    %cst_65 = arith.constant 1.000000e+09 : f32
    %179 = vector.broadcast %cst_64 : f32 to vector<16x32xf32>
    %180 = arith.maximumf %179, %178 : vector<16x32xf32>
    %181 = vector.broadcast %cst_65 : f32 to vector<16x32xf32>
    %182 = arith.minimumf %181, %180 : vector<16x32xf32>
    %cst_66 = arith.constant dense<0.000000e+00> : vector<16xf32>
    %183 = vector.multi_reduction <add>, %182, %cst_66 [1] : vector<16x32xf32> to vector<16xf32>
    %184 = vector.shape_cast %183 : vector<16xf32> to vector<16x1xf32>
    %cst_67 = arith.constant 3.200000e+01 : f32
    %185 = vector.broadcast %cst_67 : f32 to vector<16x1xf32>
    %186 = arith.divf %184, %185 : vector<16x1xf32>
    %187 = vector.broadcast %186 : vector<16x1xf32> to vector<16x32xf32>
    %188 = arith.subf %182, %187 : vector<16x32xf32>
    %189 = arith.mulf %188, %188 : vector<16x32xf32>
    %cst_68 = arith.constant dense<0.000000e+00> : vector<16xf32>
    %190 = vector.multi_reduction <add>, %189, %cst_68 [1] : vector<16x32xf32> to vector<16xf32>
    %191 = vector.shape_cast %190 : vector<16xf32> to vector<16x1xf32>
    %cst_69 = arith.constant 3.200000e+01 : f32
    %192 = vector.broadcast %cst_69 : f32 to vector<16x1xf32>
    %193 = arith.divf %191, %192 : vector<16x1xf32>
    %194 = vector.broadcast %186 : vector<16x1xf32> to vector<16x32xf32>
    %195 = arith.subf %182, %194 : vector<16x32xf32>
    %cst_70 = arith.constant 9.99999974E-6 : f32
    %196 = vector.broadcast %cst_70 : f32 to vector<16x1xf32>
    %197 = arith.addf %193, %196 : vector<16x1xf32>
    %198 = math.rsqrt %197 : vector<16x1xf32>
    %199 = vector.broadcast %198 : vector<16x1xf32> to vector<16x32xf32>
    %200 = arith.mulf %195, %199 : vector<16x32xf32>
    %201 = vector.broadcast %10 : vector<1x32xf32> to vector<16x32xf32>
    %202 = arith.mulf %200, %201 : vector<16x32xf32>
    %203 = vector.broadcast %11 : vector<1x32xf32> to vector<16x32xf32>
    %204 = arith.addf %202, %203 : vector<16x32xf32>
    %cst_71 = arith.constant dense<0.000000e+00> : vector<16x16xf32>
    %205 = tpu.matmul %204, %4, %cst_71 {dimension_numbers = #tpu.dot_dimension_numbers<[1], [0], [0], [1], [0, 0, 1, 1], [], []>} : vector<16x32xf32>, vector<32x16xf32>, vector<16x16xf32> -> vector<16x16xf32>
    %206 = vector.broadcast %14 : vector<1x16xf32> to vector<16x16xf32>
    %207 = arith.addf %205, %206 : vector<16x16xf32>
    %cst_72 = arith.constant 0.000000e+00 : f32
    %208 = vector.broadcast %cst_72 : f32 to vector<16x16xf32>
    %209 = arith.maximumf %207, %208 : vector<16x16xf32>
    %cst_73 = arith.constant dense<0.000000e+00> : vector<16x32xf32>
    %210 = tpu.matmul %209, %5, %cst_73 {dimension_numbers = #tpu.dot_dimension_numbers<[1], [1], [0], [0], [0, 0, 1, 0], [], []>} : vector<16x16xf32>, vector<32x16xf32>, vector<16x32xf32> -> vector<16x32xf32>
    %211 = vector.broadcast %15 : vector<1x32xf32> to vector<16x32xf32>
    %212 = arith.addf %210, %211 : vector<16x32xf32>
    %213 = arith.addf %178, %212 : vector<16x32xf32>
    %cst_74 = arith.constant -1.000000e+09 : f32
    %cst_75 = arith.constant 1.000000e+09 : f32
    %214 = vector.broadcast %cst_74 : f32 to vector<16x32xf32>
    %215 = arith.maximumf %214, %213 : vector<16x32xf32>
    %216 = vector.broadcast %cst_75 : f32 to vector<16x32xf32>
    %217 = arith.minimumf %216, %215 : vector<16x32xf32>
    %cst_76 = arith.constant dense<0.000000e+00> : vector<16xf32>
    %218 = vector.multi_reduction <add>, %217, %cst_76 [1] : vector<16x32xf32> to vector<16xf32>
    %219 = vector.shape_cast %218 : vector<16xf32> to vector<16x1xf32>
    %cst_77 = arith.constant 3.200000e+01 : f32
    %220 = vector.broadcast %cst_77 : f32 to vector<16x1xf32>
    %221 = arith.divf %219, %220 : vector<16x1xf32>
    %222 = vector.broadcast %221 : vector<16x1xf32> to vector<16x32xf32>
    %223 = arith.subf %217, %222 : vector<16x32xf32>
    %224 = arith.mulf %223, %223 : vector<16x32xf32>
    %cst_78 = arith.constant dense<0.000000e+00> : vector<16xf32>
    %225 = vector.multi_reduction <add>, %224, %cst_78 [1] : vector<16x32xf32> to vector<16xf32>
    %226 = vector.shape_cast %225 : vector<16xf32> to vector<16x1xf32>
    %cst_79 = arith.constant 3.200000e+01 : f32
    %227 = vector.broadcast %cst_79 : f32 to vector<16x1xf32>
    %228 = arith.divf %226, %227 : vector<16x1xf32>
    %229 = vector.broadcast %221 : vector<16x1xf32> to vector<16x32xf32>
    %230 = arith.subf %217, %229 : vector<16x32xf32>
    %cst_80 = arith.constant 9.99999974E-6 : f32
    %231 = vector.broadcast %cst_80 : f32 to vector<16x1xf32>
    %232 = arith.addf %228, %231 : vector<16x1xf32>
    %233 = math.rsqrt %232 : vector<16x1xf32>
    %234 = vector.broadcast %233 : vector<16x1xf32> to vector<16x32xf32>
    %235 = arith.mulf %230, %234 : vector<16x32xf32>
    %236 = vector.broadcast %10 : vector<1x32xf32> to vector<16x32xf32>
    %237 = arith.mulf %235, %236 : vector<16x32xf32>
    %238 = vector.broadcast %11 : vector<1x32xf32> to vector<16x32xf32>
    %239 = arith.addf %237, %238 : vector<16x32xf32>
    %cst_81 = arith.constant -1.000000e+09 : f32
    %cst_82 = arith.constant 1.000000e+09 : f32
    %240 = vector.broadcast %cst_81 : f32 to vector<16x32xf32>
    %241 = arith.maximumf %240, %239 : vector<16x32xf32>
    %242 = vector.broadcast %cst_82 : f32 to vector<16x32xf32>
    %243 = arith.minimumf %242, %241 : vector<16x32xf32>
    %cst_83 = arith.constant dense<0.000000e+00> : vector<16xf32>
    %244 = vector.multi_reduction <add>, %243, %cst_83 [1] : vector<16x32xf32> to vector<16xf32>
    %245 = vector.shape_cast %244 : vector<16xf32> to vector<16x1xf32>
    %cst_84 = arith.constant 3.200000e+01 : f32
    %246 = vector.broadcast %cst_84 : f32 to vector<16x1xf32>
    %247 = arith.divf %245, %246 : vector<16x1xf32>
    %248 = vector.broadcast %247 : vector<16x1xf32> to vector<16x32xf32>
    %249 = arith.subf %243, %248 : vector<16x32xf32>
    %250 = arith.mulf %249, %249 : vector<16x32xf32>
    %cst_85 = arith.constant dense<0.000000e+00> : vector<16xf32>
    %251 = vector.multi_reduction <add>, %250, %cst_85 [1] : vector<16x32xf32> to vector<16xf32>
    %252 = vector.shape_cast %251 : vector<16xf32> to vector<16x1xf32>
    %cst_86 = arith.constant 3.200000e+01 : f32
    %253 = vector.broadcast %cst_86 : f32 to vector<16x1xf32>
    %254 = arith.divf %252, %253 : vector<16x1xf32>
    %255 = vector.broadcast %247 : vector<16x1xf32> to vector<16x32xf32>
    %256 = arith.subf %243, %255 : vector<16x32xf32>
    %cst_87 = arith.constant 9.99999974E-6 : f32
    %257 = vector.broadcast %cst_87 : f32 to vector<16x1xf32>
    %258 = arith.addf %254, %257 : vector<16x1xf32>
    %259 = math.rsqrt %258 : vector<16x1xf32>
    %260 = vector.broadcast %259 : vector<16x1xf32> to vector<16x32xf32>
    %261 = arith.mulf %256, %260 : vector<16x32xf32>
    %262 = vector.broadcast %8 : vector<1x32xf32> to vector<16x32xf32>
    %263 = arith.mulf %261, %262 : vector<16x32xf32>
    %264 = vector.broadcast %9 : vector<1x32xf32> to vector<16x32xf32>
    %265 = arith.addf %263, %264 : vector<16x32xf32>
    %cst_88 = arith.constant dense<0.000000e+00> : vector<16x96xf32>
    %266 = tpu.matmul %265, %1, %cst_88 {dimension_numbers = #tpu.dot_dimension_numbers<[1], [0], [0], [1], [0, 0, 1, 1], [], []>} : vector<16x32xf32>, vector<32x96xf32>, vector<16x96xf32> -> vector<16x96xf32>
    %267 = vector.broadcast %6 : vector<1x96xf32> to vector<16x96xf32>
    %268 = arith.addf %266, %267 : vector<16x96xf32>
    %269 = vector.extract_strided_slice %268 {offsets = [0, 0], sizes = [16, 8], strides = [1, 1]} : vector<16x96xf32> to vector<16x8xf32>
    %270 = vector.extract_strided_slice %268 {offsets = [0, 32], sizes = [16, 8], strides = [1, 1]} : vector<16x96xf32> to vector<16x8xf32>
    %271 = vector.extract_strided_slice %268 {offsets = [0, 64], sizes = [16, 8], strides = [1, 1]} : vector<16x96xf32> to vector<16x8xf32>
    %cst_89 = arith.constant dense<0.000000e+00> : vector<16x16xf32>
    %272 = tpu.matmul %269, %270, %cst_89 {dimension_numbers = #tpu.dot_dimension_numbers<[1], [1], [0], [0], [0, 0, 1, 0], [], []>} : vector<16x8xf32>, vector<16x8xf32>, vector<16x16xf32> -> vector<16x16xf32>
    %273 = vector.broadcast %18 : f32 to vector<16x16xf32>
    %274 = arith.mulf %272, %273 : vector<16x16xf32>
    %275 = arith.addf %274, %46 : vector<16x16xf32>
    %cst_90 = arith.constant dense<0xFF800000> : vector<16xf32>
    %276 = vector.multi_reduction <maximumf>, %275, %cst_90 [1] : vector<16x16xf32> to vector<16xf32>
    %277 = vector.shape_cast %276 : vector<16xf32> to vector<16x1xf32>
    %278 = vector.broadcast %277 : vector<16x1xf32> to vector<16x16xf32>
    %279 = arith.subf %275, %278 : vector<16x16xf32>
    %280 = math.exp %279 : vector<16x16xf32>
    %cst_91 = arith.constant dense<0.000000e+00> : vector<16xf32>
    %281 = vector.multi_reduction <add>, %280, %cst_91 [1] : vector<16x16xf32> to vector<16xf32>
    %282 = vector.shape_cast %281 : vector<16xf32> to vector<16x1xf32>
    %283 = tpu.reciprocal %282 {approx = true} : vector<16x1xf32> -> vector<16x1xf32>
    %284 = vector.broadcast %283 : vector<16x1xf32> to vector<16x16xf32>
    %285 = arith.mulf %280, %284 : vector<16x16xf32>
    %cst_92 = arith.constant dense<0.000000e+00> : vector<16x8xf32>
    %286 = tpu.matmul %285, %271, %cst_92 {dimension_numbers = #tpu.dot_dimension_numbers<[1], [0], [0], [1], [0, 0, 1, 1], [], []>} : vector<16x16xf32>, vector<16x8xf32>, vector<16x8xf32> -> vector<16x8xf32>
    %287 = vector.extract_strided_slice %268 {offsets = [0, 8], sizes = [16, 8], strides = [1, 1]} : vector<16x96xf32> to vector<16x8xf32>
    %288 = vector.extract_strided_slice %268 {offsets = [0, 40], sizes = [16, 8], strides = [1, 1]} : vector<16x96xf32> to vector<16x8xf32>
    %289 = vector.extract_strided_slice %268 {offsets = [0, 72], sizes = [16, 8], strides = [1, 1]} : vector<16x96xf32> to vector<16x8xf32>
    %cst_93 = arith.constant dense<0.000000e+00> : vector<16x16xf32>
    %290 = tpu.matmul %287, %288, %cst_93 {dimension_numbers = #tpu.dot_dimension_numbers<[1], [1], [0], [0], [0, 0, 1, 0], [], []>} : vector<16x8xf32>, vector<16x8xf32>, vector<16x16xf32> -> vector<16x16xf32>
    %291 = vector.broadcast %18 : f32 to vector<16x16xf32>
    %292 = arith.mulf %290, %291 : vector<16x16xf32>
    %293 = arith.addf %292, %46 : vector<16x16xf32>
    %cst_94 = arith.constant dense<0xFF800000> : vector<16xf32>
    %294 = vector.multi_reduction <maximumf>, %293, %cst_94 [1] : vector<16x16xf32> to vector<16xf32>
    %295 = vector.shape_cast %294 : vector<16xf32> to vector<16x1xf32>
    %296 = vector.broadcast %295 : vector<16x1xf32> to vector<16x16xf32>
    %297 = arith.subf %293, %296 : vector<16x16xf32>
    %298 = math.exp %297 : vector<16x16xf32>
    %cst_95 = arith.constant dense<0.000000e+00> : vector<16xf32>
    %299 = vector.multi_reduction <add>, %298, %cst_95 [1] : vector<16x16xf32> to vector<16xf32>
    %300 = vector.shape_cast %299 : vector<16xf32> to vector<16x1xf32>
    %301 = tpu.reciprocal %300 {approx = true} : vector<16x1xf32> -> vector<16x1xf32>
    %302 = vector.broadcast %301 : vector<16x1xf32> to vector<16x16xf32>
    %303 = arith.mulf %298, %302 : vector<16x16xf32>
    %cst_96 = arith.constant dense<0.000000e+00> : vector<16x8xf32>
    %304 = tpu.matmul %303, %289, %cst_96 {dimension_numbers = #tpu.dot_dimension_numbers<[1], [0], [0], [1], [0, 0, 1, 1], [], []>} : vector<16x16xf32>, vector<16x8xf32>, vector<16x8xf32> -> vector<16x8xf32>
    %305 = vector.extract_strided_slice %268 {offsets = [0, 16], sizes = [16, 8], strides = [1, 1]} : vector<16x96xf32> to vector<16x8xf32>
    %306 = vector.extract_strided_slice %268 {offsets = [0, 48], sizes = [16, 8], strides = [1, 1]} : vector<16x96xf32> to vector<16x8xf32>
    %307 = vector.extract_strided_slice %268 {offsets = [0, 80], sizes = [16, 8], strides = [1, 1]} : vector<16x96xf32> to vector<16x8xf32>
    %cst_97 = arith.constant dense<0.000000e+00> : vector<16x16xf32>
    %308 = tpu.matmul %305, %306, %cst_97 {dimension_numbers = #tpu.dot_dimension_numbers<[1], [1], [0], [0], [0, 0, 1, 0], [], []>} : vector<16x8xf32>, vector<16x8xf32>, vector<16x16xf32> -> vector<16x16xf32>
    %309 = vector.broadcast %18 : f32 to vector<16x16xf32>
    %310 = arith.mulf %308, %309 : vector<16x16xf32>
    %311 = arith.addf %310, %46 : vector<16x16xf32>
    %cst_98 = arith.constant dense<0xFF800000> : vector<16xf32>
    %312 = vector.multi_reduction <maximumf>, %311, %cst_98 [1] : vector<16x16xf32> to vector<16xf32>
    %313 = vector.shape_cast %312 : vector<16xf32> to vector<16x1xf32>
    %314 = vector.broadcast %313 : vector<16x1xf32> to vector<16x16xf32>
    %315 = arith.subf %311, %314 : vector<16x16xf32>
    %316 = math.exp %315 : vector<16x16xf32>
    %cst_99 = arith.constant dense<0.000000e+00> : vector<16xf32>
    %317 = vector.multi_reduction <add>, %316, %cst_99 [1] : vector<16x16xf32> to vector<16xf32>
    %318 = vector.shape_cast %317 : vector<16xf32> to vector<16x1xf32>
    %319 = tpu.reciprocal %318 {approx = true} : vector<16x1xf32> -> vector<16x1xf32>
    %320 = vector.broadcast %319 : vector<16x1xf32> to vector<16x16xf32>
    %321 = arith.mulf %316, %320 : vector<16x16xf32>
    %cst_100 = arith.constant dense<0.000000e+00> : vector<16x8xf32>
    %322 = tpu.matmul %321, %307, %cst_100 {dimension_numbers = #tpu.dot_dimension_numbers<[1], [0], [0], [1], [0, 0, 1, 1], [], []>} : vector<16x16xf32>, vector<16x8xf32>, vector<16x8xf32> -> vector<16x8xf32>
    %323 = vector.extract_strided_slice %268 {offsets = [0, 24], sizes = [16, 8], strides = [1, 1]} : vector<16x96xf32> to vector<16x8xf32>
    %324 = vector.extract_strided_slice %268 {offsets = [0, 56], sizes = [16, 8], strides = [1, 1]} : vector<16x96xf32> to vector<16x8xf32>
    %325 = vector.extract_strided_slice %268 {offsets = [0, 88], sizes = [16, 8], strides = [1, 1]} : vector<16x96xf32> to vector<16x8xf32>
    %cst_101 = arith.constant dense<0.000000e+00> : vector<16x16xf32>
    %326 = tpu.matmul %323, %324, %cst_101 {dimension_numbers = #tpu.dot_dimension_numbers<[1], [1], [0], [0], [0, 0, 1, 0], [], []>} : vector<16x8xf32>, vector<16x8xf32>, vector<16x16xf32> -> vector<16x16xf32>
    %327 = vector.broadcast %18 : f32 to vector<16x16xf32>
    %328 = arith.mulf %326, %327 : vector<16x16xf32>
    %329 = arith.addf %328, %46 : vector<16x16xf32>
    %cst_102 = arith.constant dense<0xFF800000> : vector<16xf32>
    %330 = vector.multi_reduction <maximumf>, %329, %cst_102 [1] : vector<16x16xf32> to vector<16xf32>
    %331 = vector.shape_cast %330 : vector<16xf32> to vector<16x1xf32>
    %332 = vector.broadcast %331 : vector<16x1xf32> to vector<16x16xf32>
    %333 = arith.subf %329, %332 : vector<16x16xf32>
    %334 = math.exp %333 : vector<16x16xf32>
    %cst_103 = arith.constant dense<0.000000e+00> : vector<16xf32>
    %335 = vector.multi_reduction <add>, %334, %cst_103 [1] : vector<16x16xf32> to vector<16xf32>
    %336 = vector.shape_cast %335 : vector<16xf32> to vector<16x1xf32>
    %337 = tpu.reciprocal %336 {approx = true} : vector<16x1xf32> -> vector<16x1xf32>
    %338 = vector.broadcast %337 : vector<16x1xf32> to vector<16x16xf32>
    %339 = arith.mulf %334, %338 : vector<16x16xf32>
    %cst_104 = arith.constant dense<0.000000e+00> : vector<16x8xf32>
    %340 = tpu.matmul %339, %325, %cst_104 {dimension_numbers = #tpu.dot_dimension_numbers<[1], [0], [0], [1], [0, 0, 1, 1], [], []>} : vector<16x16xf32>, vector<16x8xf32>, vector<16x8xf32> -> vector<16x8xf32>
    %341 = tpu.concatenate %286, %304, %322, %340 in 1 : vector<16x8xf32>, vector<16x8xf32>, vector<16x8xf32>, vector<16x8xf32> -> vector<16x32xf32>
    %cst_105 = arith.constant dense<0.000000e+00> : vector<16x32xf32>
    %342 = tpu.matmul %341, %2, %cst_105 {dimension_numbers = #tpu.dot_dimension_numbers<[1], [0], [0], [1], [0, 0, 1, 1], [], []>} : vector<16x32xf32>, vector<32x32xf32>, vector<16x32xf32> -> vector<16x32xf32>
    %343 = vector.broadcast %7 : vector<1x32xf32> to vector<16x32xf32>
    %344 = arith.addf %342, %343 : vector<16x32xf32>
    %345 = vector.extract_strided_slice %239 {offsets = [0, 0], sizes = [1, 32], strides = [1, 1]} : vector<16x32xf32> to vector<1x32xf32>
    %346 = vector.extract_strided_slice %239 {offsets = [8, 0], sizes = [1, 32], strides = [1, 1]} : vector<16x32xf32> to vector<1x32xf32>
    %347 = tpu.concatenate %345, %346 in 0 : vector<1x32xf32>, vector<1x32xf32> -> vector<2x32xf32>
    %348 = vector.extract_strided_slice %344 {offsets = [0, 0], sizes = [1, 32], strides = [1, 1]} : vector<16x32xf32> to vector<1x32xf32>
    %349 = vector.extract_strided_slice %344 {offsets = [8, 0], sizes = [1, 32], strides = [1, 1]} : vector<16x32xf32> to vector<1x32xf32>
    %350 = tpu.concatenate %348, %349 in 0 : vector<1x32xf32>, vector<1x32xf32> -> vector<2x32xf32>
    %351 = arith.addf %347, %350 : vector<2x32xf32>
    %cst_106 = arith.constant -1.000000e+09 : f32
    %cst_107 = arith.constant 1.000000e+09 : f32
    %352 = vector.broadcast %cst_106 : f32 to vector<2x32xf32>
    %353 = arith.maximumf %352, %351 : vector<2x32xf32>
    %354 = vector.broadcast %cst_107 : f32 to vector<2x32xf32>
    %355 = arith.minimumf %354, %353 : vector<2x32xf32>
    %cst_108 = arith.constant dense<0.000000e+00> : vector<2xf32>
    %356 = vector.multi_reduction <add>, %355, %cst_108 [1] : vector<2x32xf32> to vector<2xf32>
    %357 = vector.shape_cast %356 : vector<2xf32> to vector<2x1xf32>
    %cst_109 = arith.constant 3.200000e+01 : f32
    %358 = vector.broadcast %cst_109 : f32 to vector<2x1xf32>
    %359 = arith.divf %357, %358 : vector<2x1xf32>
    %360 = vector.broadcast %359 : vector<2x1xf32> to vector<2x32xf32>
    %361 = arith.subf %355, %360 : vector<2x32xf32>
    %362 = arith.mulf %361, %361 : vector<2x32xf32>
    %cst_110 = arith.constant dense<0.000000e+00> : vector<2xf32>
    %363 = vector.multi_reduction <add>, %362, %cst_110 [1] : vector<2x32xf32> to vector<2xf32>
    %364 = vector.shape_cast %363 : vector<2xf32> to vector<2x1xf32>
    %cst_111 = arith.constant 3.200000e+01 : f32
    %365 = vector.broadcast %cst_111 : f32 to vector<2x1xf32>
    %366 = arith.divf %364, %365 : vector<2x1xf32>
    %367 = vector.broadcast %359 : vector<2x1xf32> to vector<2x32xf32>
    %368 = arith.subf %355, %367 : vector<2x32xf32>
    %cst_112 = arith.constant 9.99999974E-6 : f32
    %369 = vector.broadcast %cst_112 : f32 to vector<2x1xf32>
    %370 = arith.addf %366, %369 : vector<2x1xf32>
    %371 = math.rsqrt %370 : vector<2x1xf32>
    %372 = vector.broadcast %371 : vector<2x1xf32> to vector<2x32xf32>
    %373 = arith.mulf %368, %372 : vector<2x32xf32>
    %374 = vector.broadcast %8 : vector<1x32xf32> to vector<2x32xf32>
    %375 = arith.mulf %373, %374 : vector<2x32xf32>
    %376 = vector.broadcast %9 : vector<1x32xf32> to vector<2x32xf32>
    %377 = arith.addf %375, %376 : vector<2x32xf32>
    %cst_113 = arith.constant -1.000000e+09 : f32
    %cst_114 = arith.constant 1.000000e+09 : f32
    %378 = vector.broadcast %cst_113 : f32 to vector<2x32xf32>
    %379 = arith.maximumf %378, %377 : vector<2x32xf32>
    %380 = vector.broadcast %cst_114 : f32 to vector<2x32xf32>
    %381 = arith.minimumf %380, %379 : vector<2x32xf32>
    %cst_115 = arith.constant dense<0.000000e+00> : vector<2xf32>
    %382 = vector.multi_reduction <add>, %381, %cst_115 [1] : vector<2x32xf32> to vector<2xf32>
    %383 = vector.shape_cast %382 : vector<2xf32> to vector<2x1xf32>
    %cst_116 = arith.constant 3.200000e+01 : f32
    %384 = vector.broadcast %cst_116 : f32 to vector<2x1xf32>
    %385 = arith.divf %383, %384 : vector<2x1xf32>
    %386 = vector.broadcast %385 : vector<2x1xf32> to vector<2x32xf32>
    %387 = arith.subf %381, %386 : vector<2x32xf32>
    %388 = arith.mulf %387, %387 : vector<2x32xf32>
    %cst_117 = arith.constant dense<0.000000e+00> : vector<2xf32>
    %389 = vector.multi_reduction <add>, %388, %cst_117 [1] : vector<2x32xf32> to vector<2xf32>
    %390 = vector.shape_cast %389 : vector<2xf32> to vector<2x1xf32>
    %cst_118 = arith.constant 3.200000e+01 : f32
    %391 = vector.broadcast %cst_118 : f32 to vector<2x1xf32>
    %392 = arith.divf %390, %391 : vector<2x1xf32>
    %393 = vector.broadcast %385 : vector<2x1xf32> to vector<2x32xf32>
    %394 = arith.subf %381, %393 : vector<2x32xf32>
    %cst_119 = arith.constant 9.99999974E-6 : f32
    %395 = vector.broadcast %cst_119 : f32 to vector<2x1xf32>
    %396 = arith.addf %392, %395 : vector<2x1xf32>
    %397 = math.rsqrt %396 : vector<2x1xf32>
    %398 = vector.broadcast %397 : vector<2x1xf32> to vector<2x32xf32>
    %399 = arith.mulf %394, %398 : vector<2x32xf32>
    %400 = vector.broadcast %10 : vector<1x32xf32> to vector<2x32xf32>
    %401 = arith.mulf %399, %400 : vector<2x32xf32>
    %402 = vector.broadcast %11 : vector<1x32xf32> to vector<2x32xf32>
    %403 = arith.addf %401, %402 : vector<2x32xf32>
    %cst_120 = arith.constant dense<0.000000e+00> : vector<2x16xf32>
    %404 = tpu.matmul %403, %4, %cst_120 {dimension_numbers = #tpu.dot_dimension_numbers<[1], [0], [0], [1], [0, 0, 1, 1], [], []>} : vector<2x32xf32>, vector<32x16xf32>, vector<2x16xf32> -> vector<2x16xf32>
    %405 = vector.broadcast %14 : vector<1x16xf32> to vector<2x16xf32>
    %406 = arith.addf %404, %405 : vector<2x16xf32>
    %cst_121 = arith.constant 0.000000e+00 : f32
    %407 = vector.broadcast %cst_121 : f32 to vector<2x16xf32>
    %408 = arith.maximumf %406, %407 : vector<2x16xf32>
    %cst_122 = arith.constant dense<0.000000e+00> : vector<2x32xf32>
    %409 = tpu.matmul %408, %5, %cst_122 {dimension_numbers = #tpu.dot_dimension_numbers<[1], [1], [0], [0], [0, 0, 1, 0], [], []>} : vector<2x16xf32>, vector<32x16xf32>, vector<2x32xf32> -> vector<2x32xf32>
    %410 = vector.broadcast %15 : vector<1x32xf32> to vector<2x32xf32>
    %411 = arith.addf %409, %410 : vector<2x32xf32>
    %412 = arith.addf %377, %411 : vector<2x32xf32>
    %cst_123 = arith.constant -1.000000e+09 : f32
    %cst_124 = arith.constant 1.000000e+09 : f32
    %413 = vector.broadcast %cst_123 : f32 to vector<2x32xf32>
    %414 = arith.maximumf %413, %412 : vector<2x32xf32>
    %415 = vector.broadcast %cst_124 : f32 to vector<2x32xf32>
    %416 = arith.minimumf %415, %414 : vector<2x32xf32>
    %cst_125 = arith.constant dense<0.000000e+00> : vector<2xf32>
    %417 = vector.multi_reduction <add>, %416, %cst_125 [1] : vector<2x32xf32> to vector<2xf32>
    %418 = vector.shape_cast %417 : vector<2xf32> to vector<2x1xf32>
    %cst_126 = arith.constant 3.200000e+01 : f32
    %419 = vector.broadcast %cst_126 : f32 to vector<2x1xf32>
    %420 = arith.divf %418, %419 : vector<2x1xf32>
    %421 = vector.broadcast %420 : vector<2x1xf32> to vector<2x32xf32>
    %422 = arith.subf %416, %421 : vector<2x32xf32>
    %423 = arith.mulf %422, %422 : vector<2x32xf32>
    %cst_127 = arith.constant dense<0.000000e+00> : vector<2xf32>
    %424 = vector.multi_reduction <add>, %423, %cst_127 [1] : vector<2x32xf32> to vector<2xf32>
    %425 = vector.shape_cast %424 : vector<2xf32> to vector<2x1xf32>
    %cst_128 = arith.constant 3.200000e+01 : f32
    %426 = vector.broadcast %cst_128 : f32 to vector<2x1xf32>
    %427 = arith.divf %425, %426 : vector<2x1xf32>
    %428 = vector.broadcast %420 : vector<2x1xf32> to vector<2x32xf32>
    %429 = arith.subf %416, %428 : vector<2x32xf32>
    %cst_129 = arith.constant 9.99999974E-6 : f32
    %430 = vector.broadcast %cst_129 : f32 to vector<2x1xf32>
    %431 = arith.addf %427, %430 : vector<2x1xf32>
    %432 = math.rsqrt %431 : vector<2x1xf32>
    %433 = vector.broadcast %432 : vector<2x1xf32> to vector<2x32xf32>
    %434 = arith.mulf %429, %433 : vector<2x32xf32>
    %435 = vector.broadcast %10 : vector<1x32xf32> to vector<2x32xf32>
    %436 = arith.mulf %434, %435 : vector<2x32xf32>
    %437 = vector.broadcast %11 : vector<1x32xf32> to vector<2x32xf32>
    %438 = arith.addf %436, %437 : vector<2x32xf32>
    %cst_130 = arith.constant dense<0.000000e+00> : vector<2xf32>
    %439 = vector.multi_reduction <add>, %438, %cst_130 [1] : vector<2x32xf32> to vector<2xf32>
    %440 = vector.shape_cast %439 : vector<2xf32> to vector<2x1xf32>
    %cst_131 = arith.constant 3.200000e+01 : f32
    %441 = vector.broadcast %cst_131 : f32 to vector<2x1xf32>
    %442 = arith.divf %440, %441 : vector<2x1xf32>
    %443 = vector.broadcast %442 : vector<2x1xf32> to vector<2x32xf32>
    %444 = arith.subf %438, %443 : vector<2x32xf32>
    %445 = arith.mulf %444, %444 : vector<2x32xf32>
    %cst_132 = arith.constant dense<0.000000e+00> : vector<2xf32>
    %446 = vector.multi_reduction <add>, %445, %cst_132 [1] : vector<2x32xf32> to vector<2xf32>
    %447 = vector.shape_cast %446 : vector<2xf32> to vector<2x1xf32>
    %cst_133 = arith.constant 3.200000e+01 : f32
    %448 = vector.broadcast %cst_133 : f32 to vector<2x1xf32>
    %449 = arith.divf %447, %448 : vector<2x1xf32>
    %450 = vector.broadcast %442 : vector<2x1xf32> to vector<2x32xf32>
    %451 = arith.subf %438, %450 : vector<2x32xf32>
    %cst_134 = arith.constant 9.99999974E-6 : f32
    %452 = vector.broadcast %cst_134 : f32 to vector<2x1xf32>
    %453 = arith.addf %449, %452 : vector<2x1xf32>
    %454 = math.rsqrt %453 : vector<2x1xf32>
    %455 = vector.broadcast %454 : vector<2x1xf32> to vector<2x32xf32>
    %456 = arith.mulf %451, %455 : vector<2x32xf32>
    %457 = vector.broadcast %12 : vector<1x32xf32> to vector<2x32xf32>
    %458 = arith.mulf %456, %457 : vector<2x32xf32>
    %459 = vector.broadcast %13 : vector<1x32xf32> to vector<2x32xf32>
    %460 = arith.addf %458, %459 : vector<2x32xf32>
    %cst_135 = arith.constant 0.000000e+00 : f32
    %461 = vector.broadcast %cst_135 : f32 to vector<2x32xf32>
    %462 = arith.maximumf %460, %461 : vector<2x32xf32>
    %cst_136 = arith.constant dense<0.000000e+00> : vector<2x128xf32>
    %463 = tpu.matmul %462, %3, %cst_136 {dimension_numbers = #tpu.dot_dimension_numbers<[1], [0], [0], [1], [0, 0, 1, 1], [], []>} : vector<2x32xf32>, vector<32x128xf32>, vector<2x128xf32> -> vector<2x128xf32>
    %464 = vector.broadcast %16 : vector<1x128xf32> to vector<2x128xf32>
    %465 = arith.addf %463, %464 : vector<2x128xf32>
    %c0_137 = arith.constant 0 : index
    %c0_138 = arith.constant 0 : index
    %466 = vector.load %arg2[%c0_137, %c0_138] : memref<2x128xf32, #tpu.memory_space<vmem>>, vector<2x128xf32>
    tpu.vector_store %arg2[%c0_137, %c0_138], %465 {strides = array<i32>} : memref<2x128xf32, #tpu.memory_space<vmem>>, vector<2x128xf32>,
    return
  }
}

</mosaic_0001>

<llo_original>
// kernel: transformer_forward.1
$region0: #{transformer_forward.1}
  #allocation0 [shape = 'u32[]', space=smem, size = 0x4, offset = 0x4, fixed_abs, tag = 'smem constant byte address 0x4 - core index']
  #allocation1 [shape = 'u32[144,128]{1,0:T(1,128)}', space=vmem, size = 0x12000, scoped, tag = 'internal scratch']
  %s0 = inlined_call_operand.hbm [shape: f32[16,32], index: 0, kind: input, shape index: {}]
  %s1 = inlined_call_operand.hbm [shape: f32[36,288], index: 1, kind: input, shape index: {}]
  %s2 = inlined_call_operand.vmem [shape: f32[2,128], index: 2, kind: output, shape index: {}]
  %s3 = sld [smem:[#allocation0]]
  $region26: #{transformer_forward.1} parent=0
    _
  %s5 = ssub.s32 1, %s3
  %s6 = scalar_select 0, %s5, %s3
  $region1: #{transformer_forward.1} parent=0
    #allocation2 [shape = 'u8[8192]{0}', space=vmem, size = 0x2000, scoped, tag = 'input window, operand 0, single buffered']
    #allocation3 [shape = 's32[1]{0}', space=sflag, size = 0x4, scoped, tag = 'scoped memory for transformer_forward.1']
    #allocation4 [shape = 'u8[61440]{0}', space=vmem, size = 0xf000, scoped, tag = 'input window, operand 1, single buffered']
    #allocation5 [shape = 's32[1]{0}', space=sflag, size = 0x4, scoped, tag = 'scoped memory for transformer_forward.1']
    %7 = vsyncpa [#allocation3], 0
    %8 = vsyncpa [#allocation5], 0
    // Predicated region
    $region2: #{transformer_forward.1} parent=1 // pred_check
      _
    $region3: #{transformer_forward.1} parent=1 // pred_check_branch
      %10 = sbr.rel (0) target = $region5
    $region4: #{transformer_forward.1} parent=1 // pred_region
      %s12 = ssub.s32 256, 256
      %13 = vsyncadd [#allocation3], %s12
      %s14 = sshll.u32 [#allocation2], 4
      %s15 = int_to_ptr.vmem [resolvable:$true] %s14
      %20 = dma.hbm_to_vmem [thread:$0]  %s0, 256, %s15, [#allocation3], 128, 128, 8
    $region5: #{transformer_forward.1} parent=1 // pred_fallthru
      _
    // Predicated region
    $region6: #{transformer_forward.1} parent=1 // pred_check
      _
    $region7: #{transformer_forward.1} parent=1 // pred_check_branch
      %22 = sbr.rel (0) target = $region9
    $region8: #{transformer_forward.1} parent=1 // pred_region
      %s24 = ssub.s32 1920, 1920
      %25 = vsyncadd [#allocation5], %s24
      %s26 = sshll.u32 [#allocation4], 4
      %s27 = int_to_ptr.vmem [resolvable:$true] %s26
      %32 = dma.hbm_to_vmem [thread:$0]  %s1, 1920, %s27, [#allocation5], 384, 384, 24
    $region9: #{transformer_forward.1} parent=1 // pred_fallthru
      _
    // Predicated region
    $region10: #{transformer_forward.1} parent=1 // pred_check
      _
    $region11: #{transformer_forward.1} parent=1 // pred_check_branch
      %34 = sbr.rel (0) target = $region13
    $region12: #{transformer_forward.1} parent=1 // pred_region
      %35 = dma.done [#allocation3], 256
    $region13: #{transformer_forward.1} parent=1 // pred_fallthru
      _
    // Predicated region
    $region14: #{transformer_forward.1} parent=1 // pred_check
      _
    $region15: #{transformer_forward.1} parent=1 // pred_check_branch
      %37 = sbr.rel (0) target = $region17
    $region16: #{transformer_forward.1} parent=1 // pred_region
      %38 = dma.done [#allocation5], 1920
    $region17: #{transformer_forward.1} parent=1 // pred_fallthru
      _
    %v39 = vld [vmem:[#allocation2] sm:$0xff]
    %v40 = vld [vmem:[#allocation2 + $0x8] sm:$0xff]
    %v41 = vld [vmem:[#allocation4] sm:$0xff]
    %v42 = vld [vmem:[#allocation4 + $0x18] sm:$0xff]
    %v43 = vld [vmem:[#allocation4 + $0x30] sm:$0xff]
    %v44 = vld [vmem:[#allocation4 + $0x48] sm:$0xff]
    %v45 = vld [vmem:[#allocation4 + $0x8] sm:$0xff]
    %v46 = vld [vmem:[#allocation4 + $0x20] sm:$0xff]
    %v47 = vld [vmem:[#allocation4 + $0x38] sm:$0xff]
    %v48 = vld [vmem:[#allocation4 + $0x50] sm:$0xff]
    %v49 = vld [vmem:[#allocation4 + $0x10] sm:$0xff]
    %v50 = vld [vmem:[#allocation4 + $0x28] sm:$0xff]
    %v51 = vld [vmem:[#allocation4 + $0x40] sm:$0xff]
    %v52 = vld [vmem:[#allocation4 + $0x58] sm:$0xff]
    %v53 = vld [vmem:[#allocation4 + $0x60] ss:$0 sm:$0xff]
    %v54 = vld [vmem:[#allocation4 + $0x61] ss:$0 sm:$0xff]
    %v55 = vld [vmem:[#allocation4 + $0x62] ss:$0 sm:$0xff]
    %v56 = vld [vmem:[#allocation4 + $0x63] ss:$0 sm:$0xff]
    %v57 = vlaneseq
    %v58 = vshrl.u32 %v57, 7
    %v59 = vadd.s32 %v58, 8
    %v60 = vlaneseq
    %v61 = vand.u32 %v60, 127
    %vm62 = vcmp.ge.s32.totalorder %v58, 0
    %vm63 = vcmp.ge.s32.totalorder %v59, 0
    %vm64 = vcmp.lt.s32.totalorder %v58, 8
    %vm65 = vcmp.lt.s32.totalorder %v59, 8
    %vm66 = vmand %vm62, %vm64
    %vm67 = vmand %vm63, %vm65
    %vm68 = vcmp.ge.s32.totalorder %v61, 0
    %vm69 = vcmp.lt.s32.totalorder %v61, 8
    %vm70 = vmand %vm68, %vm69
    %vm71 = vmand %vm66, %vm70
    %vm72 = vmand %vm67, %vm70
    %vm73 = vcmp.ge.s32.totalorder %v58, 8
    %vm74 = vcmp.ge.s32.totalorder %v59, 8
    %vm75 = vcmp.lt.s32.totalorder %v58, 16
    %vm76 = vcmp.lt.s32.totalorder %v59, 16
    %vm77 = vmand %vm73, %vm75
    %vm78 = vmand %vm74, %vm76
    %vm79 = vcmp.ge.s32.totalorder %v61, 8
    %vm80 = vcmp.lt.s32.totalorder %v61, 16
    %vm81 = vmand %vm79, %vm80
    %vm82 = vmand %vm77, %vm81
    %vm83 = vmand %vm78, %vm81
    %vm84 = vmor %vm71, %vm82
    %vm85 = vmor %vm72, %vm83
    %v86 = vsel %vm84, 0.0, -1e+30
    %v87 = vsel %vm85, 0.0, -1e+30
    %v88 = vmax.f32 %v39, -1e+09
    %v89 = vmax.f32 %v40, -1e+09
    %v90 = vmin.f32 %v88, 1e+09
    %v91 = vmin.f32 %v89, 1e+09
    %vm92 = vcmask 261120
    %v93 = vsel %vm92, %v90, 0.0
    %94 = vadd.xlane.f32.xlu0 %v93
    %v95 = vpop.xlane.xlu0 %94
    %v96 = vsel %vm92, %v91, 0.0
    %97 = vadd.xlane.f32.xlu0 %v96
    %v98 = vpop.xlane.xlu0 %97
    %v99 = vrcp.pop 32.0
    %v100 = vmul.f32 %v95, %v99
    %v101 = vmul.f32 %v98, %v99
    %v102 = vsub.f32 %v90, %v100
    %v103 = vsub.f32 %v91, %v101
    %v104 = vmul.f32 %v102, %v102
    %v105 = vmul.f32 %v103, %v103
    %v106 = vsel %vm92, %v104, 0.0
    %107 = vadd.xlane.f32.xlu0 %v106
    %v108 = vpop.xlane.xlu0 %107
    %v109 = vsel %vm92, %v105, 0.0
    %110 = vadd.xlane.f32.xlu0 %v109
    %v111 = vpop.xlane.xlu0 %110
    %v112 = vmul.f32 %v108, %v99
    %v113 = vmul.f32 %v111, %v99
    %v114 = vadd.f32 %v112, 1e-05
    %v115 = vadd.f32 %v113, 1e-05
    %v116 = vrsqrt.pop %v114
    %v117 = vrsqrt.pop %v115
    %v118 = vmul.f32 %v102, %v116
    %v119 = vmul.f32 %v103, %v117
    %v120 = vmul.f32 %v118, %v54
    %v121 = vmul.f32 %v119, %v54
    %123 = vrot.lane.b32.xlu0 %v54, 96
    %v124 = vpop.permute.xlu0 %123
    %v126 = vadd.f32 %v120, %v124
    %v127 = vadd.f32 %v121, %v124
    %v129 = vsel %vm92, %v126, 0
    %v132 = vsel %vm92, %v127, 0
    %134 = vmatprep.subr.mxu0 0.0
    %135 = vmatpush1.msra.mxu0 0.0
    %136 = vmatprep.subr.mxu0 0.0
    %137 = vmatpush1.msra.mxu0 0.0
    %138 = vmatprep.subr.mxu0 0.0
    %139 = vmatpush1.msra.mxu0 0.0
    %140 = vmatprep.subr.mxu0 0.0
    %141 = vmatpush1.msra.mxu0 0.0
    %142 = vmatprep.subr.mxu0 0.0
    %143 = vmatpush1.msra.mxu0 0.0
    %144 = vmatprep.subr.mxu0 0.0
    %145 = vmatpush1.msra.mxu0 0.0
    %146 = vmatprep.subr.mxu0 0.0
    %147 = vmatpush1.msra.mxu0 0.0
    %148 = vmatprep.subr.mxu0 0.0
    %149 = vmatpush1.msra.mxu0 0.0
    %150 = vmatprep.subr.mxu0 0.0
    %151 = vmatpush1.msra.mxu0 0.0
    %152 = vmatprep.subr.mxu0 0.0
    %153 = vmatpush1.msra.mxu0 0.0
    %154 = vmatprep.subr.mxu0 0.0
    %155 = vmatpush1.msra.mxu0 0.0
    %156 = vmatprep.subr.mxu0 0.0
    %157 = vmatpush1.msra.mxu0 0.0
    %158 = vmatprep.subr.mxu0 0.0
    %159 = vmatpush1.msra.mxu0 %v44
    %160 = vmatprep.subr.mxu0 0.0
    %161 = vmatpush1.msra.mxu0 %v43
    %162 = vmatprep.subr.mxu0 0.0
    %163 = vmatpush1.msra.mxu0 %v42
    %164 = vmatprep.subr.mxu0 0.0
    %165 = vmatpush1.msra.mxu0 %v41
    %166 = vmatprep.subr.mxu0 0.0
    %167 = vmatpush2.msra.mxu0 0.0
    %168 = vmatprep.subr.mxu0 0.0
    %169 = vmatpush2.msra.mxu0 0.0
    %170 = vmatprep.subr.mxu0 0.0
    %171 = vmatpush2.msra.mxu0 0.0
    %172 = vmatprep.subr.mxu0 0.0
    %173 = vmatpush2.msra.mxu0 0.0
    %174 = vmatprep.subr.mxu0 0.0
    %175 = vmatpush2.msra.mxu0 0.0
    %176 = vmatprep.subr.mxu0 0.0
    %177 = vmatpush2.msra.mxu0 0.0
    %178 = vmatprep.subr.mxu0 0.0
    %179 = vmatpush2.msra.mxu0 0.0
    %180 = vmatprep.subr.mxu0 0.0
    %181 = vmatpush2.msra.mxu0 0.0
    %182 = vmatprep.subr.mxu0 0.0
    %183 = vmatpush2.msra.mxu0 0.0
    %184 = vmatprep.subr.mxu0 0.0
    %185 = vmatpush2.msra.mxu0 0.0
    %186 = vmatprep.subr.mxu0 0.0
    %187 = vmatpush2.msra.mxu0 0.0
    %188 = vmatprep.subr.mxu0 0.0
    %189 = vmatpush2.msra.mxu0 0.0
    %190 = vmatprep.subr.mxu0 0.0
    %191 = vmatpush2.msra.mxu0 0.0
    %192 = vmatprep.subr.mxu0 0.0
    %193 = vmatpush2.msra.mxu0 0.0
    %194 = vmatprep.subr.mxu0 0.0
    %195 = vmatpush2.msra.mxu0 0.0
    %196 = vmatprep.subr.mxu0 0.0
    %197 = vmatpush2.msra.mxu0 0.0
    %198 = vmatprep.mubr.f32.mxu0 0.0
    %199 = vmatmul.mubr.f32.gmra.mxu0 %v129
    %v200 = vpop.f32.mrf.mxu0
    %v201 = vadd.f32 %v53, %v200
    %v202 = vpop.f32.mrf.mxu0
    %203 = vmatprep.mubr.f32.mxu0 0.0
    %204 = vmatmul.mubr.f32.gmra.mxu0 %v132
    %v205 = vpop.f32.mrf.mxu0
    %v206 = vadd.f32 %v53, %v205
    %v207 = vpop.f32.mrf.mxu0
    %208 = vdwg.mxu0
    %211 = vrot.lane.b32.xlu0 %v201, 96
    %v212 = vpop.permute.xlu0 %211
    %213 = vrot.lane.b32.xlu0 %v206, 96
    %v214 = vpop.permute.xlu0 %213
    %vm215 = vcmask 64512
    %v216 = vsel %vm215, %v201, 0
    %v218 = vsel %vm215, %v206, 0
    %v220 = vsel %vm215, %v212, 0
    %v222 = vsel %vm215, %v214, 0
    %224 = vmatprep.subr.mxu0 0.0
    %225 = vmatpush1.xpose.msra.mxu0 0.0
    %226 = vmatprep.subr.mxu0 0.0
    %227 = vmatpush1.xpose.msra.mxu0 0.0
    %228 = vmatprep.subr.mxu0 0.0
    %229 = vmatpush1.xpose.msra.mxu0 0.0
    %230 = vmatprep.subr.mxu0 0.0
    %231 = vmatpush1.xpose.msra.mxu0 0.0
    %232 = vmatprep.subr.mxu0 0.0
    %233 = vmatpush1.xpose.msra.mxu0 0.0
    %234 = vmatprep.subr.mxu0 0.0
    %235 = vmatpush1.xpose.msra.mxu0 0.0
    %236 = vmatprep.subr.mxu0 0.0
    %237 = vmatpush1.xpose.msra.mxu0 0.0
    %238 = vmatprep.subr.mxu0 0.0
    %239 = vmatpush1.xpose.msra.mxu0 0.0
    %240 = vmatprep.subr.mxu0 0.0
    %241 = vmatpush1.xpose.msra.mxu0 0.0
    %242 = vmatprep.subr.mxu0 0.0
    %243 = vmatpush1.xpose.msra.mxu0 0.0
    %244 = vmatprep.subr.mxu0 0.0
    %245 = vmatpush1.xpose.msra.mxu0 0.0
    %246 = vmatprep.subr.mxu0 0.0
    %247 = vmatpush1.xpose.msra.mxu0 0.0
    %248 = vmatprep.subr.mxu0 0.0
    %249 = vmatpush1.xpose.msra.mxu0 0.0
    %250 = vmatprep.subr.mxu0 0.0
    %251 = vmatpush1.xpose.msra.mxu0 0.0
    %252 = vmatprep.subr.mxu0 0.0
    %253 = vmatpush1.xpose.msra.mxu0 %v222
    %254 = vmatprep.subr.mxu0 0.0
    %255 = vmatpush1.xpose.msra.mxu0 %v220
    %256 = vmatprep.subr.mxu0 0.0
    %257 = vmatpush2.xpose.msra.mxu0 0.0
    %258 = vmatprep.subr.mxu0 0.0
    %259 = vmatpush2.xpose.msra.mxu0 0.0
    %260 = vmatprep.subr.mxu0 0.0
    %261 = vmatpush2.xpose.msra.mxu0 0.0
    %262 = vmatprep.subr.mxu0 0.0
    %263 = vmatpush2.xpose.msra.mxu0 0.0
    %264 = vmatprep.subr.mxu0 0.0
    %265 = vmatpush2.xpose.msra.mxu0 0.0
    %266 = vmatprep.subr.mxu0 0.0
    %267 = vmatpush2.xpose.msra.mxu0 0.0
    %268 = vmatprep.subr.mxu0 0.0
    %269 = vmatpush2.xpose.msra.mxu0 0.0
    %270 = vmatprep.subr.mxu0 0.0
    %271 = vmatpush2.xpose.msra.mxu0 0.0
    %272 = vmatprep.subr.mxu0 0.0
    %273 = vmatpush2.xpose.msra.mxu0 0.0
    %274 = vmatprep.subr.mxu0 0.0
    %275 = vmatpush2.xpose.msra.mxu0 0.0
    %276 = vmatprep.subr.mxu0 0.0
    %277 = vmatpush2.xpose.msra.mxu0 0.0
    %278 = vmatprep.subr.mxu0 0.0
    %279 = vmatpush2.xpose.msra.mxu0 0.0
    %280 = vmatprep.subr.mxu0 0.0
    %281 = vmatpush2.xpose.msra.mxu0 0.0
    %282 = vmatprep.subr.mxu0 0.0
    %283 = vmatpush2.xpose.msra.mxu0 0.0
    %284 = vmatprep.subr.mxu0 0.0
    %285 = vmatpush2.xpose.msra.mxu0 0.0
    %286 = vmatprep.subr.mxu0 0.0
    %287 = vmatpush2.xpose.msra.mxu0 0.0
    %288 = vmatprep.mubr.f32.mxu0 0.0
    %289 = vmatmul.mubr.f32.gmra.mxu0 %v216
    %v290 = vpop.f32.mrf.mxu0
    %v291 = vadd.f32 0.0, %v290
    %v292 = vpop.f32.mrf.mxu0
    %293 = vmatprep.mubr.f32.mxu0 0.0
    %294 = vmatmul.mubr.f32.gmra.mxu0 %v218
    %v295 = vpop.f32.mrf.mxu0
    %v296 = vadd.f32 0.0, %v295
    %v297 = vpop.f32.mrf.mxu0
    %298 = vdwg.mxu0
    %v299 = vmul.f32 %v291, 0.35355338
    %v300 = vmul.f32 %v296, 0.35355338
    %v301 = vadd.f32 %v299, %v86
    %v302 = vadd.f32 %v300, %v87
    %vm303 = vcmask 130048
    %v304 = vsel %vm303, %v301, -inf
    %305 = vmax.xlane.f32.xlu0 %v304
    %v306 = vpop.xlane.xlu0 %305
    %v307 = vsel %vm303, %v302, -inf
    %308 = vmax.xlane.f32.xlu0 %v307
    %v309 = vpop.xlane.xlu0 %308
    %v310 = vsub.f32 %v301, %v306
    %v311 = vsub.f32 %v302, %v309
    %v312 = vmul.f32 %v310, 1.442695
    %v313 = vpow.pop %v312
    %v314 = vmul.f32 %v311, 1.442695
    %v315 = vpow.pop %v314
    %v316 = vsel %vm303, %v313, 0.0
    %317 = vadd.xlane.f32.xlu0 %v316
    %v318 = vpop.xlane.xlu0 %317
    %v319 = vsel %vm303, %v315, 0.0
    %320 = vadd.xlane.f32.xlu0 %v319
    %v321 = vpop.xlane.xlu0 %320
    %v322 = vrcp.pop %v318
    %v323 = vrcp.pop %v321
    %v324 = vmul.f32 %v313, %v322
    %v325 = vmul.f32 %v315, %v323
    %326 = vrot.lane.b32.xlu0 %v201, 64
    %v327 = vpop.permute.xlu0 %326
    %328 = vrot.lane.b32.xlu0 %v206, 64
    %v329 = vpop.permute.xlu0 %328
    %v333 = vsel %vm303, %v324, 0
    %v336 = vsel %vm303, %v325, 0
    %338 = vmatprep.subr.mxu0 0.0
    %339 = vmatpush1.msra.mxu0 0.0
    %340 = vmatprep.subr.mxu0 0.0
    %341 = vmatpush1.msra.mxu0 0.0
    %342 = vmatprep.subr.mxu0 0.0
    %343 = vmatpush1.msra.mxu0 0.0
    %344 = vmatprep.subr.mxu0 0.0
    %345 = vmatpush1.msra.mxu0 0.0
    %346 = vmatprep.subr.mxu0 0.0
    %347 = vmatpush1.msra.mxu0 0.0
    %348 = vmatprep.subr.mxu0 0.0
    %349 = vmatpush1.msra.mxu0 0.0
    %350 = vmatprep.subr.mxu0 0.0
    %351 = vmatpush1.msra.mxu0 0.0
    %352 = vmatprep.subr.mxu0 0.0
    %353 = vmatpush1.msra.mxu0 0.0
    %354 = vmatprep.subr.mxu0 0.0
    %355 = vmatpush1.msra.mxu0 0.0
    %356 = vmatprep.subr.mxu0 0.0
    %357 = vmatpush1.msra.mxu0 0.0
    %358 = vmatprep.subr.mxu0 0.0
    %359 = vmatpush1.msra.mxu0 0.0
    %360 = vmatprep.subr.mxu0 0.0
    %361 = vmatpush1.msra.mxu0 0.0
    %362 = vmatprep.subr.mxu0 0.0
    %363 = vmatpush1.msra.mxu0 0.0
    %364 = vmatprep.subr.mxu0 0.0
    %365 = vmatpush1.msra.mxu0 0.0
    %366 = vmatprep.subr.mxu0 0.0
    %367 = vmatpush1.msra.mxu0 %v329
    %368 = vmatprep.subr.mxu0 0.0
    %369 = vmatpush1.msra.mxu0 %v327
    %370 = vmatprep.subr.mxu0 0.0
    %371 = vmatpush2.msra.mxu0 0.0
    %372 = vmatprep.subr.mxu0 0.0
    %373 = vmatpush2.msra.mxu0 0.0
    %374 = vmatprep.subr.mxu0 0.0
    %375 = vmatpush2.msra.mxu0 0.0
    %376 = vmatprep.subr.mxu0 0.0
    %377 = vmatpush2.msra.mxu0 0.0
    %378 = vmatprep.subr.mxu0 0.0
    %379 = vmatpush2.msra.mxu0 0.0
    %380 = vmatprep.subr.mxu0 0.0
    %381 = vmatpush2.msra.mxu0 0.0
    %382 = vmatprep.subr.mxu0 0.0
    %383 = vmatpush2.msra.mxu0 0.0
    %384 = vmatprep.subr.mxu0 0.0
    %385 = vmatpush2.msra.mxu0 0.0
    %386 = vmatprep.subr.mxu0 0.0
    %387 = vmatpush2.msra.mxu0 0.0
    %388 = vmatprep.subr.mxu0 0.0
    %389 = vmatpush2.msra.mxu0 0.0
    %390 = vmatprep.subr.mxu0 0.0
    %391 = vmatpush2.msra.mxu0 0.0
    %392 = vmatprep.subr.mxu0 0.0
    %393 = vmatpush2.msra.mxu0 0.0
    %394 = vmatprep.subr.mxu0 0.0
    %395 = vmatpush2.msra.mxu0 0.0
    %396 = vmatprep.subr.mxu0 0.0
    %397 = vmatpush2.msra.mxu0 0.0
    %398 = vmatprep.subr.mxu0 0.0
    %399 = vmatpush2.msra.mxu0 0.0
    %400 = vmatprep.subr.mxu0 0.0
    %401 = vmatpush2.msra.mxu0 0.0
    %402 = vmatprep.mubr.f32.mxu0 0.0
    %403 = vmatmul.mubr.f32.gmra.mxu0 %v333
    %v404 = vpop.f32.mrf.mxu0
    %v405 = vadd.f32 0.0, %v404
    %v406 = vpop.f32.mrf.mxu0
    %407 = vmatprep.mubr.f32.mxu0 0.0
    %408 = vmatmul.mubr.f32.gmra.mxu0 %v336
    %v409 = vpop.f32.mrf.mxu0
    %v410 = vadd.f32 0.0, %v409
    %v411 = vpop.f32.mrf.mxu0
    %412 = vdwg.mxu0
    %413 = vrot.lane.b32.xlu0 %v201, 120
    %v414 = vpop.permute.xlu0 %413
    %415 = vrot.lane.b32.xlu0 %v206, 120
    %v416 = vpop.permute.xlu0 %415
    %417 = vrot.lane.b32.xlu0 %v201, 88
    %v418 = vpop.permute.xlu0 %417
    %419 = vrot.lane.b32.xlu0 %v206, 88
    %v420 = vpop.permute.xlu0 %419
    %v421 = vsel %vm215, %v414, 0
    %v423 = vsel %vm215, %v416, 0
    %v425 = vsel %vm215, %v418, 0
    %v427 = vsel %vm215, %v420, 0
    %429 = vmatprep.subr.mxu0 0.0
    %430 = vmatpush1.xpose.msra.mxu0 0.0
    %431 = vmatprep.subr.mxu0 0.0
    %432 = vmatpush1.xpose.msra.mxu0 0.0
    %433 = vmatprep.subr.mxu0 0.0
    %434 = vmatpush1.xpose.msra.mxu0 0.0
    %435 = vmatprep.subr.mxu0 0.0
    %436 = vmatpush1.xpose.msra.mxu0 0.0
    %437 = vmatprep.subr.mxu0 0.0
    %438 = vmatpush1.xpose.msra.mxu0 0.0
    %439 = vmatprep.subr.mxu0 0.0
    %440 = vmatpush1.xpose.msra.mxu0 0.0
    %441 = vmatprep.subr.mxu0 0.0
    %442 = vmatpush1.xpose.msra.mxu0 0.0
    %443 = vmatprep.subr.mxu0 0.0
    %444 = vmatpush1.xpose.msra.mxu0 0.0
    %445 = vmatprep.subr.mxu0 0.0
    %446 = vmatpush1.xpose.msra.mxu0 0.0
    %447 = vmatprep.subr.mxu0 0.0
    %448 = vmatpush1.xpose.msra.mxu0 0.0
    %449 = vmatprep.subr.mxu0 0.0
    %450 = vmatpush1.xpose.msra.mxu0 0.0
    %451 = vmatprep.subr.mxu0 0.0
    %452 = vmatpush1.xpose.msra.mxu0 0.0
    %453 = vmatprep.subr.mxu0 0.0
    %454 = vmatpush1.xpose.msra.mxu0 0.0
    %455 = vmatprep.subr.mxu0 0.0
    %456 = vmatpush1.xpose.msra.mxu0 0.0
    %457 = vmatprep.subr.mxu0 0.0
    %458 = vmatpush1.xpose.msra.mxu0 %v427
    %459 = vmatprep.subr.mxu0 0.0
    %460 = vmatpush1.xpose.msra.mxu0 %v425
    %461 = vmatprep.subr.mxu0 0.0
    %462 = vmatpush2.xpose.msra.mxu0 0.0
    %463 = vmatprep.subr.mxu0 0.0
    %464 = vmatpush2.xpose.msra.mxu0 0.0
    %465 = vmatprep.subr.mxu0 0.0
    %466 = vmatpush2.xpose.msra.mxu0 0.0
    %467 = vmatprep.subr.mxu0 0.0
    %468 = vmatpush2.xpose.msra.mxu0 0.0
    %469 = vmatprep.subr.mxu0 0.0
    %470 = vmatpush2.xpose.msra.mxu0 0.0
    %471 = vmatprep.subr.mxu0 0.0
    %472 = vmatpush2.xpose.msra.mxu0 0.0
    %473 = vmatprep.subr.mxu0 0.0
    %474 = vmatpush2.xpose.msra.mxu0 0.0
    %475 = vmatprep.subr.mxu0 0.0
    %476 = vmatpush2.xpose.msra.mxu0 0.0
    %477 = vmatprep.subr.mxu0 0.0
    %478 = vmatpush2.xpose.msra.mxu0 0.0
    %479 = vmatprep.subr.mxu0 0.0
    %480 = vmatpush2.xpose.msra.mxu0 0.0
    %481 = vmatprep.subr.mxu0 0.0
    %482 = vmatpush2.xpose.msra.mxu0 0.0
    %483 = vmatprep.subr.mxu0 0.0
    %484 = vmatpush2.xpose.msra.mxu0 0.0
    %485 = vmatprep.subr.mxu0 0.0
    %486 = vmatpush2.xpose.msra.mxu0 0.0
    %487 = vmatprep.subr.mxu0 0.0
    %488 = vmatpush2.xpose.msra.mxu0 0.0
    %489 = vmatprep.subr.mxu0 0.0
    %490 = vmatpush2.xpose.msra.mxu0 0.0
    %491 = vmatprep.subr.mxu0 0.0
    %492 = vmatpush2.xpose.msra.mxu0 0.0
    %493 = vmatprep.mubr.f32.mxu0 0.0
    %494 = vmatmul.mubr.f32.gmra.mxu0 %v421
    %v495 = vpop.f32.mrf.mxu0
    %v496 = vadd.f32 0.0, %v495
    %v497 = vpop.f32.mrf.mxu0
    %498 = vmatprep.mubr.f32.mxu0 0.0
    %499 = vmatmul.mubr.f32.gmra.mxu0 %v423
    %v500 = vpop.f32.mrf.mxu0
    %v501 = vadd.f32 0.0, %v500
    %v502 = vpop.f32.mrf.mxu0
    %503 = vdwg.mxu0
    %v504 = vmul.f32 %v496, 0.35355338
    %v505 = vmul.f32 %v501, 0.35355338
    %v506 = vadd.f32 %v504, %v86
    %v507 = vadd.f32 %v505, %v87
    %v508 = vsel %vm303, %v506, -inf
    %509 = vmax.xlane.f32.xlu0 %v508
    %v510 = vpop.xlane.xlu0 %509
    %v511 = vsel %vm303, %v507, -inf
    %512 = vmax.xlane.f32.xlu0 %v511
    %v513 = vpop.xlane.xlu0 %512
    %v514 = vsub.f32 %v506, %v510
    %v515 = vsub.f32 %v507, %v513
    %v516 = vmul.f32 %v514, 1.442695
    %v517 = vpow.pop %v516
    %v518 = vmul.f32 %v515, 1.442695
    %v519 = vpow.pop %v518
    %v520 = vsel %vm303, %v517, 0.0
    %521 = vadd.xlane.f32.xlu0 %v520
    %v522 = vpop.xlane.xlu0 %521
    %v523 = vsel %vm303, %v519, 0.0
    %524 = vadd.xlane.f32.xlu0 %v523
    %v525 = vpop.xlane.xlu0 %524
    %v526 = vrcp.pop %v522
    %v527 = vrcp.pop %v525
    %v528 = vmul.f32 %v517, %v526
    %v529 = vmul.f32 %v519, %v527
    %530 = vrot.lane.b32.xlu0 %v201, 56
    %v531 = vpop.permute.xlu0 %530
    %532 = vrot.lane.b32.xlu0 %v206, 56
    %v533 = vpop.permute.xlu0 %532
    %v537 = vsel %vm303, %v528, 0
    %v540 = vsel %vm303, %v529, 0
    %542 = vmatprep.subr.mxu0 0.0
    %543 = vmatpush1.msra.mxu0 0.0
    %544 = vmatprep.subr.mxu0 0.0
    %545 = vmatpush1.msra.mxu0 0.0
    %546 = vmatprep.subr.mxu0 0.0
    %547 = vmatpush1.msra.mxu0 0.0
    %548 = vmatprep.subr.mxu0 0.0
    %549 = vmatpush1.msra.mxu0 0.0
    %550 = vmatprep.subr.mxu0 0.0
    %551 = vmatpush1.msra.mxu0 0.0
    %552 = vmatprep.subr.mxu0 0.0
    %553 = vmatpush1.msra.mxu0 0.0
    %554 = vmatprep.subr.mxu0 0.0
    %555 = vmatpush1.msra.mxu0 0.0
    %556 = vmatprep.subr.mxu0 0.0
    %557 = vmatpush1.msra.mxu0 0.0
    %558 = vmatprep.subr.mxu0 0.0
    %559 = vmatpush1.msra.mxu0 0.0
    %560 = vmatprep.subr.mxu0 0.0
    %561 = vmatpush1.msra.mxu0 0.0
    %562 = vmatprep.subr.mxu0 0.0
    %563 = vmatpush1.msra.mxu0 0.0
    %564 = vmatprep.subr.mxu0 0.0
    %565 = vmatpush1.msra.mxu0 0.0
    %566 = vmatprep.subr.mxu0 0.0
    %567 = vmatpush1.msra.mxu0 0.0
    %568 = vmatprep.subr.mxu0 0.0
    %569 = vmatpush1.msra.mxu0 0.0
    %570 = vmatprep.subr.mxu0 0.0
    %571 = vmatpush1.msra.mxu0 %v533
    %572 = vmatprep.subr.mxu0 0.0
    %573 = vmatpush1.msra.mxu0 %v531
    %574 = vmatprep.subr.mxu0 0.0
    %575 = vmatpush2.msra.mxu0 0.0
    %576 = vmatprep.subr.mxu0 0.0
    %577 = vmatpush2.msra.mxu0 0.0
    %578 = vmatprep.subr.mxu0 0.0
    %579 = vmatpush2.msra.mxu0 0.0
    %580 = vmatprep.subr.mxu0 0.0
    %581 = vmatpush2.msra.mxu0 0.0
    %582 = vmatprep.subr.mxu0 0.0
    %583 = vmatpush2.msra.mxu0 0.0
    %584 = vmatprep.subr.mxu0 0.0
    %585 = vmatpush2.msra.mxu0 0.0
    %586 = vmatprep.subr.mxu0 0.0
    %587 = vmatpush2.msra.mxu0 0.0
    %588 = vmatprep.subr.mxu0 0.0
    %589 = vmatpush2.msra.mxu0 0.0
    %590 = vmatprep.subr.mxu0 0.0
    %591 = vmatpush2.msra.mxu0 0.0
    %592 = vmatprep.subr.mxu0 0.0
    %593 = vmatpush2.msra.mxu0 0.0
    %594 = vmatprep.subr.mxu0 0.0
    %595 = vmatpush2.msra.mxu0 0.0
    %596 = vmatprep.subr.mxu0 0.0
    %597 = vmatpush2.msra.mxu0 0.0
    %598 = vmatprep.subr.mxu0 0.0
    %599 = vmatpush2.msra.mxu0 0.0
    %600 = vmatprep.subr.mxu0 0.0
    %601 = vmatpush2.msra.mxu0 0.0
    %602 = vmatprep.subr.mxu0 0.0
    %603 = vmatpush2.msra.mxu0 0.0
    %604 = vmatprep.subr.mxu0 0.0
    %605 = vmatpush2.msra.mxu0 0.0
    %606 = vmatprep.mubr.f32.mxu0 0.0
    %607 = vmatmul.mubr.f32.gmra.mxu0 %v537
    %v608 = vpop.f32.mrf.mxu0
    %v609 = vadd.f32 0.0, %v608
    %v610 = vpop.f32.mrf.mxu0
    %611 = vmatprep.mubr.f32.mxu0 0.0
    %612 = vmatmul.mubr.f32.gmra.mxu0 %v540
    %v613 = vpop.f32.mrf.mxu0
    %v614 = vadd.f32 0.0, %v613
    %v615 = vpop.f32.mrf.mxu0
    %616 = vdwg.mxu0
    %617 = vrot.lane.b32.xlu0 %v201, 112
    %v618 = vpop.permute.xlu0 %617
    %619 = vrot.lane.b32.xlu0 %v206, 112
    %v620 = vpop.permute.xlu0 %619
    %621 = vrot.lane.b32.xlu0 %v201, 80
    %v622 = vpop.permute.xlu0 %621
    %623 = vrot.lane.b32.xlu0 %v206, 80
    %v624 = vpop.permute.xlu0 %623
    %v625 = vsel %vm215, %v618, 0
    %v627 = vsel %vm215, %v620, 0
    %v629 = vsel %vm215, %v622, 0
    %v631 = vsel %vm215, %v624, 0
    %633 = vmatprep.subr.mxu0 0.0
    %634 = vmatpush1.xpose.msra.mxu0 0.0
    %635 = vmatprep.subr.mxu0 0.0
    %636 = vmatpush1.xpose.msra.mxu0 0.0
    %637 = vmatprep.subr.mxu0 0.0
    %638 = vmatpush1.xpose.msra.mxu0 0.0
    %639 = vmatprep.subr.mxu0 0.0
    %640 = vmatpush1.xpose.msra.mxu0 0.0
    %641 = vmatprep.subr.mxu0 0.0
    %642 = vmatpush1.xpose.msra.mxu0 0.0
    %643 = vmatprep.subr.mxu0 0.0
    %644 = vmatpush1.xpose.msra.mxu0 0.0
    %645 = vmatprep.subr.mxu0 0.0
    %646 = vmatpush1.xpose.msra.mxu0 0.0
    %647 = vmatprep.subr.mxu0 0.0
    %648 = vmatpush1.xpose.msra.mxu0 0.0
    %649 = vmatprep.subr.mxu0 0.0
    %650 = vmatpush1.xpose.msra.mxu0 0.0
    %651 = vmatprep.subr.mxu0 0.0
    %652 = vmatpush1.xpose.msra.mxu0 0.0
    %653 = vmatprep.subr.mxu0 0.0
    %654 = vmatpush1.xpose.msra.mxu0 0.0
    %655 = vmatprep.subr.mxu0 0.0
    %656 = vmatpush1.xpose.msra.mxu0 0.0
    %657 = vmatprep.subr.mxu0 0.0
    %658 = vmatpush1.xpose.msra.mxu0 0.0
    %659 = vmatprep.subr.mxu0 0.0
    %660 = vmatpush1.xpose.msra.mxu0 0.0
    %661 = vmatprep.subr.mxu0 0.0
    %662 = vmatpush1.xpose.msra.mxu0 %v631
    %663 = vmatprep.subr.mxu0 0.0
    %664 = vmatpush1.xpose.msra.mxu0 %v629
    %665 = vmatprep.subr.mxu0 0.0
    %666 = vmatpush2.xpose.msra.mxu0 0.0
    %667 = vmatprep.subr.mxu0 0.0
    %668 = vmatpush2.xpose.msra.mxu0 0.0
    %669 = vmatprep.subr.mxu0 0.0
    %670 = vmatpush2.xpose.msra.mxu0 0.0
    %671 = vmatprep.subr.mxu0 0.0
    %672 = vmatpush2.xpose.msra.mxu0 0.0
    %673 = vmatprep.subr.mxu0 0.0
    %674 = vmatpush2.xpose.msra.mxu0 0.0
    %675 = vmatprep.subr.mxu0 0.0
    %676 = vmatpush2.xpose.msra.mxu0 0.0
    %677 = vmatprep.subr.mxu0 0.0
    %678 = vmatpush2.xpose.msra.mxu0 0.0
    %679 = vmatprep.subr.mxu0 0.0
    %680 = vmatpush2.xpose.msra.mxu0 0.0
    %681 = vmatprep.subr.mxu0 0.0
    %682 = vmatpush2.xpose.msra.mxu0 0.0
    %683 = vmatprep.subr.mxu0 0.0
    %684 = vmatpush2.xpose.msra.mxu0 0.0
    %685 = vmatprep.subr.mxu0 0.0
    %686 = vmatpush2.xpose.msra.mxu0 0.0
    %687 = vmatprep.subr.mxu0 0.0
    %688 = vmatpush2.xpose.msra.mxu0 0.0
    %689 = vmatprep.subr.mxu0 0.0
    %690 = vmatpush2.xpose.msra.mxu0 0.0
    %691 = vmatprep.subr.mxu0 0.0
    %692 = vmatpush2.xpose.msra.mxu0 0.0
    %693 = vmatprep.subr.mxu0 0.0
    %694 = vmatpush2.xpose.msra.mxu0 0.0
    %695 = vmatprep.subr.mxu0 0.0
    %696 = vmatpush2.xpose.msra.mxu0 0.0
    %697 = vmatprep.mubr.f32.mxu0 0.0
    %698 = vmatmul.mubr.f32.gmra.mxu0 %v625
    %v699 = vpop.f32.mrf.mxu0
    %v700 = vadd.f32 0.0, %v699
    %v701 = vpop.f32.mrf.mxu0
    %702 = vmatprep.mubr.f32.mxu0 0.0
    %703 = vmatmul.mubr.f32.gmra.mxu0 %v627
    %v704 = vpop.f32.mrf.mxu0
    %v705 = vadd.f32 0.0, %v704
    %v706 = vpop.f32.mrf.mxu0
    %707 = vdwg.mxu0
    %v708 = vmul.f32 %v700, 0.35355338
    %v709 = vmul.f32 %v705, 0.35355338
    %v710 = vadd.f32 %v708, %v86
    %v711 = vadd.f32 %v709, %v87
    %v712 = vsel %vm303, %v710, -inf
    %713 = vmax.xlane.f32.xlu0 %v712
    %v714 = vpop.xlane.xlu0 %713
    %v715 = vsel %vm303, %v711, -inf
    %716 = vmax.xlane.f32.xlu0 %v715
    %v717 = vpop.xlane.xlu0 %716
    %v718 = vsub.f32 %v710, %v714
    %v719 = vsub.f32 %v711, %v717
    %v720 = vmul.f32 %v718, 1.442695
    %v721 = vpow.pop %v720
    %v722 = vmul.f32 %v719, 1.442695
    %v723 = vpow.pop %v722
    %v724 = vsel %vm303, %v721, 0.0
    %725 = vadd.xlane.f32.xlu0 %v724
    %v726 = vpop.xlane.xlu0 %725
    %v727 = vsel %vm303, %v723, 0.0
    %728 = vadd.xlane.f32.xlu0 %v727
    %v729 = vpop.xlane.xlu0 %728
    %v730 = vrcp.pop %v726
    %v731 = vrcp.pop %v729
    %v732 = vmul.f32 %v721, %v730
    %v733 = vmul.f32 %v723, %v731
    %734 = vrot.lane.b32.xlu0 %v201, 48
    %v735 = vpop.permute.xlu0 %734
    %736 = vrot.lane.b32.xlu0 %v206, 48
    %v737 = vpop.permute.xlu0 %736
    %v741 = vsel %vm303, %v732, 0
    %v744 = vsel %vm303, %v733, 0
    %746 = vmatprep.subr.mxu0 0.0
    %747 = vmatpush1.msra.mxu0 0.0
    %748 = vmatprep.subr.mxu0 0.0
    %749 = vmatpush1.msra.mxu0 0.0
    %750 = vmatprep.subr.mxu0 0.0
    %751 = vmatpush1.msra.mxu0 0.0
    %752 = vmatprep.subr.mxu0 0.0
    %753 = vmatpush1.msra.mxu0 0.0
    %754 = vmatprep.subr.mxu0 0.0
    %755 = vmatpush1.msra.mxu0 0.0
    %756 = vmatprep.subr.mxu0 0.0
    %757 = vmatpush1.msra.mxu0 0.0
    %758 = vmatprep.subr.mxu0 0.0
    %759 = vmatpush1.msra.mxu0 0.0
    %760 = vmatprep.subr.mxu0 0.0
    %761 = vmatpush1.msra.mxu0 0.0
    %762 = vmatprep.subr.mxu0 0.0
    %763 = vmatpush1.msra.mxu0 0.0
    %764 = vmatprep.subr.mxu0 0.0
    %765 = vmatpush1.msra.mxu0 0.0
    %766 = vmatprep.subr.mxu0 0.0
    %767 = vmatpush1.msra.mxu0 0.0
    %768 = vmatprep.subr.mxu0 0.0
    %769 = vmatpush1.msra.mxu0 0.0
    %770 = vmatprep.subr.mxu0 0.0
    %771 = vmatpush1.msra.mxu0 0.0
    %772 = vmatprep.subr.mxu0 0.0
    %773 = vmatpush1.msra.mxu0 0.0
    %774 = vmatprep.subr.mxu0 0.0
    %775 = vmatpush1.msra.mxu0 %v737
    %776 = vmatprep.subr.mxu0 0.0
    %777 = vmatpush1.msra.mxu0 %v735
    %778 = vmatprep.subr.mxu0 0.0
    %779 = vmatpush2.msra.mxu0 0.0
    %780 = vmatprep.subr.mxu0 0.0
    %781 = vmatpush2.msra.mxu0 0.0
    %782 = vmatprep.subr.mxu0 0.0
    %783 = vmatpush2.msra.mxu0 0.0
    %784 = vmatprep.subr.mxu0 0.0
    %785 = vmatpush2.msra.mxu0 0.0
    %786 = vmatprep.subr.mxu0 0.0
    %787 = vmatpush2.msra.mxu0 0.0
    %788 = vmatprep.subr.mxu0 0.0
    %789 = vmatpush2.msra.mxu0 0.0
    %790 = vmatprep.subr.mxu0 0.0
    %791 = vmatpush2.msra.mxu0 0.0
    %792 = vmatprep.subr.mxu0 0.0
    %793 = vmatpush2.msra.mxu0 0.0
    %794 = vmatprep.subr.mxu0 0.0
    %795 = vmatpush2.msra.mxu0 0.0
    %796 = vmatprep.subr.mxu0 0.0
    %797 = vmatpush2.msra.mxu0 0.0
    %798 = vmatprep.subr.mxu0 0.0
    %799 = vmatpush2.msra.mxu0 0.0
    %800 = vmatprep.subr.mxu0 0.0
    %801 = vmatpush2.msra.mxu0 0.0
    %802 = vmatprep.subr.mxu0 0.0
    %803 = vmatpush2.msra.mxu0 0.0
    %804 = vmatprep.subr.mxu0 0.0
    %805 = vmatpush2.msra.mxu0 0.0
    %806 = vmatprep.subr.mxu0 0.0
    %807 = vmatpush2.msra.mxu0 0.0
    %808 = vmatprep.subr.mxu0 0.0
    %809 = vmatpush2.msra.mxu0 0.0
    %810 = vmatprep.mubr.f32.mxu0 0.0
    %811 = vmatmul.mubr.f32.gmra.mxu0 %v741
    %v812 = vpop.f32.mrf.mxu0
    %v813 = vadd.f32 0.0, %v812
    %v814 = vpop.f32.mrf.mxu0
    %815 = vmatprep.mubr.f32.mxu0 0.0
    %816 = vmatmul.mubr.f32.gmra.mxu0 %v744
    %v817 = vpop.f32.mrf.mxu0
    %v818 = vadd.f32 0.0, %v817
    %v819 = vpop.f32.mrf.mxu0
    %820 = vdwg.mxu0
    %821 = vrot.lane.b32.xlu0 %v201, 104
    %v822 = vpop.permute.xlu0 %821
    %823 = vrot.lane.b32.xlu0 %v206, 104
    %v824 = vpop.permute.xlu0 %823
    %825 = vrot.lane.b32.xlu0 %v201, 72
    %v826 = vpop.permute.xlu0 %825
    %827 = vrot.lane.b32.xlu0 %v206, 72
    %v828 = vpop.permute.xlu0 %827
    %v829 = vsel %vm215, %v822, 0
    %v831 = vsel %vm215, %v824, 0
    %v833 = vsel %vm215, %v826, 0
    %v835 = vsel %vm215, %v828, 0
    %837 = vmatprep.subr.mxu0 0.0
    %838 = vmatpush1.xpose.msra.mxu0 0.0
    %839 = vmatprep.subr.mxu0 0.0
    %840 = vmatpush1.xpose.msra.mxu0 0.0
    %841 = vmatprep.subr.mxu0 0.0
    %842 = vmatpush1.xpose.msra.mxu0 0.0
    %843 = vmatprep.subr.mxu0 0.0
    %844 = vmatpush1.xpose.msra.mxu0 0.0
    %845 = vmatprep.subr.mxu0 0.0
    %846 = vmatpush1.xpose.msra.mxu0 0.0
    %847 = vmatprep.subr.mxu0 0.0
    %848 = vmatpush1.xpose.msra.mxu0 0.0
    %849 = vmatprep.subr.mxu0 0.0
    %850 = vmatpush1.xpose.msra.mxu0 0.0
    %851 = vmatprep.subr.mxu0 0.0
    %852 = vmatpush1.xpose.msra.mxu0 0.0
    %853 = vmatprep.subr.mxu0 0.0
    %854 = vmatpush1.xpose.msra.mxu0 0.0
    %855 = vmatprep.subr.mxu0 0.0
    %856 = vmatpush1.xpose.msra.mxu0 0.0
    %857 = vmatprep.subr.mxu0 0.0
    %858 = vmatpush1.xpose.msra.mxu0 0.0
    %859 = vmatprep.subr.mxu0 0.0
    %860 = vmatpush1.xpose.msra.mxu0 0.0
    %861 = vmatprep.subr.mxu0 0.0
    %862 = vmatpush1.xpose.msra.mxu0 0.0
    %863 = vmatprep.subr.mxu0 0.0
    %864 = vmatpush1.xpose.msra.mxu0 0.0
    %865 = vmatprep.subr.mxu0 0.0
    %866 = vmatpush1.xpose.msra.mxu0 %v835
    %867 = vmatprep.subr.mxu0 0.0
    %868 = vmatpush1.xpose.msra.mxu0 %v833
    %869 = vmatprep.subr.mxu0 0.0
    %870 = vmatpush2.xpose.msra.mxu0 0.0
    %871 = vmatprep.subr.mxu0 0.0
    %872 = vmatpush2.xpose.msra.mxu0 0.0
    %873 = vmatprep.subr.mxu0 0.0
    %874 = vmatpush2.xpose.msra.mxu0 0.0
    %875 = vmatprep.subr.mxu0 0.0
    %876 = vmatpush2.xpose.msra.mxu0 0.0
    %877 = vmatprep.subr.mxu0 0.0
    %878 = vmatpush2.xpose.msra.mxu0 0.0
    %879 = vmatprep.subr.mxu0 0.0
    %880 = vmatpush2.xpose.msra.mxu0 0.0
    %881 = vmatprep.subr.mxu0 0.0
    %882 = vmatpush2.xpose.msra.mxu0 0.0
    %883 = vmatprep.subr.mxu0 0.0
    %884 = vmatpush2.xpose.msra.mxu0 0.0
    %885 = vmatprep.subr.mxu0 0.0
    %886 = vmatpush2.xpose.msra.mxu0 0.0
    %887 = vmatprep.subr.mxu0 0.0
    %888 = vmatpush2.xpose.msra.mxu0 0.0
    %889 = vmatprep.subr.mxu0 0.0
    %890 = vmatpush2.xpose.msra.mxu0 0.0
    %891 = vmatprep.subr.mxu0 0.0
    %892 = vmatpush2.xpose.msra.mxu0 0.0
    %893 = vmatprep.subr.mxu0 0.0
    %894 = vmatpush2.xpose.msra.mxu0 0.0
    %895 = vmatprep.subr.mxu0 0.0
    %896 = vmatpush2.xpose.msra.mxu0 0.0
    %897 = vmatprep.subr.mxu0 0.0
    %898 = vmatpush2.xpose.msra.mxu0 0.0
    %899 = vmatprep.subr.mxu0 0.0
    %900 = vmatpush2.xpose.msra.mxu0 0.0
    %901 = vmatprep.mubr.f32.mxu0 0.0
    %902 = vmatmul.mubr.f32.gmra.mxu0 %v829
    %v903 = vpop.f32.mrf.mxu0
    %v904 = vadd.f32 0.0, %v903
    %v905 = vpop.f32.mrf.mxu0
    %906 = vmatprep.mubr.f32.mxu0 0.0
    %907 = vmatmul.mubr.f32.gmra.mxu0 %v831
    %v908 = vpop.f32.mrf.mxu0
    %v909 = vadd.f32 0.0, %v908
    %v910 = vpop.f32.mrf.mxu0
    %911 = vdwg.mxu0
    %v912 = vmul.f32 %v904, 0.35355338
    %v913 = vmul.f32 %v909, 0.35355338
    %v914 = vadd.f32 %v912, %v86
    %v915 = vadd.f32 %v913, %v87
    %v916 = vsel %vm303, %v914, -inf
    %917 = vmax.xlane.f32.xlu0 %v916
    %v918 = vpop.xlane.xlu0 %917
    %v919 = vsel %vm303, %v915, -inf
    %920 = vmax.xlane.f32.xlu0 %v919
    %v921 = vpop.xlane.xlu0 %920
    %v922 = vsub.f32 %v914, %v918
    %v923 = vsub.f32 %v915, %v921
    %v924 = vmul.f32 %v922, 1.442695
    %v925 = vpow.pop %v924
    %v926 = vmul.f32 %v923, 1.442695
    %v927 = vpow.pop %v926
    %v928 = vsel %vm303, %v925, 0.0
    %929 = vadd.xlane.f32.xlu0 %v928
    %v930 = vpop.xlane.xlu0 %929
    %v931 = vsel %vm303, %v927, 0.0
    %932 = vadd.xlane.f32.xlu0 %v931
    %v933 = vpop.xlane.xlu0 %932
    %v934 = vrcp.pop %v930
    %v935 = vrcp.pop %v933
    %v936 = vmul.f32 %v925, %v934
    %v937 = vmul.f32 %v927, %v935
    %938 = vrot.lane.b32.xlu0 %v201, 40
    %v939 = vpop.permute.xlu0 %938
    %940 = vrot.lane.b32.xlu0 %v206, 40
    %v941 = vpop.permute.xlu0 %940
    %v945 = vsel %vm303, %v936, 0
    %v948 = vsel %vm303, %v937, 0
    %950 = vmatprep.subr.mxu0 0.0
    %951 = vmatpush1.msra.mxu0 0.0
    %952 = vmatprep.subr.mxu0 0.0
    %953 = vmatpush1.msra.mxu0 0.0
    %954 = vmatprep.subr.mxu0 0.0
    %955 = vmatpush1.msra.mxu0 0.0
    %956 = vmatprep.subr.mxu0 0.0
    %957 = vmatpush1.msra.mxu0 0.0
    %958 = vmatprep.subr.mxu0 0.0
    %959 = vmatpush1.msra.mxu0 0.0
    %960 = vmatprep.subr.mxu0 0.0
    %961 = vmatpush1.msra.mxu0 0.0
    %962 = vmatprep.subr.mxu0 0.0
    %963 = vmatpush1.msra.mxu0 0.0
    %964 = vmatprep.subr.mxu0 0.0
    %965 = vmatpush1.msra.mxu0 0.0
    %966 = vmatprep.subr.mxu0 0.0
    %967 = vmatpush1.msra.mxu0 0.0
    %968 = vmatprep.subr.mxu0 0.0
    %969 = vmatpush1.msra.mxu0 0.0
    %970 = vmatprep.subr.mxu0 0.0
    %971 = vmatpush1.msra.mxu0 0.0
    %972 = vmatprep.subr.mxu0 0.0
    %973 = vmatpush1.msra.mxu0 0.0
    %974 = vmatprep.subr.mxu0 0.0
    %975 = vmatpush1.msra.mxu0 0.0
    %976 = vmatprep.subr.mxu0 0.0
    %977 = vmatpush1.msra.mxu0 0.0
    %978 = vmatprep.subr.mxu0 0.0
    %979 = vmatpush1.msra.mxu0 %v941
    %980 = vmatprep.subr.mxu0 0.0
    %981 = vmatpush1.msra.mxu0 %v939
    %982 = vmatprep.subr.mxu0 0.0
    %983 = vmatpush2.msra.mxu0 0.0
    %984 = vmatprep.subr.mxu0 0.0
    %985 = vmatpush2.msra.mxu0 0.0
    %986 = vmatprep.subr.mxu0 0.0
    %987 = vmatpush2.msra.mxu0 0.0
    %988 = vmatprep.subr.mxu0 0.0
    %989 = vmatpush2.msra.mxu0 0.0
    %990 = vmatprep.subr.mxu0 0.0
    %991 = vmatpush2.msra.mxu0 0.0
    %992 = vmatprep.subr.mxu0 0.0
    %993 = vmatpush2.msra.mxu0 0.0
    %994 = vmatprep.subr.mxu0 0.0
    %995 = vmatpush2.msra.mxu0 0.0
    %996 = vmatprep.subr.mxu0 0.0
    %997 = vmatpush2.msra.mxu0 0.0
    %998 = vmatprep.subr.mxu0 0.0
    %999 = vmatpush2.msra.mxu0 0.0
    %1000 = vmatprep.subr.mxu0 0.0
    %1001 = vmatpush2.msra.mxu0 0.0
    %1002 = vmatprep.subr.mxu0 0.0
    %1003 = vmatpush2.msra.mxu0 0.0
    %1004 = vmatprep.subr.mxu0 0.0
    %1005 = vmatpush2.msra.mxu0 0.0
    %1006 = vmatprep.subr.mxu0 0.0
    %1007 = vmatpush2.msra.mxu0 0.0
    %1008 = vmatprep.subr.mxu0 0.0
    %1009 = vmatpush2.msra.mxu0 0.0
    %1010 = vmatprep.subr.mxu0 0.0
    %1011 = vmatpush2.msra.mxu0 0.0
    %1012 = vmatprep.subr.mxu0 0.0
    %1013 = vmatpush2.msra.mxu0 0.0
    %1014 = vmatprep.mubr.f32.mxu0 0.0
    %1015 = vmatmul.mubr.f32.gmra.mxu0 %v945
    %v1016 = vpop.f32.mrf.mxu0
    %v1017 = vadd.f32 0.0, %v1016
    %v1018 = vpop.f32.mrf.mxu0
    %1019 = vmatprep.mubr.f32.mxu0 0.0
    %1020 = vmatmul.mubr.f32.gmra.mxu0 %v948
    %v1021 = vpop.f32.mrf.mxu0
    %v1022 = vadd.f32 0.0, %v1021
    %v1023 = vpop.f32.mrf.mxu0
    %1024 = vdwg.mxu0
    %1027 = vrot.lane.b32.xlu0 %v609, 8
    %v1028 = vpop.permute.xlu0 %1027
    %1029 = vrot.lane.b32.xlu0 %v614, 8
    %v1030 = vpop.permute.xlu0 %1029
    %1035 = vrot.lane.b32.xlu0 %v813, 16
    %v1036 = vpop.permute.xlu0 %1035
    %1037 = vrot.lane.b32.xlu0 %v818, 16
    %v1038 = vpop.permute.xlu0 %1037
    %1043 = vrot.lane.b32.xlu0 %v1017, 24
    %v1044 = vpop.permute.xlu0 %1043
    %1045 = vrot.lane.b32.xlu0 %v1022, 24
    %v1046 = vpop.permute.xlu0 %1045
    %v1049 = vsel %vm215, %v405, %v1028
    %v1050 = vsel %vm215, %v410, %v1030
    %v1051 = vsel %vm303, %v1049, %v1036
    %v1052 = vsel %vm303, %v1050, %v1038
    %vm1053 = vcmask 195584
    %v1054 = vsel %vm1053, %v1051, %v1044
    %v1055 = vsel %vm1053, %v1052, %v1046
    %1060 = vrot.lane.b32.xlu0 %v41, 32
    %v1061 = vpop.permute.xlu0 %1060
    %1062 = vrot.lane.b32.xlu0 %v42, 32
    %v1063 = vpop.permute.xlu0 %1062
    %1064 = vrot.lane.b32.xlu0 %v43, 32
    %v1065 = vpop.permute.xlu0 %1064
    %1066 = vrot.lane.b32.xlu0 %v44, 32
    %v1067 = vpop.permute.xlu0 %1066
    %1073 = vrot.lane.b32.xlu0 %v53, 32
    %v1074 = vpop.permute.xlu0 %1073
    %v1077 = vsel %vm92, %v1054, 0
    %v1080 = vsel %vm92, %v1055, 0
    %1082 = vmatprep.subr.mxu0 0.0
    %1083 = vmatpush1.msra.mxu0 0.0
    %1084 = vmatprep.subr.mxu0 0.0
    %1085 = vmatpush1.msra.mxu0 0.0
    %1086 = vmatprep.subr.mxu0 0.0
    %1087 = vmatpush1.msra.mxu0 0.0
    %1088 = vmatprep.subr.mxu0 0.0
    %1089 = vmatpush1.msra.mxu0 0.0
    %1090 = vmatprep.subr.mxu0 0.0
    %1091 = vmatpush1.msra.mxu0 0.0
    %1092 = vmatprep.subr.mxu0 0.0
    %1093 = vmatpush1.msra.mxu0 0.0
    %1094 = vmatprep.subr.mxu0 0.0
    %1095 = vmatpush1.msra.mxu0 0.0
    %1096 = vmatprep.subr.mxu0 0.0
    %1097 = vmatpush1.msra.mxu0 0.0
    %1098 = vmatprep.subr.mxu0 0.0
    %1099 = vmatpush1.msra.mxu0 0.0
    %1100 = vmatprep.subr.mxu0 0.0
    %1101 = vmatpush1.msra.mxu0 0.0
    %1102 = vmatprep.subr.mxu0 0.0
    %1103 = vmatpush1.msra.mxu0 0.0
    %1104 = vmatprep.subr.mxu0 0.0
    %1105 = vmatpush1.msra.mxu0 0.0
    %1106 = vmatprep.subr.mxu0 0.0
    %1107 = vmatpush1.msra.mxu0 %v1067
    %1108 = vmatprep.subr.mxu0 0.0
    %1109 = vmatpush1.msra.mxu0 %v1065
    %1110 = vmatprep.subr.mxu0 0.0
    %1111 = vmatpush1.msra.mxu0 %v1063
    %1112 = vmatprep.subr.mxu0 0.0
    %1113 = vmatpush1.msra.mxu0 %v1061
    %1114 = vmatprep.subr.mxu0 0.0
    %1115 = vmatpush2.msra.mxu0 0.0
    %1116 = vmatprep.subr.mxu0 0.0
    %1117 = vmatpush2.msra.mxu0 0.0
    %1118 = vmatprep.subr.mxu0 0.0
    %1119 = vmatpush2.msra.mxu0 0.0
    %1120 = vmatprep.subr.mxu0 0.0
    %1121 = vmatpush2.msra.mxu0 0.0
    %1122 = vmatprep.subr.mxu0 0.0
    %1123 = vmatpush2.msra.mxu0 0.0
    %1124 = vmatprep.subr.mxu0 0.0
    %1125 = vmatpush2.msra.mxu0 0.0
    %1126 = vmatprep.subr.mxu0 0.0
    %1127 = vmatpush2.msra.mxu0 0.0
    %1128 = vmatprep.subr.mxu0 0.0
    %1129 = vmatpush2.msra.mxu0 0.0
    %1130 = vmatprep.subr.mxu0 0.0
    %1131 = vmatpush2.msra.mxu0 0.0
    %1132 = vmatprep.subr.mxu0 0.0
    %1133 = vmatpush2.msra.mxu0 0.0
    %1134 = vmatprep.subr.mxu0 0.0
    %1135 = vmatpush2.msra.mxu0 0.0
    %1136 = vmatprep.subr.mxu0 0.0
    %1137 = vmatpush2.msra.mxu0 0.0
    %1138 = vmatprep.subr.mxu0 0.0
    %1139 = vmatpush2.msra.mxu0 0.0
    %1140 = vmatprep.subr.mxu0 0.0
    %1141 = vmatpush2.msra.mxu0 0.0
    %1142 = vmatprep.subr.mxu0 0.0
    %1143 = vmatpush2.msra.mxu0 0.0
    %1144 = vmatprep.subr.mxu0 0.0
    %1145 = vmatpush2.msra.mxu0 0.0
    %1146 = vmatprep.mubr.f32.mxu0 0.0
    %1147 = vmatmul.mubr.f32.gmra.mxu0 %v1077
    %v1148 = vpop.f32.mrf.mxu0
    %v1149 = vadd.f32 %v1074, %v1148
    %v1150 = vpop.f32.mrf.mxu0
    %1151 = vmatprep.mubr.f32.mxu0 0.0
    %1152 = vmatmul.mubr.f32.gmra.mxu0 %v1080
    %v1153 = vpop.f32.mrf.mxu0
    %v1154 = vadd.f32 %v1074, %v1153
    %v1155 = vpop.f32.mrf.mxu0
    %1156 = vdwg.mxu0
    %v1157 = vadd.f32 %v39, %v1149
    %v1158 = vadd.f32 %v40, %v1154
    %v1159 = vmax.f32 %v1157, -1e+09
    %v1160 = vmax.f32 %v1158, -1e+09
    %v1161 = vmin.f32 %v1159, 1e+09
    %v1162 = vmin.f32 %v1160, 1e+09
    %v1163 = vsel %vm92, %v1161, 0.0
    %1164 = vadd.xlane.f32.xlu0 %v1163
    %v1165 = vpop.xlane.xlu0 %1164
    %v1166 = vsel %vm92, %v1162, 0.0
    %1167 = vadd.xlane.f32.xlu0 %v1166
    %v1168 = vpop.xlane.xlu0 %1167
    %v1169 = vmul.f32 %v1165, %v99
    %v1170 = vmul.f32 %v1168, %v99
    %v1171 = vsub.f32 %v1161, %v1169
    %v1172 = vsub.f32 %v1162, %v1170
    %v1173 = vmul.f32 %v1171, %v1171
    %v1174 = vmul.f32 %v1172, %v1172
    %v1175 = vsel %vm92, %v1173, 0.0
    %1176 = vadd.xlane.f32.xlu0 %v1175
    %v1177 = vpop.xlane.xlu0 %1176
    %v1178 = vsel %vm92, %v1174, 0.0
    %1179 = vadd.xlane.f32.xlu0 %v1178
    %v1180 = vpop.xlane.xlu0 %1179
    %v1181 = vmul.f32 %v1177, %v99
    %v1182 = vmul.f32 %v1180, %v99
    %v1183 = vadd.f32 %v1181, 1e-05
    %v1184 = vadd.f32 %v1182, 1e-05
    %v1185 = vrsqrt.pop %v1183
    %v1186 = vrsqrt.pop %v1184
    %v1187 = vmul.f32 %v1171, %v1185
    %v1188 = vmul.f32 %v1172, %v1186
    %v1189 = vmul.f32 %v1187, %v54
    %v1190 = vmul.f32 %v1188, %v54
    %v1191 = vadd.f32 %v1189, %v124
    %v1192 = vadd.f32 %v1190, %v124
    %v1193 = vmax.f32 %v1191, -1e+09
    %v1194 = vmax.f32 %v1192, -1e+09
    %v1195 = vmin.f32 %v1193, 1e+09
    %v1196 = vmin.f32 %v1194, 1e+09
    %v1197 = vsel %vm92, %v1195, 0.0
    %1198 = vadd.xlane.f32.xlu0 %v1197
    %v1199 = vpop.xlane.xlu0 %1198
    %v1200 = vsel %vm92, %v1196, 0.0
    %1201 = vadd.xlane.f32.xlu0 %v1200
    %v1202 = vpop.xlane.xlu0 %1201
    %v1203 = vmul.f32 %v1199, %v99
    %v1204 = vmul.f32 %v1202, %v99
    %v1205 = vsub.f32 %v1195, %v1203
    %v1206 = vsub.f32 %v1196, %v1204
    %v1207 = vmul.f32 %v1205, %v1205
    %v1208 = vmul.f32 %v1206, %v1206
    %v1209 = vsel %vm92, %v1207, 0.0
    %1210 = vadd.xlane.f32.xlu0 %v1209
    %v1211 = vpop.xlane.xlu0 %1210
    %v1212 = vsel %vm92, %v1208, 0.0
    %1213 = vadd.xlane.f32.xlu0 %v1212
    %v1214 = vpop.xlane.xlu0 %1213
    %v1215 = vmul.f32 %v1211, %v99
    %v1216 = vmul.f32 %v1214, %v99
    %v1217 = vadd.f32 %v1215, 1e-05
    %v1218 = vadd.f32 %v1216, 1e-05
    %v1219 = vrsqrt.pop %v1217
    %v1220 = vrsqrt.pop %v1218
    %v1221 = vmul.f32 %v1205, %v1219
    %v1222 = vmul.f32 %v1206, %v1220
    %1223 = vrot.lane.b32.xlu0 %v54, 64
    %v1224 = vpop.permute.xlu0 %1223
    %v1226 = vmul.f32 %v1221, %v1224
    %v1227 = vmul.f32 %v1222, %v1224
    %1228 = vrot.lane.b32.xlu0 %v54, 32
    %v1229 = vpop.permute.xlu0 %1228
    %v1231 = vadd.f32 %v1226, %v1229
    %v1232 = vadd.f32 %v1227, %v1229
    %1234 = vrot.lane.b32.xlu0 %v55, 64
    %v1235 = vpop.permute.xlu0 %1234
    %v1238 = vsel %vm92, %v1231, 0
    %v1241 = vsel %vm92, %v1232, 0
    %1243 = vmatprep.subr.mxu0 0.0
    %1244 = vmatpush1.msra.mxu0 0.0
    %1245 = vmatprep.subr.mxu0 0.0
    %1246 = vmatpush1.msra.mxu0 0.0
    %1247 = vmatprep.subr.mxu0 0.0
    %1248 = vmatpush1.msra.mxu0 0.0
    %1249 = vmatprep.subr.mxu0 0.0
    %1250 = vmatpush1.msra.mxu0 0.0
    %1251 = vmatprep.subr.mxu0 0.0
    %1252 = vmatpush1.msra.mxu0 0.0
    %1253 = vmatprep.subr.mxu0 0.0
    %1254 = vmatpush1.msra.mxu0 0.0
    %1255 = vmatprep.subr.mxu0 0.0
    %1256 = vmatpush1.msra.mxu0 0.0
    %1257 = vmatprep.subr.mxu0 0.0
    %1258 = vmatpush1.msra.mxu0 0.0
    %1259 = vmatprep.subr.mxu0 0.0
    %1260 = vmatpush1.msra.mxu0 0.0
    %1261 = vmatprep.subr.mxu0 0.0
    %1262 = vmatpush1.msra.mxu0 0.0
    %1263 = vmatprep.subr.mxu0 0.0
    %1264 = vmatpush1.msra.mxu0 0.0
    %1265 = vmatprep.subr.mxu0 0.0
    %1266 = vmatpush1.msra.mxu0 0.0
    %1267 = vmatprep.subr.mxu0 0.0
    %1268 = vmatpush1.msra.mxu0 %v52
    %1269 = vmatprep.subr.mxu0 0.0
    %1270 = vmatpush1.msra.mxu0 %v51
    %1271 = vmatprep.subr.mxu0 0.0
    %1272 = vmatpush1.msra.mxu0 %v50
    %1273 = vmatprep.subr.mxu0 0.0
    %1274 = vmatpush1.msra.mxu0 %v49
    %1275 = vmatprep.subr.mxu0 0.0
    %1276 = vmatpush2.msra.mxu0 0.0
    %1277 = vmatprep.subr.mxu0 0.0
    %1278 = vmatpush2.msra.mxu0 0.0
    %1279 = vmatprep.subr.mxu0 0.0
    %1280 = vmatpush2.msra.mxu0 0.0
    %1281 = vmatprep.subr.mxu0 0.0
    %1282 = vmatpush2.msra.mxu0 0.0
    %1283 = vmatprep.subr.mxu0 0.0
    %1284 = vmatpush2.msra.mxu0 0.0
    %1285 = vmatprep.subr.mxu0 0.0
    %1286 = vmatpush2.msra.mxu0 0.0
    %1287 = vmatprep.subr.mxu0 0.0
    %1288 = vmatpush2.msra.mxu0 0.0
    %1289 = vmatprep.subr.mxu0 0.0
    %1290 = vmatpush2.msra.mxu0 0.0
    %1291 = vmatprep.subr.mxu0 0.0
    %1292 = vmatpush2.msra.mxu0 0.0
    %1293 = vmatprep.subr.mxu0 0.0
    %1294 = vmatpush2.msra.mxu0 0.0
    %1295 = vmatprep.subr.mxu0 0.0
    %1296 = vmatpush2.msra.mxu0 0.0
    %1297 = vmatprep.subr.mxu0 0.0
    %1298 = vmatpush2.msra.mxu0 0.0
    %1299 = vmatprep.subr.mxu0 0.0
    %1300 = vmatpush2.msra.mxu0 0.0
    %1301 = vmatprep.subr.mxu0 0.0
    %1302 = vmatpush2.msra.mxu0 0.0
    %1303 = vmatprep.subr.mxu0 0.0
    %1304 = vmatpush2.msra.mxu0 0.0
    %1305 = vmatprep.subr.mxu0 0.0
    %1306 = vmatpush2.msra.mxu0 0.0
    %1307 = vmatprep.mubr.f32.mxu0 0.0
    %1308 = vmatmul.mubr.f32.gmra.mxu0 %v1238
    %v1309 = vpop.f32.mrf.mxu0
    %v1310 = vadd.f32 %v1235, %v1309
    %v1311 = vpop.f32.mrf.mxu0
    %1312 = vmatprep.mubr.f32.mxu0 0.0
    %1313 = vmatmul.mubr.f32.gmra.mxu0 %v1241
    %v1314 = vpop.f32.mrf.mxu0
    %v1315 = vadd.f32 %v1235, %v1314
    %v1316 = vpop.f32.mrf.mxu0
    %1317 = vdwg.mxu0
    %v1318 = vmax.f32 %v1310, 0.0
    %v1319 = vmax.f32 %v1315, 0.0
    %1324 = vrot.lane.b32.xlu0 %v49, 112
    %v1325 = vpop.permute.xlu0 %1324
    %1326 = vrot.lane.b32.xlu0 %v50, 112
    %v1327 = vpop.permute.xlu0 %1326
    %1328 = vrot.lane.b32.xlu0 %v51, 112
    %v1329 = vpop.permute.xlu0 %1328
    %1330 = vrot.lane.b32.xlu0 %v52, 112
    %v1331 = vpop.permute.xlu0 %1330
    %1332 = vrot.lane.b32.xlu0 %v55, 32
    %v1333 = vpop.permute.xlu0 %1332
    %v1336 = vsel %vm303, %v1318, 0
    %v1339 = vsel %vm303, %v1319, 0
    %v1341 = vsel %vm303, %v1325, 0
    %v1343 = vsel %vm303, %v1327, 0
    %v1345 = vsel %vm303, %v1329, 0
    %v1347 = vsel %vm303, %v1331, 0
    %1349 = vmatprep.subr.mxu0 0.0
    %1350 = vmatpush1.xpose.msra.mxu0 0.0
    %1351 = vmatprep.subr.mxu0 0.0
    %1352 = vmatpush1.xpose.msra.mxu0 0.0
    %1353 = vmatprep.subr.mxu0 0.0
    %1354 = vmatpush1.xpose.msra.mxu0 0.0
    %1355 = vmatprep.subr.mxu0 0.0
    %1356 = vmatpush1.xpose.msra.mxu0 0.0
    %1357 = vmatprep.subr.mxu0 0.0
    %1358 = vmatpush1.xpose.msra.mxu0 0.0
    %1359 = vmatprep.subr.mxu0 0.0
    %1360 = vmatpush1.xpose.msra.mxu0 0.0
    %1361 = vmatprep.subr.mxu0 0.0
    %1362 = vmatpush1.xpose.msra.mxu0 0.0
    %1363 = vmatprep.subr.mxu0 0.0
    %1364 = vmatpush1.xpose.msra.mxu0 0.0
    %1365 = vmatprep.subr.mxu0 0.0
    %1366 = vmatpush1.xpose.msra.mxu0 0.0
    %1367 = vmatprep.subr.mxu0 0.0
    %1368 = vmatpush1.xpose.msra.mxu0 0.0
    %1369 = vmatprep.subr.mxu0 0.0
    %1370 = vmatpush1.xpose.msra.mxu0 0.0
    %1371 = vmatprep.subr.mxu0 0.0
    %1372 = vmatpush1.xpose.msra.mxu0 0.0
    %1373 = vmatprep.subr.mxu0 0.0
    %1374 = vmatpush1.xpose.msra.mxu0 %v1347
    %1375 = vmatprep.subr.mxu0 0.0
    %1376 = vmatpush1.xpose.msra.mxu0 %v1345
    %1377 = vmatprep.subr.mxu0 0.0
    %1378 = vmatpush1.xpose.msra.mxu0 %v1343
    %1379 = vmatprep.subr.mxu0 0.0
    %1380 = vmatpush1.xpose.msra.mxu0 %v1341
    %1381 = vmatprep.subr.mxu0 0.0
    %1382 = vmatpush2.xpose.msra.mxu0 0.0
    %1383 = vmatprep.subr.mxu0 0.0
    %1384 = vmatpush2.xpose.msra.mxu0 0.0
    %1385 = vmatprep.subr.mxu0 0.0
    %1386 = vmatpush2.xpose.msra.mxu0 0.0
    %1387 = vmatprep.subr.mxu0 0.0
    %1388 = vmatpush2.xpose.msra.mxu0 0.0
    %1389 = vmatprep.subr.mxu0 0.0
    %1390 = vmatpush2.xpose.msra.mxu0 0.0
    %1391 = vmatprep.subr.mxu0 0.0
    %1392 = vmatpush2.xpose.msra.mxu0 0.0
    %1393 = vmatprep.subr.mxu0 0.0
    %1394 = vmatpush2.xpose.msra.mxu0 0.0
    %1395 = vmatprep.subr.mxu0 0.0
    %1396 = vmatpush2.xpose.msra.mxu0 0.0
    %1397 = vmatprep.subr.mxu0 0.0
    %1398 = vmatpush2.xpose.msra.mxu0 0.0
    %1399 = vmatprep.subr.mxu0 0.0
    %1400 = vmatpush2.xpose.msra.mxu0 0.0
    %1401 = vmatprep.subr.mxu0 0.0
    %1402 = vmatpush2.xpose.msra.mxu0 0.0
    %1403 = vmatprep.subr.mxu0 0.0
    %1404 = vmatpush2.xpose.msra.mxu0 0.0
    %1405 = vmatprep.subr.mxu0 0.0
    %1406 = vmatpush2.xpose.msra.mxu0 0.0
    %1407 = vmatprep.subr.mxu0 0.0
    %1408 = vmatpush2.xpose.msra.mxu0 0.0
    %1409 = vmatprep.subr.mxu0 0.0
    %1410 = vmatpush2.xpose.msra.mxu0 0.0
    %1411 = vmatprep.subr.mxu0 0.0
    %1412 = vmatpush2.xpose.msra.mxu0 0.0
    %1413 = vmatprep.mubr.f32.mxu0 0.0
    %1414 = vmatmul.mubr.f32.gmra.mxu0 %v1336
    %v1415 = vpop.f32.mrf.mxu0
    %v1416 = vadd.f32 %v1333, %v1415
    %v1417 = vpop.f32.mrf.mxu0
    %1418 = vmatprep.mubr.f32.mxu0 0.0
    %1419 = vmatmul.mubr.f32.gmra.mxu0 %v1339
    %v1420 = vpop.f32.mrf.mxu0
    %v1421 = vadd.f32 %v1333, %v1420
    %v1422 = vpop.f32.mrf.mxu0
    %1423 = vdwg.mxu0
    %v1424 = vadd.f32 %v1191, %v1416
    %v1425 = vadd.f32 %v1192, %v1421
    %v1426 = vmax.f32 %v1424, -1e+09
    %v1427 = vmax.f32 %v1425, -1e+09
    %v1428 = vmin.f32 %v1426, 1e+09
    %v1429 = vmin.f32 %v1427, 1e+09
    %v1430 = vsel %vm92, %v1428, 0.0
    %1431 = vadd.xlane.f32.xlu0 %v1430
    %v1432 = vpop.xlane.xlu0 %1431
    %v1433 = vsel %vm92, %v1429, 0.0
    %1434 = vadd.xlane.f32.xlu0 %v1433
    %v1435 = vpop.xlane.xlu0 %1434
    %v1436 = vmul.f32 %v1432, %v99
    %v1437 = vmul.f32 %v1435, %v99
    %v1438 = vsub.f32 %v1428, %v1436
    %v1439 = vsub.f32 %v1429, %v1437
    %v1440 = vmul.f32 %v1438, %v1438
    %v1441 = vmul.f32 %v1439, %v1439
    %v1442 = vsel %vm92, %v1440, 0.0
    %1443 = vadd.xlane.f32.xlu0 %v1442
    %v1444 = vpop.xlane.xlu0 %1443
    %v1445 = vsel %vm92, %v1441, 0.0
    %1446 = vadd.xlane.f32.xlu0 %v1445
    %v1447 = vpop.xlane.xlu0 %1446
    %v1448 = vmul.f32 %v1444, %v99
    %v1449 = vmul.f32 %v1447, %v99
    %v1450 = vadd.f32 %v1448, 1e-05
    %v1451 = vadd.f32 %v1449, 1e-05
    %v1452 = vrsqrt.pop %v1450
    %v1453 = vrsqrt.pop %v1451
    %v1454 = vmul.f32 %v1438, %v1452
    %v1455 = vmul.f32 %v1439, %v1453
    %v1456 = vmul.f32 %v1454, %v1224
    %v1457 = vmul.f32 %v1455, %v1224
    %v1458 = vadd.f32 %v1456, %v1229
    %v1459 = vadd.f32 %v1457, %v1229
    %v1460 = vmax.f32 %v1458, -1e+09
    %v1461 = vmax.f32 %v1459, -1e+09
    %v1462 = vmin.f32 %v1460, 1e+09
    %v1463 = vmin.f32 %v1461, 1e+09
    %v1464 = vsel %vm92, %v1462, 0.0
    %1465 = vadd.xlane.f32.xlu0 %v1464
    %v1466 = vpop.xlane.xlu0 %1465
    %v1467 = vsel %vm92, %v1463, 0.0
    %1468 = vadd.xlane.f32.xlu0 %v1467
    %v1469 = vpop.xlane.xlu0 %1468
    %v1470 = vmul.f32 %v1466, %v99
    %v1471 = vmul.f32 %v1469, %v99
    %v1472 = vsub.f32 %v1462, %v1470
    %v1473 = vsub.f32 %v1463, %v1471
    %v1474 = vmul.f32 %v1472, %v1472
    %v1475 = vmul.f32 %v1473, %v1473
    %v1476 = vsel %vm92, %v1474, 0.0
    %1477 = vadd.xlane.f32.xlu0 %v1476
    %v1478 = vpop.xlane.xlu0 %1477
    %v1479 = vsel %vm92, %v1475, 0.0
    %1480 = vadd.xlane.f32.xlu0 %v1479
    %v1481 = vpop.xlane.xlu0 %1480
    %v1482 = vmul.f32 %v1478, %v99
    %v1483 = vmul.f32 %v1481, %v99
    %v1484 = vadd.f32 %v1482, 1e-05
    %v1485 = vadd.f32 %v1483, 1e-05
    %v1486 = vrsqrt.pop %v1484
    %v1487 = vrsqrt.pop %v1485
    %v1488 = vmul.f32 %v1472, %v1486
    %v1489 = vmul.f32 %v1473, %v1487
    %v1490 = vmul.f32 %v1488, %v54
    %v1491 = vmul.f32 %v1489, %v54
    %v1492 = vadd.f32 %v1490, %v124
    %v1493 = vadd.f32 %v1491, %v124
    %v1495 = vsel %vm92, %v1492, 0
    %v1498 = vsel %vm92, %v1493, 0
    %1500 = vmatprep.subr.mxu0 0.0
    %1501 = vmatpush1.msra.mxu0 0.0
    %1502 = vmatprep.subr.mxu0 0.0
    %1503 = vmatpush1.msra.mxu0 0.0
    %1504 = vmatprep.subr.mxu0 0.0
    %1505 = vmatpush1.msra.mxu0 0.0
    %1506 = vmatprep.subr.mxu0 0.0
    %1507 = vmatpush1.msra.mxu0 0.0
    %1508 = vmatprep.subr.mxu0 0.0
    %1509 = vmatpush1.msra.mxu0 0.0
    %1510 = vmatprep.subr.mxu0 0.0
    %1511 = vmatpush1.msra.mxu0 0.0
    %1512 = vmatprep.subr.mxu0 0.0
    %1513 = vmatpush1.msra.mxu0 0.0
    %1514 = vmatprep.subr.mxu0 0.0
    %1515 = vmatpush1.msra.mxu0 0.0
    %1516 = vmatprep.subr.mxu0 0.0
    %1517 = vmatpush1.msra.mxu0 0.0
    %1518 = vmatprep.subr.mxu0 0.0
    %1519 = vmatpush1.msra.mxu0 0.0
    %1520 = vmatprep.subr.mxu0 0.0
    %1521 = vmatpush1.msra.mxu0 0.0
    %1522 = vmatprep.subr.mxu0 0.0
    %1523 = vmatpush1.msra.mxu0 0.0
    %1524 = vmatprep.subr.mxu0 0.0
    %1525 = vmatpush1.msra.mxu0 %v44
    %1526 = vmatprep.subr.mxu0 0.0
    %1527 = vmatpush1.msra.mxu0 %v43
    %1528 = vmatprep.subr.mxu0 0.0
    %1529 = vmatpush1.msra.mxu0 %v42
    %1530 = vmatprep.subr.mxu0 0.0
    %1531 = vmatpush1.msra.mxu0 %v41
    %1532 = vmatprep.subr.mxu0 0.0
    %1533 = vmatpush2.msra.mxu0 0.0
    %1534 = vmatprep.subr.mxu0 0.0
    %1535 = vmatpush2.msra.mxu0 0.0
    %1536 = vmatprep.subr.mxu0 0.0
    %1537 = vmatpush2.msra.mxu0 0.0
    %1538 = vmatprep.subr.mxu0 0.0
    %1539 = vmatpush2.msra.mxu0 0.0
    %1540 = vmatprep.subr.mxu0 0.0
    %1541 = vmatpush2.msra.mxu0 0.0
    %1542 = vmatprep.subr.mxu0 0.0
    %1543 = vmatpush2.msra.mxu0 0.0
    %1544 = vmatprep.subr.mxu0 0.0
    %1545 = vmatpush2.msra.mxu0 0.0
    %1546 = vmatprep.subr.mxu0 0.0
    %1547 = vmatpush2.msra.mxu0 0.0
    %1548 = vmatprep.subr.mxu0 0.0
    %1549 = vmatpush2.msra.mxu0 0.0
    %1550 = vmatprep.subr.mxu0 0.0
    %1551 = vmatpush2.msra.mxu0 0.0
    %1552 = vmatprep.subr.mxu0 0.0
    %1553 = vmatpush2.msra.mxu0 0.0
    %1554 = vmatprep.subr.mxu0 0.0
    %1555 = vmatpush2.msra.mxu0 0.0
    %1556 = vmatprep.subr.mxu0 0.0
    %1557 = vmatpush2.msra.mxu0 0.0
    %1558 = vmatprep.subr.mxu0 0.0
    %1559 = vmatpush2.msra.mxu0 0.0
    %1560 = vmatprep.subr.mxu0 0.0
    %1561 = vmatpush2.msra.mxu0 0.0
    %1562 = vmatprep.subr.mxu0 0.0
    %1563 = vmatpush2.msra.mxu0 0.0
    %1564 = vmatprep.mubr.f32.mxu0 0.0
    %1565 = vmatmul.mubr.f32.gmra.mxu0 %v1495
    %v1566 = vpop.f32.mrf.mxu0
    %v1567 = vadd.f32 %v53, %v1566
    %v1568 = vpop.f32.mrf.mxu0
    %1569 = vmatprep.mubr.f32.mxu0 0.0
    %1570 = vmatmul.mubr.f32.gmra.mxu0 %v1498
    %v1571 = vpop.f32.mrf.mxu0
    %v1572 = vadd.f32 %v53, %v1571
    %v1573 = vpop.f32.mrf.mxu0
    %1574 = vdwg.mxu0
    %1577 = vrot.lane.b32.xlu0 %v1567, 96
    %v1578 = vpop.permute.xlu0 %1577
    %1579 = vrot.lane.b32.xlu0 %v1572, 96
    %v1580 = vpop.permute.xlu0 %1579
    %v1581 = vsel %vm215, %v1567, 0
    %v1583 = vsel %vm215, %v1572, 0
    %v1585 = vsel %vm215, %v1578, 0
    %v1587 = vsel %vm215, %v1580, 0
    %1589 = vmatprep.subr.mxu0 0.0
    %1590 = vmatpush1.xpose.msra.mxu0 0.0
    %1591 = vmatprep.subr.mxu0 0.0
    %1592 = vmatpush1.xpose.msra.mxu0 0.0
    %1593 = vmatprep.subr.mxu0 0.0
    %1594 = vmatpush1.xpose.msra.mxu0 0.0
    %1595 = vmatprep.subr.mxu0 0.0
    %1596 = vmatpush1.xpose.msra.mxu0 0.0
    %1597 = vmatprep.subr.mxu0 0.0
    %1598 = vmatpush1.xpose.msra.mxu0 0.0
    %1599 = vmatprep.subr.mxu0 0.0
    %1600 = vmatpush1.xpose.msra.mxu0 0.0
    %1601 = vmatprep.subr.mxu0 0.0
    %1602 = vmatpush1.xpose.msra.mxu0 0.0
    %1603 = vmatprep.subr.mxu0 0.0
    %1604 = vmatpush1.xpose.msra.mxu0 0.0
    %1605 = vmatprep.subr.mxu0 0.0
    %1606 = vmatpush1.xpose.msra.mxu0 0.0
    %1607 = vmatprep.subr.mxu0 0.0
    %1608 = vmatpush1.xpose.msra.mxu0 0.0
    %1609 = vmatprep.subr.mxu0 0.0
    %1610 = vmatpush1.xpose.msra.mxu0 0.0
    %1611 = vmatprep.subr.mxu0 0.0
    %1612 = vmatpush1.xpose.msra.mxu0 0.0
    %1613 = vmatprep.subr.mxu0 0.0
    %1614 = vmatpush1.xpose.msra.mxu0 0.0
    %1615 = vmatprep.subr.mxu0 0.0
    %1616 = vmatpush1.xpose.msra.mxu0 0.0
    %1617 = vmatprep.subr.mxu0 0.0
    %1618 = vmatpush1.xpose.msra.mxu0 %v1587
    %1619 = vmatprep.subr.mxu0 0.0
    %1620 = vmatpush1.xpose.msra.mxu0 %v1585
    %1621 = vmatprep.subr.mxu0 0.0
    %1622 = vmatpush2.xpose.msra.mxu0 0.0
    %1623 = vmatprep.subr.mxu0 0.0
    %1624 = vmatpush2.xpose.msra.mxu0 0.0
    %1625 = vmatprep.subr.mxu0 0.0
    %1626 = vmatpush2.xpose.msra.mxu0 0.0
    %1627 = vmatprep.subr.mxu0 0.0
    %1628 = vmatpush2.xpose.msra.mxu0 0.0
    %1629 = vmatprep.subr.mxu0 0.0
    %1630 = vmatpush2.xpose.msra.mxu0 0.0
    %1631 = vmatprep.subr.mxu0 0.0
    %1632 = vmatpush2.xpose.msra.mxu0 0.0
    %1633 = vmatprep.subr.mxu0 0.0
    %1634 = vmatpush2.xpose.msra.mxu0 0.0
    %1635 = vmatprep.subr.mxu0 0.0
    %1636 = vmatpush2.xpose.msra.mxu0 0.0
    %1637 = vmatprep.subr.mxu0 0.0
    %1638 = vmatpush2.xpose.msra.mxu0 0.0
    %1639 = vmatprep.subr.mxu0 0.0
    %1640 = vmatpush2.xpose.msra.mxu0 0.0
    %1641 = vmatprep.subr.mxu0 0.0
    %1642 = vmatpush2.xpose.msra.mxu0 0.0
    %1643 = vmatprep.subr.mxu0 0.0
    %1644 = vmatpush2.xpose.msra.mxu0 0.0
    %1645 = vmatprep.subr.mxu0 0.0
    %1646 = vmatpush2.xpose.msra.mxu0 0.0
    %1647 = vmatprep.subr.mxu0 0.0
    %1648 = vmatpush2.xpose.msra.mxu0 0.0
    %1649 = vmatprep.subr.mxu0 0.0
    %1650 = vmatpush2.xpose.msra.mxu0 0.0
    %1651 = vmatprep.subr.mxu0 0.0
    %1652 = vmatpush2.xpose.msra.mxu0 0.0
    %1653 = vmatprep.mubr.f32.mxu0 0.0
    %1654 = vmatmul.mubr.f32.gmra.mxu0 %v1581
    %v1655 = vpop.f32.mrf.mxu0
    %v1656 = vadd.f32 0.0, %v1655
    %v1657 = vpop.f32.mrf.mxu0
    %1658 = vmatprep.mubr.f32.mxu0 0.0
    %1659 = vmatmul.mubr.f32.gmra.mxu0 %v1583
    %v1660 = vpop.f32.mrf.mxu0
    %v1661 = vadd.f32 0.0, %v1660
    %v1662 = vpop.f32.mrf.mxu0
    %1663 = vdwg.mxu0
    %v1664 = vmul.f32 %v1656, 0.35355338
    %v1665 = vmul.f32 %v1661, 0.35355338
    %v1666 = vadd.f32 %v1664, %v86
    %v1667 = vadd.f32 %v1665, %v87
    %v1668 = vsel %vm303, %v1666, -inf
    %1669 = vmax.xlane.f32.xlu0 %v1668
    %v1670 = vpop.xlane.xlu0 %1669
    %v1671 = vsel %vm303, %v1667, -inf
    %1672 = vmax.xlane.f32.xlu0 %v1671
    %v1673 = vpop.xlane.xlu0 %1672
    %v1674 = vsub.f32 %v1666, %v1670
    %v1675 = vsub.f32 %v1667, %v1673
    %v1676 = vmul.f32 %v1674, 1.442695
    %v1677 = vpow.pop %v1676
    %v1678 = vmul.f32 %v1675, 1.442695
    %v1679 = vpow.pop %v1678
    %v1680 = vsel %vm303, %v1677, 0.0
    %1681 = vadd.xlane.f32.xlu0 %v1680
    %v1682 = vpop.xlane.xlu0 %1681
    %v1683 = vsel %vm303, %v1679, 0.0
    %1684 = vadd.xlane.f32.xlu0 %v1683
    %v1685 = vpop.xlane.xlu0 %1684
    %v1686 = vrcp.pop %v1682
    %v1687 = vrcp.pop %v1685
    %v1688 = vmul.f32 %v1677, %v1686
    %v1689 = vmul.f32 %v1679, %v1687
    %1690 = vrot.lane.b32.xlu0 %v1567, 64
    %v1691 = vpop.permute.xlu0 %1690
    %1692 = vrot.lane.b32.xlu0 %v1572, 64
    %v1693 = vpop.permute.xlu0 %1692
    %v1697 = vsel %vm303, %v1688, 0
    %v1700 = vsel %vm303, %v1689, 0
    %1702 = vmatprep.subr.mxu0 0.0
    %1703 = vmatpush1.msra.mxu0 0.0
    %1704 = vmatprep.subr.mxu0 0.0
    %1705 = vmatpush1.msra.mxu0 0.0
    %1706 = vmatprep.subr.mxu0 0.0
    %1707 = vmatpush1.msra.mxu0 0.0
    %1708 = vmatprep.subr.mxu0 0.0
    %1709 = vmatpush1.msra.mxu0 0.0
    %1710 = vmatprep.subr.mxu0 0.0
    %1711 = vmatpush1.msra.mxu0 0.0
    %1712 = vmatprep.subr.mxu0 0.0
    %1713 = vmatpush1.msra.mxu0 0.0
    %1714 = vmatprep.subr.mxu0 0.0
    %1715 = vmatpush1.msra.mxu0 0.0
    %1716 = vmatprep.subr.mxu0 0.0
    %1717 = vmatpush1.msra.mxu0 0.0
    %1718 = vmatprep.subr.mxu0 0.0
    %1719 = vmatpush1.msra.mxu0 0.0
    %1720 = vmatprep.subr.mxu0 0.0
    %1721 = vmatpush1.msra.mxu0 0.0
    %1722 = vmatprep.subr.mxu0 0.0
    %1723 = vmatpush1.msra.mxu0 0.0
    %1724 = vmatprep.subr.mxu0 0.0
    %1725 = vmatpush1.msra.mxu0 0.0
    %1726 = vmatprep.subr.mxu0 0.0
    %1727 = vmatpush1.msra.mxu0 0.0
    %1728 = vmatprep.subr.mxu0 0.0
    %1729 = vmatpush1.msra.mxu0 0.0
    %1730 = vmatprep.subr.mxu0 0.0
    %1731 = vmatpush1.msra.mxu0 %v1693
    %1732 = vmatprep.subr.mxu0 0.0
    %1733 = vmatpush1.msra.mxu0 %v1691
    %1734 = vmatprep.subr.mxu0 0.0
    %1735 = vmatpush2.msra.mxu0 0.0
    %1736 = vmatprep.subr.mxu0 0.0
    %1737 = vmatpush2.msra.mxu0 0.0
    %1738 = vmatprep.subr.mxu0 0.0
    %1739 = vmatpush2.msra.mxu0 0.0
    %1740 = vmatprep.subr.mxu0 0.0
    %1741 = vmatpush2.msra.mxu0 0.0
    %1742 = vmatprep.subr.mxu0 0.0
    %1743 = vmatpush2.msra.mxu0 0.0
    %1744 = vmatprep.subr.mxu0 0.0
    %1745 = vmatpush2.msra.mxu0 0.0
    %1746 = vmatprep.subr.mxu0 0.0
    %1747 = vmatpush2.msra.mxu0 0.0
    %1748 = vmatprep.subr.mxu0 0.0
    %1749 = vmatpush2.msra.mxu0 0.0
    %1750 = vmatprep.subr.mxu0 0.0
    %1751 = vmatpush2.msra.mxu0 0.0
    %1752 = vmatprep.subr.mxu0 0.0
    %1753 = vmatpush2.msra.mxu0 0.0
    %1754 = vmatprep.subr.mxu0 0.0
    %1755 = vmatpush2.msra.mxu0 0.0
    %1756 = vmatprep.subr.mxu0 0.0
    %1757 = vmatpush2.msra.mxu0 0.0
    %1758 = vmatprep.subr.mxu0 0.0
    %1759 = vmatpush2.msra.mxu0 0.0
    %1760 = vmatprep.subr.mxu0 0.0
    %1761 = vmatpush2.msra.mxu0 0.0
    %1762 = vmatprep.subr.mxu0 0.0
    %1763 = vmatpush2.msra.mxu0 0.0
    %1764 = vmatprep.subr.mxu0 0.0
    %1765 = vmatpush2.msra.mxu0 0.0
    %1766 = vmatprep.mubr.f32.mxu0 0.0
    %1767 = vmatmul.mubr.f32.gmra.mxu0 %v1697
    %v1768 = vpop.f32.mrf.mxu0
    %v1769 = vadd.f32 0.0, %v1768
    %v1770 = vpop.f32.mrf.mxu0
    %1771 = vmatprep.mubr.f32.mxu0 0.0
    %1772 = vmatmul.mubr.f32.gmra.mxu0 %v1700
    %v1773 = vpop.f32.mrf.mxu0
    %v1774 = vadd.f32 0.0, %v1773
    %v1775 = vpop.f32.mrf.mxu0
    %1776 = vdwg.mxu0
    %1777 = vrot.lane.b32.xlu0 %v1567, 120
    %v1778 = vpop.permute.xlu0 %1777
    %1779 = vrot.lane.b32.xlu0 %v1572, 120
    %v1780 = vpop.permute.xlu0 %1779
    %1781 = vrot.lane.b32.xlu0 %v1567, 88
    %v1782 = vpop.permute.xlu0 %1781
    %1783 = vrot.lane.b32.xlu0 %v1572, 88
    %v1784 = vpop.permute.xlu0 %1783
    %v1785 = vsel %vm215, %v1778, 0
    %v1787 = vsel %vm215, %v1780, 0
    %v1789 = vsel %vm215, %v1782, 0
    %v1791 = vsel %vm215, %v1784, 0
    %1793 = vmatprep.subr.mxu0 0.0
    %1794 = vmatpush1.xpose.msra.mxu0 0.0
    %1795 = vmatprep.subr.mxu0 0.0
    %1796 = vmatpush1.xpose.msra.mxu0 0.0
    %1797 = vmatprep.subr.mxu0 0.0
    %1798 = vmatpush1.xpose.msra.mxu0 0.0
    %1799 = vmatprep.subr.mxu0 0.0
    %1800 = vmatpush1.xpose.msra.mxu0 0.0
    %1801 = vmatprep.subr.mxu0 0.0
    %1802 = vmatpush1.xpose.msra.mxu0 0.0
    %1803 = vmatprep.subr.mxu0 0.0
    %1804 = vmatpush1.xpose.msra.mxu0 0.0
    %1805 = vmatprep.subr.mxu0 0.0
    %1806 = vmatpush1.xpose.msra.mxu0 0.0
    %1807 = vmatprep.subr.mxu0 0.0
    %1808 = vmatpush1.xpose.msra.mxu0 0.0
    %1809 = vmatprep.subr.mxu0 0.0
    %1810 = vmatpush1.xpose.msra.mxu0 0.0
    %1811 = vmatprep.subr.mxu0 0.0
    %1812 = vmatpush1.xpose.msra.mxu0 0.0
    %1813 = vmatprep.subr.mxu0 0.0
    %1814 = vmatpush1.xpose.msra.mxu0 0.0
    %1815 = vmatprep.subr.mxu0 0.0
    %1816 = vmatpush1.xpose.msra.mxu0 0.0
    %1817 = vmatprep.subr.mxu0 0.0
    %1818 = vmatpush1.xpose.msra.mxu0 0.0
    %1819 = vmatprep.subr.mxu0 0.0
    %1820 = vmatpush1.xpose.msra.mxu0 0.0
    %1821 = vmatprep.subr.mxu0 0.0
    %1822 = vmatpush1.xpose.msra.mxu0 %v1791
    %1823 = vmatprep.subr.mxu0 0.0
    %1824 = vmatpush1.xpose.msra.mxu0 %v1789
    %1825 = vmatprep.subr.mxu0 0.0
    %1826 = vmatpush2.xpose.msra.mxu0 0.0
    %1827 = vmatprep.subr.mxu0 0.0
    %1828 = vmatpush2.xpose.msra.mxu0 0.0
    %1829 = vmatprep.subr.mxu0 0.0
    %1830 = vmatpush2.xpose.msra.mxu0 0.0
    %1831 = vmatprep.subr.mxu0 0.0
    %1832 = vmatpush2.xpose.msra.mxu0 0.0
    %1833 = vmatprep.subr.mxu0 0.0
    %1834 = vmatpush2.xpose.msra.mxu0 0.0
    %1835 = vmatprep.subr.mxu0 0.0
    %1836 = vmatpush2.xpose.msra.mxu0 0.0
    %1837 = vmatprep.subr.mxu0 0.0
    %1838 = vmatpush2.xpose.msra.mxu0 0.0
    %1839 = vmatprep.subr.mxu0 0.0
    %1840 = vmatpush2.xpose.msra.mxu0 0.0
    %1841 = vmatprep.subr.mxu0 0.0
    %1842 = vmatpush2.xpose.msra.mxu0 0.0
    %1843 = vmatprep.subr.mxu0 0.0
    %1844 = vmatpush2.xpose.msra.mxu0 0.0
    %1845 = vmatprep.subr.mxu0 0.0
    %1846 = vmatpush2.xpose.msra.mxu0 0.0
    %1847 = vmatprep.subr.mxu0 0.0
    %1848 = vmatpush2.xpose.msra.mxu0 0.0
    %1849 = vmatprep.subr.mxu0 0.0
    %1850 = vmatpush2.xpose.msra.mxu0 0.0
    %1851 = vmatprep.subr.mxu0 0.0
    %1852 = vmatpush2.xpose.msra.mxu0 0.0
    %1853 = vmatprep.subr.mxu0 0.0
    %1854 = vmatpush2.xpose.msra.mxu0 0.0
    %1855 = vmatprep.subr.mxu0 0.0
    %1856 = vmatpush2.xpose.msra.mxu0 0.0
    %1857 = vmatprep.mubr.f32.mxu0 0.0
    %1858 = vmatmul.mubr.f32.gmra.mxu0 %v1785
    %v1859 = vpop.f32.mrf.mxu0
    %v1860 = vadd.f32 0.0, %v1859
    %v1861 = vpop.f32.mrf.mxu0
    %1862 = vmatprep.mubr.f32.mxu0 0.0
    %1863 = vmatmul.mubr.f32.gmra.mxu0 %v1787
    %v1864 = vpop.f32.mrf.mxu0
    %v1865 = vadd.f32 0.0, %v1864
    %v1866 = vpop.f32.mrf.mxu0
    %1867 = vdwg.mxu0
    %v1868 = vmul.f32 %v1860, 0.35355338
    %v1869 = vmul.f32 %v1865, 0.35355338
    %v1870 = vadd.f32 %v1868, %v86
    %v1871 = vadd.f32 %v1869, %v87
    %v1872 = vsel %vm303, %v1870, -inf
    %1873 = vmax.xlane.f32.xlu0 %v1872
    %v1874 = vpop.xlane.xlu0 %1873
    %v1875 = vsel %vm303, %v1871, -inf
    %1876 = vmax.xlane.f32.xlu0 %v1875
    %v1877 = vpop.xlane.xlu0 %1876
    %v1878 = vsub.f32 %v1870, %v1874
    %v1879 = vsub.f32 %v1871, %v1877
    %v1880 = vmul.f32 %v1878, 1.442695
    %v1881 = vpow.pop %v1880
    %v1882 = vmul.f32 %v1879, 1.442695
    %v1883 = vpow.pop %v1882
    %v1884 = vsel %vm303, %v1881, 0.0
    %1885 = vadd.xlane.f32.xlu0 %v1884
    %v1886 = vpop.xlane.xlu0 %1885
    %v1887 = vsel %vm303, %v1883, 0.0
    %1888 = vadd.xlane.f32.xlu0 %v1887
    %v1889 = vpop.xlane.xlu0 %1888
    %v1890 = vrcp.pop %v1886
    %v1891 = vrcp.pop %v1889
    %v1892 = vmul.f32 %v1881, %v1890
    %v1893 = vmul.f32 %v1883, %v1891
    %1894 = vrot.lane.b32.xlu0 %v1567, 56
    %v1895 = vpop.permute.xlu0 %1894
    %1896 = vrot.lane.b32.xlu0 %v1572, 56
    %v1897 = vpop.permute.xlu0 %1896
    %v1901 = vsel %vm303, %v1892, 0
    %v1904 = vsel %vm303, %v1893, 0
    %1906 = vmatprep.subr.mxu0 0.0
    %1907 = vmatpush1.msra.mxu0 0.0
    %1908 = vmatprep.subr.mxu0 0.0
    %1909 = vmatpush1.msra.mxu0 0.0
    %1910 = vmatprep.subr.mxu0 0.0
    %1911 = vmatpush1.msra.mxu0 0.0
    %1912 = vmatprep.subr.mxu0 0.0
    %1913 = vmatpush1.msra.mxu0 0.0
    %1914 = vmatprep.subr.mxu0 0.0
    %1915 = vmatpush1.msra.mxu0 0.0
    %1916 = vmatprep.subr.mxu0 0.0
    %1917 = vmatpush1.msra.mxu0 0.0
    %1918 = vmatprep.subr.mxu0 0.0
    %1919 = vmatpush1.msra.mxu0 0.0
    %1920 = vmatprep.subr.mxu0 0.0
    %1921 = vmatpush1.msra.mxu0 0.0
    %1922 = vmatprep.subr.mxu0 0.0
    %1923 = vmatpush1.msra.mxu0 0.0
    %1924 = vmatprep.subr.mxu0 0.0
    %1925 = vmatpush1.msra.mxu0 0.0
    %1926 = vmatprep.subr.mxu0 0.0
    %1927 = vmatpush1.msra.mxu0 0.0
    %1928 = vmatprep.subr.mxu0 0.0
    %1929 = vmatpush1.msra.mxu0 0.0
    %1930 = vmatprep.subr.mxu0 0.0
    %1931 = vmatpush1.msra.mxu0 0.0
    %1932 = vmatprep.subr.mxu0 0.0
    %1933 = vmatpush1.msra.mxu0 0.0
    %1934 = vmatprep.subr.mxu0 0.0
    %1935 = vmatpush1.msra.mxu0 %v1897
    %1936 = vmatprep.subr.mxu0 0.0
    %1937 = vmatpush1.msra.mxu0 %v1895
    %1938 = vmatprep.subr.mxu0 0.0
    %1939 = vmatpush2.msra.mxu0 0.0
    %1940 = vmatprep.subr.mxu0 0.0
    %1941 = vmatpush2.msra.mxu0 0.0
    %1942 = vmatprep.subr.mxu0 0.0
    %1943 = vmatpush2.msra.mxu0 0.0
    %1944 = vmatprep.subr.mxu0 0.0
    %1945 = vmatpush2.msra.mxu0 0.0
    %1946 = vmatprep.subr.mxu0 0.0
    %1947 = vmatpush2.msra.mxu0 0.0
    %1948 = vmatprep.subr.mxu0 0.0
    %1949 = vmatpush2.msra.mxu0 0.0
    %1950 = vmatprep.subr.mxu0 0.0
    %1951 = vmatpush2.msra.mxu0 0.0
    %1952 = vmatprep.subr.mxu0 0.0
    %1953 = vmatpush2.msra.mxu0 0.0
    %1954 = vmatprep.subr.mxu0 0.0
    %1955 = vmatpush2.msra.mxu0 0.0
    %1956 = vmatprep.subr.mxu0 0.0
    %1957 = vmatpush2.msra.mxu0 0.0
    %1958 = vmatprep.subr.mxu0 0.0
    %1959 = vmatpush2.msra.mxu0 0.0
    %1960 = vmatprep.subr.mxu0 0.0
    %1961 = vmatpush2.msra.mxu0 0.0
    %1962 = vmatprep.subr.mxu0 0.0
    %1963 = vmatpush2.msra.mxu0 0.0
    %1964 = vmatprep.subr.mxu0 0.0
    %1965 = vmatpush2.msra.mxu0 0.0
    %1966 = vmatprep.subr.mxu0 0.0
    %1967 = vmatpush2.msra.mxu0 0.0
    %1968 = vmatprep.subr.mxu0 0.0
    %1969 = vmatpush2.msra.mxu0 0.0
    %1970 = vmatprep.mubr.f32.mxu0 0.0
    %1971 = vmatmul.mubr.f32.gmra.mxu0 %v1901
    %v1972 = vpop.f32.mrf.mxu0
    %v1973 = vadd.f32 0.0, %v1972
    %v1974 = vpop.f32.mrf.mxu0
    %1975 = vmatprep.mubr.f32.mxu0 0.0
    %1976 = vmatmul.mubr.f32.gmra.mxu0 %v1904
    %v1977 = vpop.f32.mrf.mxu0
    %v1978 = vadd.f32 0.0, %v1977
    %v1979 = vpop.f32.mrf.mxu0
    %1980 = vdwg.mxu0
    %1981 = vrot.lane.b32.xlu0 %v1567, 112
    %v1982 = vpop.permute.xlu0 %1981
    %1983 = vrot.lane.b32.xlu0 %v1572, 112
    %v1984 = vpop.permute.xlu0 %1983
    %1985 = vrot.lane.b32.xlu0 %v1567, 80
    %v1986 = vpop.permute.xlu0 %1985
    %1987 = vrot.lane.b32.xlu0 %v1572, 80
    %v1988 = vpop.permute.xlu0 %1987
    %v1989 = vsel %vm215, %v1982, 0
    %v1991 = vsel %vm215, %v1984, 0
    %v1993 = vsel %vm215, %v1986, 0
    %v1995 = vsel %vm215, %v1988, 0
    %1997 = vmatprep.subr.mxu0 0.0
    %1998 = vmatpush1.xpose.msra.mxu0 0.0
    %1999 = vmatprep.subr.mxu0 0.0
    %2000 = vmatpush1.xpose.msra.mxu0 0.0
    %2001 = vmatprep.subr.mxu0 0.0
    %2002 = vmatpush1.xpose.msra.mxu0 0.0
    %2003 = vmatprep.subr.mxu0 0.0
    %2004 = vmatpush1.xpose.msra.mxu0 0.0
    %2005 = vmatprep.subr.mxu0 0.0
    %2006 = vmatpush1.xpose.msra.mxu0 0.0
    %2007 = vmatprep.subr.mxu0 0.0
    %2008 = vmatpush1.xpose.msra.mxu0 0.0
    %2009 = vmatprep.subr.mxu0 0.0
    %2010 = vmatpush1.xpose.msra.mxu0 0.0
    %2011 = vmatprep.subr.mxu0 0.0
    %2012 = vmatpush1.xpose.msra.mxu0 0.0
    %2013 = vmatprep.subr.mxu0 0.0
    %2014 = vmatpush1.xpose.msra.mxu0 0.0
    %2015 = vmatprep.subr.mxu0 0.0
    %2016 = vmatpush1.xpose.msra.mxu0 0.0
    %2017 = vmatprep.subr.mxu0 0.0
    %2018 = vmatpush1.xpose.msra.mxu0 0.0
    %2019 = vmatprep.subr.mxu0 0.0
    %2020 = vmatpush1.xpose.msra.mxu0 0.0
    %2021 = vmatprep.subr.mxu0 0.0
    %2022 = vmatpush1.xpose.msra.mxu0 0.0
    %2023 = vmatprep.subr.mxu0 0.0
    %2024 = vmatpush1.xpose.msra.mxu0 0.0
    %2025 = vmatprep.subr.mxu0 0.0
    %2026 = vmatpush1.xpose.msra.mxu0 %v1995
    %2027 = vmatprep.subr.mxu0 0.0
    %2028 = vmatpush1.xpose.msra.mxu0 %v1993
    %2029 = vmatprep.subr.mxu0 0.0
    %2030 = vmatpush2.xpose.msra.mxu0 0.0
    %2031 = vmatprep.subr.mxu0 0.0
    %2032 = vmatpush2.xpose.msra.mxu0 0.0
    %2033 = vmatprep.subr.mxu0 0.0
    %2034 = vmatpush2.xpose.msra.mxu0 0.0
    %2035 = vmatprep.subr.mxu0 0.0
    %2036 = vmatpush2.xpose.msra.mxu0 0.0
    %2037 = vmatprep.subr.mxu0 0.0
    %2038 = vmatpush2.xpose.msra.mxu0 0.0
    %2039 = vmatprep.subr.mxu0 0.0
    %2040 = vmatpush2.xpose.msra.mxu0 0.0
    %2041 = vmatprep.subr.mxu0 0.0
    %2042 = vmatpush2.xpose.msra.mxu0 0.0
    %2043 = vmatprep.subr.mxu0 0.0
    %2044 = vmatpush2.xpose.msra.mxu0 0.0
    %2045 = vmatprep.subr.mxu0 0.0
    %2046 = vmatpush2.xpose.msra.mxu0 0.0
    %2047 = vmatprep.subr.mxu0 0.0
    %2048 = vmatpush2.xpose.msra.mxu0 0.0
    %2049 = vmatprep.subr.mxu0 0.0
    %2050 = vmatpush2.xpose.msra.mxu0 0.0
    %2051 = vmatprep.subr.mxu0 0.0
    %2052 = vmatpush2.xpose.msra.mxu0 0.0
    %2053 = vmatprep.subr.mxu0 0.0
    %2054 = vmatpush2.xpose.msra.mxu0 0.0
    %2055 = vmatprep.subr.mxu0 0.0
    %2056 = vmatpush2.xpose.msra.mxu0 0.0
    %2057 = vmatprep.subr.mxu0 0.0
    %2058 = vmatpush2.xpose.msra.mxu0 0.0
    %2059 = vmatprep.subr.mxu0 0.0
    %2060 = vmatpush2.xpose.msra.mxu0 0.0
    %2061 = vmatprep.mubr.f32.mxu0 0.0
    %2062 = vmatmul.mubr.f32.gmra.mxu0 %v1989
    %v2063 = vpop.f32.mrf.mxu0
    %v2064 = vadd.f32 0.0, %v2063
    %v2065 = vpop.f32.mrf.mxu0
    %2066 = vmatprep.mubr.f32.mxu0 0.0
    %2067 = vmatmul.mubr.f32.gmra.mxu0 %v1991
    %v2068 = vpop.f32.mrf.mxu0
    %v2069 = vadd.f32 0.0, %v2068
    %v2070 = vpop.f32.mrf.mxu0
    %2071 = vdwg.mxu0
    %v2072 = vmul.f32 %v2064, 0.35355338
    %v2073 = vmul.f32 %v2069, 0.35355338
    %v2074 = vadd.f32 %v2072, %v86
    %v2075 = vadd.f32 %v2073, %v87
    %v2076 = vsel %vm303, %v2074, -inf
    %2077 = vmax.xlane.f32.xlu0 %v2076
    %v2078 = vpop.xlane.xlu0 %2077
    %v2079 = vsel %vm303, %v2075, -inf
    %2080 = vmax.xlane.f32.xlu0 %v2079
    %v2081 = vpop.xlane.xlu0 %2080
    %v2082 = vsub.f32 %v2074, %v2078
    %v2083 = vsub.f32 %v2075, %v2081
    %v2084 = vmul.f32 %v2082, 1.442695
    %v2085 = vpow.pop %v2084
    %v2086 = vmul.f32 %v2083, 1.442695
    %v2087 = vpow.pop %v2086
    %v2088 = vsel %vm303, %v2085, 0.0
    %2089 = vadd.xlane.f32.xlu0 %v2088
    %v2090 = vpop.xlane.xlu0 %2089
    %v2091 = vsel %vm303, %v2087, 0.0
    %2092 = vadd.xlane.f32.xlu0 %v2091
    %v2093 = vpop.xlane.xlu0 %2092
    %v2094 = vrcp.pop %v2090
    %v2095 = vrcp.pop %v2093
    %v2096 = vmul.f32 %v2085, %v2094
    %v2097 = vmul.f32 %v2087, %v2095
    %2098 = vrot.lane.b32.xlu0 %v1567, 48
    %v2099 = vpop.permute.xlu0 %2098
    %2100 = vrot.lane.b32.xlu0 %v1572, 48
    %v2101 = vpop.permute.xlu0 %2100
    %v2105 = vsel %vm303, %v2096, 0
    %v2108 = vsel %vm303, %v2097, 0
    %2110 = vmatprep.subr.mxu0 0.0
    %2111 = vmatpush1.msra.mxu0 0.0
    %2112 = vmatprep.subr.mxu0 0.0
    %2113 = vmatpush1.msra.mxu0 0.0
    %2114 = vmatprep.subr.mxu0 0.0
    %2115 = vmatpush1.msra.mxu0 0.0
    %2116 = vmatprep.subr.mxu0 0.0
    %2117 = vmatpush1.msra.mxu0 0.0
    %2118 = vmatprep.subr.mxu0 0.0
    %2119 = vmatpush1.msra.mxu0 0.0
    %2120 = vmatprep.subr.mxu0 0.0
    %2121 = vmatpush1.msra.mxu0 0.0
    %2122 = vmatprep.subr.mxu0 0.0
    %2123 = vmatpush1.msra.mxu0 0.0
    %2124 = vmatprep.subr.mxu0 0.0
    %2125 = vmatpush1.msra.mxu0 0.0
    %2126 = vmatprep.subr.mxu0 0.0
    %2127 = vmatpush1.msra.mxu0 0.0
    %2128 = vmatprep.subr.mxu0 0.0
    %2129 = vmatpush1.msra.mxu0 0.0
    %2130 = vmatprep.subr.mxu0 0.0
    %2131 = vmatpush1.msra.mxu0 0.0
    %2132 = vmatprep.subr.mxu0 0.0
    %2133 = vmatpush1.msra.mxu0 0.0
    %2134 = vmatprep.subr.mxu0 0.0
    %2135 = vmatpush1.msra.mxu0 0.0
    %2136 = vmatprep.subr.mxu0 0.0
    %2137 = vmatpush1.msra.mxu0 0.0
    %2138 = vmatprep.subr.mxu0 0.0
    %2139 = vmatpush1.msra.mxu0 %v2101
    %2140 = vmatprep.subr.mxu0 0.0
    %2141 = vmatpush1.msra.mxu0 %v2099
    %2142 = vmatprep.subr.mxu0 0.0
    %2143 = vmatpush2.msra.mxu0 0.0
    %2144 = vmatprep.subr.mxu0 0.0
    %2145 = vmatpush2.msra.mxu0 0.0
    %2146 = vmatprep.subr.mxu0 0.0
    %2147 = vmatpush2.msra.mxu0 0.0
    %2148 = vmatprep.subr.mxu0 0.0
    %2149 = vmatpush2.msra.mxu0 0.0
    %2150 = vmatprep.subr.mxu0 0.0
    %2151 = vmatpush2.msra.mxu0 0.0
    %2152 = vmatprep.subr.mxu0 0.0
    %2153 = vmatpush2.msra.mxu0 0.0
    %2154 = vmatprep.subr.mxu0 0.0
    %2155 = vmatpush2.msra.mxu0 0.0
    %2156 = vmatprep.subr.mxu0 0.0
    %2157 = vmatpush2.msra.mxu0 0.0
    %2158 = vmatprep.subr.mxu0 0.0
    %2159 = vmatpush2.msra.mxu0 0.0
    %2160 = vmatprep.subr.mxu0 0.0
    %2161 = vmatpush2.msra.mxu0 0.0
    %2162 = vmatprep.subr.mxu0 0.0
    %2163 = vmatpush2.msra.mxu0 0.0
    %2164 = vmatprep.subr.mxu0 0.0
    %2165 = vmatpush2.msra.mxu0 0.0
    %2166 = vmatprep.subr.mxu0 0.0
    %2167 = vmatpush2.msra.mxu0 0.0
    %2168 = vmatprep.subr.mxu0 0.0
    %2169 = vmatpush2.msra.mxu0 0.0
    %2170 = vmatprep.subr.mxu0 0.0
    %2171 = vmatpush2.msra.mxu0 0.0
    %2172 = vmatprep.subr.mxu0 0.0
    %2173 = vmatpush2.msra.mxu0 0.0
    %2174 = vmatprep.mubr.f32.mxu0 0.0
    %2175 = vmatmul.mubr.f32.gmra.mxu0 %v2105
    %v2176 = vpop.f32.mrf.mxu0
    %v2177 = vadd.f32 0.0, %v2176
    %v2178 = vpop.f32.mrf.mxu0
    %2179 = vmatprep.mubr.f32.mxu0 0.0
    %2180 = vmatmul.mubr.f32.gmra.mxu0 %v2108
    %v2181 = vpop.f32.mrf.mxu0
    %v2182 = vadd.f32 0.0, %v2181
    %v2183 = vpop.f32.mrf.mxu0
    %2184 = vdwg.mxu0
    %2185 = vrot.lane.b32.xlu0 %v1567, 104
    %v2186 = vpop.permute.xlu0 %2185
    %2187 = vrot.lane.b32.xlu0 %v1572, 104
    %v2188 = vpop.permute.xlu0 %2187
    %2189 = vrot.lane.b32.xlu0 %v1567, 72
    %v2190 = vpop.permute.xlu0 %2189
    %2191 = vrot.lane.b32.xlu0 %v1572, 72
    %v2192 = vpop.permute.xlu0 %2191
    %v2193 = vsel %vm215, %v2186, 0
    %v2195 = vsel %vm215, %v2188, 0
    %v2197 = vsel %vm215, %v2190, 0
    %v2199 = vsel %vm215, %v2192, 0
    %2201 = vmatprep.subr.mxu0 0.0
    %2202 = vmatpush1.xpose.msra.mxu0 0.0
    %2203 = vmatprep.subr.mxu0 0.0
    %2204 = vmatpush1.xpose.msra.mxu0 0.0
    %2205 = vmatprep.subr.mxu0 0.0
    %2206 = vmatpush1.xpose.msra.mxu0 0.0
    %2207 = vmatprep.subr.mxu0 0.0
    %2208 = vmatpush1.xpose.msra.mxu0 0.0
    %2209 = vmatprep.subr.mxu0 0.0
    %2210 = vmatpush1.xpose.msra.mxu0 0.0
    %2211 = vmatprep.subr.mxu0 0.0
    %2212 = vmatpush1.xpose.msra.mxu0 0.0
    %2213 = vmatprep.subr.mxu0 0.0
    %2214 = vmatpush1.xpose.msra.mxu0 0.0
    %2215 = vmatprep.subr.mxu0 0.0
    %2216 = vmatpush1.xpose.msra.mxu0 0.0
    %2217 = vmatprep.subr.mxu0 0.0
    %2218 = vmatpush1.xpose.msra.mxu0 0.0
    %2219 = vmatprep.subr.mxu0 0.0
    %2220 = vmatpush1.xpose.msra.mxu0 0.0
    %2221 = vmatprep.subr.mxu0 0.0
    %2222 = vmatpush1.xpose.msra.mxu0 0.0
    %2223 = vmatprep.subr.mxu0 0.0
    %2224 = vmatpush1.xpose.msra.mxu0 0.0
    %2225 = vmatprep.subr.mxu0 0.0
    %2226 = vmatpush1.xpose.msra.mxu0 0.0
    %2227 = vmatprep.subr.mxu0 0.0
    %2228 = vmatpush1.xpose.msra.mxu0 0.0
    %2229 = vmatprep.subr.mxu0 0.0
    %2230 = vmatpush1.xpose.msra.mxu0 %v2199
    %2231 = vmatprep.subr.mxu0 0.0
    %2232 = vmatpush1.xpose.msra.mxu0 %v2197
    %2233 = vmatprep.subr.mxu0 0.0
    %2234 = vmatpush2.xpose.msra.mxu0 0.0
    %2235 = vmatprep.subr.mxu0 0.0
    %2236 = vmatpush2.xpose.msra.mxu0 0.0
    %2237 = vmatprep.subr.mxu0 0.0
    %2238 = vmatpush2.xpose.msra.mxu0 0.0
    %2239 = vmatprep.subr.mxu0 0.0
    %2240 = vmatpush2.xpose.msra.mxu0 0.0
    %2241 = vmatprep.subr.mxu0 0.0
    %2242 = vmatpush2.xpose.msra.mxu0 0.0
    %2243 = vmatprep.subr.mxu0 0.0
    %2244 = vmatpush2.xpose.msra.mxu0 0.0
    %2245 = vmatprep.subr.mxu0 0.0
    %2246 = vmatpush2.xpose.msra.mxu0 0.0
    %2247 = vmatprep.subr.mxu0 0.0
    %2248 = vmatpush2.xpose.msra.mxu0 0.0
    %2249 = vmatprep.subr.mxu0 0.0
    %2250 = vmatpush2.xpose.msra.mxu0 0.0
    %2251 = vmatprep.subr.mxu0 0.0
    %2252 = vmatpush2.xpose.msra.mxu0 0.0
    %2253 = vmatprep.subr.mxu0 0.0
    %2254 = vmatpush2.xpose.msra.mxu0 0.0
    %2255 = vmatprep.subr.mxu0 0.0
    %2256 = vmatpush2.xpose.msra.mxu0 0.0
    %2257 = vmatprep.subr.mxu0 0.0
    %2258 = vmatpush2.xpose.msra.mxu0 0.0
    %2259 = vmatprep.subr.mxu0 0.0
    %2260 = vmatpush2.xpose.msra.mxu0 0.0
    %2261 = vmatprep.subr.mxu0 0.0
    %2262 = vmatpush2.xpose.msra.mxu0 0.0
    %2263 = vmatprep.subr.mxu0 0.0
    %2264 = vmatpush2.xpose.msra.mxu0 0.0
    %2265 = vmatprep.mubr.f32.mxu0 0.0
    %2266 = vmatmul.mubr.f32.gmra.mxu0 %v2193
    %v2267 = vpop.f32.mrf.mxu0
    %v2268 = vadd.f32 0.0, %v2267
    %v2269 = vpop.f32.mrf.mxu0
    %2270 = vmatprep.mubr.f32.mxu0 0.0
    %2271 = vmatmul.mubr.f32.gmra.mxu0 %v2195
    %v2272 = vpop.f32.mrf.mxu0
    %v2273 = vadd.f32 0.0, %v2272
    %v2274 = vpop.f32.mrf.mxu0
    %2275 = vdwg.mxu0
    %v2276 = vmul.f32 %v2268, 0.35355338
    %v2277 = vmul.f32 %v2273, 0.35355338
    %v2278 = vadd.f32 %v2276, %v86
    %v2279 = vadd.f32 %v2277, %v87
    %v2280 = vsel %vm303, %v2278, -inf
    %2281 = vmax.xlane.f32.xlu0 %v2280
    %v2282 = vpop.xlane.xlu0 %2281
    %v2283 = vsel %vm303, %v2279, -inf
    %2284 = vmax.xlane.f32.xlu0 %v2283
    %v2285 = vpop.xlane.xlu0 %2284
    %v2286 = vsub.f32 %v2278, %v2282
    %v2287 = vsub.f32 %v2279, %v2285
    %v2288 = vmul.f32 %v2286, 1.442695
    %v2289 = vpow.pop %v2288
    %v2290 = vmul.f32 %v2287, 1.442695
    %v2291 = vpow.pop %v2290
    %v2292 = vsel %vm303, %v2289, 0.0
    %2293 = vadd.xlane.f32.xlu0 %v2292
    %v2294 = vpop.xlane.xlu0 %2293
    %v2295 = vsel %vm303, %v2291, 0.0
    %2296 = vadd.xlane.f32.xlu0 %v2295
    %v2297 = vpop.xlane.xlu0 %2296
    %v2298 = vrcp.pop %v2294
    %v2299 = vrcp.pop %v2297
    %v2300 = vmul.f32 %v2289, %v2298
    %v2301 = vmul.f32 %v2291, %v2299
    %2302 = vrot.lane.b32.xlu0 %v1567, 40
    %v2303 = vpop.permute.xlu0 %2302
    %2304 = vrot.lane.b32.xlu0 %v1572, 40
    %v2305 = vpop.permute.xlu0 %2304
    %v2309 = vsel %vm303, %v2300, 0
    %v2312 = vsel %vm303, %v2301, 0
    %2314 = vmatprep.subr.mxu0 0.0
    %2315 = vmatpush1.msra.mxu0 0.0
    %2316 = vmatprep.subr.mxu0 0.0
    %2317 = vmatpush1.msra.mxu0 0.0
    %2318 = vmatprep.subr.mxu0 0.0
    %2319 = vmatpush1.msra.mxu0 0.0
    %2320 = vmatprep.subr.mxu0 0.0
    %2321 = vmatpush1.msra.mxu0 0.0
    %2322 = vmatprep.subr.mxu0 0.0
    %2323 = vmatpush1.msra.mxu0 0.0
    %2324 = vmatprep.subr.mxu0 0.0
    %2325 = vmatpush1.msra.mxu0 0.0
    %2326 = vmatprep.subr.mxu0 0.0
    %2327 = vmatpush1.msra.mxu0 0.0
    %2328 = vmatprep.subr.mxu0 0.0
    %2329 = vmatpush1.msra.mxu0 0.0
    %2330 = vmatprep.subr.mxu0 0.0
    %2331 = vmatpush1.msra.mxu0 0.0
    %2332 = vmatprep.subr.mxu0 0.0
    %2333 = vmatpush1.msra.mxu0 0.0
    %2334 = vmatprep.subr.mxu0 0.0
    %2335 = vmatpush1.msra.mxu0 0.0
    %2336 = vmatprep.subr.mxu0 0.0
    %2337 = vmatpush1.msra.mxu0 0.0
    %2338 = vmatprep.subr.mxu0 0.0
    %2339 = vmatpush1.msra.mxu0 0.0
    %2340 = vmatprep.subr.mxu0 0.0
    %2341 = vmatpush1.msra.mxu0 0.0
    %2342 = vmatprep.subr.mxu0 0.0
    %2343 = vmatpush1.msra.mxu0 %v2305
    %2344 = vmatprep.subr.mxu0 0.0
    %2345 = vmatpush1.msra.mxu0 %v2303
    %2346 = vmatprep.subr.mxu0 0.0
    %2347 = vmatpush2.msra.mxu0 0.0
    %2348 = vmatprep.subr.mxu0 0.0
    %2349 = vmatpush2.msra.mxu0 0.0
    %2350 = vmatprep.subr.mxu0 0.0
    %2351 = vmatpush2.msra.mxu0 0.0
    %2352 = vmatprep.subr.mxu0 0.0
    %2353 = vmatpush2.msra.mxu0 0.0
    %2354 = vmatprep.subr.mxu0 0.0
    %2355 = vmatpush2.msra.mxu0 0.0
    %2356 = vmatprep.subr.mxu0 0.0
    %2357 = vmatpush2.msra.mxu0 0.0
    %2358 = vmatprep.subr.mxu0 0.0
    %2359 = vmatpush2.msra.mxu0 0.0
    %2360 = vmatprep.subr.mxu0 0.0
    %2361 = vmatpush2.msra.mxu0 0.0
    %2362 = vmatprep.subr.mxu0 0.0
    %2363 = vmatpush2.msra.mxu0 0.0
    %2364 = vmatprep.subr.mxu0 0.0
    %2365 = vmatpush2.msra.mxu0 0.0
    %2366 = vmatprep.subr.mxu0 0.0
    %2367 = vmatpush2.msra.mxu0 0.0
    %2368 = vmatprep.subr.mxu0 0.0
    %2369 = vmatpush2.msra.mxu0 0.0
    %2370 = vmatprep.subr.mxu0 0.0
    %2371 = vmatpush2.msra.mxu0 0.0
    %2372 = vmatprep.subr.mxu0 0.0
    %2373 = vmatpush2.msra.mxu0 0.0
    %2374 = vmatprep.subr.mxu0 0.0
    %2375 = vmatpush2.msra.mxu0 0.0
    %2376 = vmatprep.subr.mxu0 0.0
    %2377 = vmatpush2.msra.mxu0 0.0
    %2378 = vmatprep.mubr.f32.mxu0 0.0
    %2379 = vmatmul.mubr.f32.gmra.mxu0 %v2309
    %v2380 = vpop.f32.mrf.mxu0
    %v2381 = vadd.f32 0.0, %v2380
    %v2382 = vpop.f32.mrf.mxu0
    %2383 = vmatprep.mubr.f32.mxu0 0.0
    %2384 = vmatmul.mubr.f32.gmra.mxu0 %v2312
    %v2385 = vpop.f32.mrf.mxu0
    %v2386 = vadd.f32 0.0, %v2385
    %v2387 = vpop.f32.mrf.mxu0
    %2388 = vdwg.mxu0
    %2391 = vrot.lane.b32.xlu0 %v1973, 8
    %v2392 = vpop.permute.xlu0 %2391
    %2393 = vrot.lane.b32.xlu0 %v1978, 8
    %v2394 = vpop.permute.xlu0 %2393
    %2399 = vrot.lane.b32.xlu0 %v2177, 16
    %v2400 = vpop.permute.xlu0 %2399
    %2401 = vrot.lane.b32.xlu0 %v2182, 16
    %v2402 = vpop.permute.xlu0 %2401
    %2407 = vrot.lane.b32.xlu0 %v2381, 24
    %v2408 = vpop.permute.xlu0 %2407
    %2409 = vrot.lane.b32.xlu0 %v2386, 24
    %v2410 = vpop.permute.xlu0 %2409
    %v2413 = vsel %vm215, %v1769, %v2392
    %v2414 = vsel %vm215, %v1774, %v2394
    %v2415 = vsel %vm303, %v2413, %v2400
    %v2416 = vsel %vm303, %v2414, %v2402
    %v2417 = vsel %vm1053, %v2415, %v2408
    %v2418 = vsel %vm1053, %v2416, %v2410
    %v2420 = vsel %vm92, %v2417, 0
    %v2423 = vsel %vm92, %v2418, 0
    %2425 = vmatprep.subr.mxu0 0.0
    %2426 = vmatpush1.msra.mxu0 0.0
    %2427 = vmatprep.subr.mxu0 0.0
    %2428 = vmatpush1.msra.mxu0 0.0
    %2429 = vmatprep.subr.mxu0 0.0
    %2430 = vmatpush1.msra.mxu0 0.0
    %2431 = vmatprep.subr.mxu0 0.0
    %2432 = vmatpush1.msra.mxu0 0.0
    %2433 = vmatprep.subr.mxu0 0.0
    %2434 = vmatpush1.msra.mxu0 0.0
    %2435 = vmatprep.subr.mxu0 0.0
    %2436 = vmatpush1.msra.mxu0 0.0
    %2437 = vmatprep.subr.mxu0 0.0
    %2438 = vmatpush1.msra.mxu0 0.0
    %2439 = vmatprep.subr.mxu0 0.0
    %2440 = vmatpush1.msra.mxu0 0.0
    %2441 = vmatprep.subr.mxu0 0.0
    %2442 = vmatpush1.msra.mxu0 0.0
    %2443 = vmatprep.subr.mxu0 0.0
    %2444 = vmatpush1.msra.mxu0 0.0
    %2445 = vmatprep.subr.mxu0 0.0
    %2446 = vmatpush1.msra.mxu0 0.0
    %2447 = vmatprep.subr.mxu0 0.0
    %2448 = vmatpush1.msra.mxu0 0.0
    %2449 = vmatprep.subr.mxu0 0.0
    %2450 = vmatpush1.msra.mxu0 %v1067
    %2451 = vmatprep.subr.mxu0 0.0
    %2452 = vmatpush1.msra.mxu0 %v1065
    %2453 = vmatprep.subr.mxu0 0.0
    %2454 = vmatpush1.msra.mxu0 %v1063
    %2455 = vmatprep.subr.mxu0 0.0
    %2456 = vmatpush1.msra.mxu0 %v1061
    %2457 = vmatprep.subr.mxu0 0.0
    %2458 = vmatpush2.msra.mxu0 0.0
    %2459 = vmatprep.subr.mxu0 0.0
    %2460 = vmatpush2.msra.mxu0 0.0
    %2461 = vmatprep.subr.mxu0 0.0
    %2462 = vmatpush2.msra.mxu0 0.0
    %2463 = vmatprep.subr.mxu0 0.0
    %2464 = vmatpush2.msra.mxu0 0.0
    %2465 = vmatprep.subr.mxu0 0.0
    %2466 = vmatpush2.msra.mxu0 0.0
    %2467 = vmatprep.subr.mxu0 0.0
    %2468 = vmatpush2.msra.mxu0 0.0
    %2469 = vmatprep.subr.mxu0 0.0
    %2470 = vmatpush2.msra.mxu0 0.0
    %2471 = vmatprep.subr.mxu0 0.0
    %2472 = vmatpush2.msra.mxu0 0.0
    %2473 = vmatprep.subr.mxu0 0.0
    %2474 = vmatpush2.msra.mxu0 0.0
    %2475 = vmatprep.subr.mxu0 0.0
    %2476 = vmatpush2.msra.mxu0 0.0
    %2477 = vmatprep.subr.mxu0 0.0
    %2478 = vmatpush2.msra.mxu0 0.0
    %2479 = vmatprep.subr.mxu0 0.0
    %2480 = vmatpush2.msra.mxu0 0.0
    %2481 = vmatprep.subr.mxu0 0.0
    %2482 = vmatpush2.msra.mxu0 0.0
    %2483 = vmatprep.subr.mxu0 0.0
    %2484 = vmatpush2.msra.mxu0 0.0
    %2485 = vmatprep.subr.mxu0 0.0
    %2486 = vmatpush2.msra.mxu0 0.0
    %2487 = vmatprep.subr.mxu0 0.0
    %2488 = vmatpush2.msra.mxu0 0.0
    %2489 = vmatprep.mubr.f32.mxu0 0.0
    %2490 = vmatmul.mubr.f32.gmra.mxu0 %v2420
    %v2491 = vpop.f32.mrf.mxu0
    %v2492 = vadd.f32 %v1074, %v2491
    %v2493 = vpop.f32.mrf.mxu0
    %2494 = vmatprep.mubr.f32.mxu0 0.0
    %2495 = vmatmul.mubr.f32.gmra.mxu0 %v2423
    %v2496 = vpop.f32.mrf.mxu0
    %v2497 = vadd.f32 %v1074, %v2496
    %v2498 = vpop.f32.mrf.mxu0
    %2499 = vdwg.mxu0
    %v2501 = vrot.slane %v1459, 7
    %vm2503 = vcmask 1040384
    %v2504 = vsel %vm2503, %v1458, %v2501
    %v2506 = vrot.slane %v2497, 7
    %v2508 = vsel %vm2503, %v2492, %v2506
    %v2509 = vadd.f32 %v2504, %v2508
    %v2510 = vmax.f32 %v2509, -1e+09
    %v2511 = vmin.f32 %v2510, 1e+09
    %vm2512 = vcmask 254976
    %v2513 = vsel %vm2512, %v2511, 0.0
    %2514 = vadd.xlane.f32.xlu0 %v2513
    %v2515 = vpop.xlane.xlu0 %2514
    %v2516 = vmul.f32 %v2515, %v99
    %v2517 = vsub.f32 %v2511, %v2516
    %v2518 = vmul.f32 %v2517, %v2517
    %v2519 = vsel %vm2512, %v2518, 0.0
    %2520 = vadd.xlane.f32.xlu0 %v2519
    %v2521 = vpop.xlane.xlu0 %2520
    %v2522 = vmul.f32 %v2521, %v99
    %v2523 = vadd.f32 %v2522, 1e-05
    %v2524 = vrsqrt.pop %v2523
    %v2525 = vmul.f32 %v2517, %v2524
    %v2526 = vmul.f32 %v2525, %v54
    %v2527 = vadd.f32 %v2526, %v124
    %v2528 = vmax.f32 %v2527, -1e+09
    %v2529 = vmin.f32 %v2528, 1e+09
    %v2530 = vsel %vm2512, %v2529, 0.0
    %2531 = vadd.xlane.f32.xlu0 %v2530
    %v2532 = vpop.xlane.xlu0 %2531
    %v2533 = vmul.f32 %v2532, %v99
    %v2534 = vsub.f32 %v2529, %v2533
    %v2535 = vmul.f32 %v2534, %v2534
    %v2536 = vsel %vm2512, %v2535, 0.0
    %2537 = vadd.xlane.f32.xlu0 %v2536
    %v2538 = vpop.xlane.xlu0 %2537
    %v2539 = vmul.f32 %v2538, %v99
    %v2540 = vadd.f32 %v2539, 1e-05
    %v2541 = vrsqrt.pop %v2540
    %v2542 = vmul.f32 %v2534, %v2541
    %v2543 = vmul.f32 %v2542, %v1224
    %v2544 = vadd.f32 %v2543, %v1229
    %v2546 = vsel %vm92, %v2544, 0
    %2548 = vmatprep.subr.mxu0 0.0
    %2549 = vmatpush1.msra.mxu0 0.0
    %2550 = vmatprep.subr.mxu0 0.0
    %2551 = vmatpush1.msra.mxu0 0.0
    %2552 = vmatprep.subr.mxu0 0.0
    %2553 = vmatpush1.msra.mxu0 0.0
    %2554 = vmatprep.subr.mxu0 0.0
    %2555 = vmatpush1.msra.mxu0 0.0
    %2556 = vmatprep.subr.mxu0 0.0
    %2557 = vmatpush1.msra.mxu0 0.0
    %2558 = vmatprep.subr.mxu0 0.0
    %2559 = vmatpush1.msra.mxu0 0.0
    %2560 = vmatprep.subr.mxu0 0.0
    %2561 = vmatpush1.msra.mxu0 0.0
    %2562 = vmatprep.subr.mxu0 0.0
    %2563 = vmatpush1.msra.mxu0 0.0
    %2564 = vmatprep.subr.mxu0 0.0
    %2565 = vmatpush1.msra.mxu0 0.0
    %2566 = vmatprep.subr.mxu0 0.0
    %2567 = vmatpush1.msra.mxu0 0.0
    %2568 = vmatprep.subr.mxu0 0.0
    %2569 = vmatpush1.msra.mxu0 0.0
    %2570 = vmatprep.subr.mxu0 0.0
    %2571 = vmatpush1.msra.mxu0 0.0
    %2572 = vmatprep.subr.mxu0 0.0
    %2573 = vmatpush1.msra.mxu0 %v52
    %2574 = vmatprep.subr.mxu0 0.0
    %2575 = vmatpush1.msra.mxu0 %v51
    %2576 = vmatprep.subr.mxu0 0.0
    %2577 = vmatpush1.msra.mxu0 %v50
    %2578 = vmatprep.subr.mxu0 0.0
    %2579 = vmatpush1.msra.mxu0 %v49
    %2580 = vmatprep.subr.mxu0 0.0
    %2581 = vmatpush2.msra.mxu0 0.0
    %2582 = vmatprep.subr.mxu0 0.0
    %2583 = vmatpush2.msra.mxu0 0.0
    %2584 = vmatprep.subr.mxu0 0.0
    %2585 = vmatpush2.msra.mxu0 0.0
    %2586 = vmatprep.subr.mxu0 0.0
    %2587 = vmatpush2.msra.mxu0 0.0
    %2588 = vmatprep.subr.mxu0 0.0
    %2589 = vmatpush2.msra.mxu0 0.0
    %2590 = vmatprep.subr.mxu0 0.0
    %2591 = vmatpush2.msra.mxu0 0.0
    %2592 = vmatprep.subr.mxu0 0.0
    %2593 = vmatpush2.msra.mxu0 0.0
    %2594 = vmatprep.subr.mxu0 0.0
    %2595 = vmatpush2.msra.mxu0 0.0
    %2596 = vmatprep.subr.mxu0 0.0
    %2597 = vmatpush2.msra.mxu0 0.0
    %2598 = vmatprep.subr.mxu0 0.0
    %2599 = vmatpush2.msra.mxu0 0.0
    %2600 = vmatprep.subr.mxu0 0.0
    %2601 = vmatpush2.msra.mxu0 0.0
    %2602 = vmatprep.subr.mxu0 0.0
    %2603 = vmatpush2.msra.mxu0 0.0
    %2604 = vmatprep.subr.mxu0 0.0
    %2605 = vmatpush2.msra.mxu0 0.0
    %2606 = vmatprep.subr.mxu0 0.0
    %2607 = vmatpush2.msra.mxu0 0.0
    %2608 = vmatprep.subr.mxu0 0.0
    %2609 = vmatpush2.msra.mxu0 0.0
    %2610 = vmatprep.subr.mxu0 0.0
    %2611 = vmatpush2.msra.mxu0 0.0
    %2612 = vmatprep.mubr.f32.mxu0 0.0
    %2613 = vmatmul.mubr.f32.gmra.mxu0 %v2546
    %v2614 = vpop.f32.mrf.mxu0
    %v2615 = vadd.f32 %v1235, %v2614
    %v2616 = vpop.f32.mrf.mxu0
    %2617 = vdwg.mxu0
    %v2618 = vmax.f32 %v2615, 0.0
    %v2620 = vsel %vm303, %v2618, 0
    %2622 = vmatprep.subr.mxu0 0.0
    %2623 = vmatpush1.xpose.msra.mxu0 0.0
    %2624 = vmatprep.subr.mxu0 0.0
    %2625 = vmatpush1.xpose.msra.mxu0 0.0
    %2626 = vmatprep.subr.mxu0 0.0
    %2627 = vmatpush1.xpose.msra.mxu0 0.0
    %2628 = vmatprep.subr.mxu0 0.0
    %2629 = vmatpush1.xpose.msra.mxu0 0.0
    %2630 = vmatprep.subr.mxu0 0.0
    %2631 = vmatpush1.xpose.msra.mxu0 0.0
    %2632 = vmatprep.subr.mxu0 0.0
    %2633 = vmatpush1.xpose.msra.mxu0 0.0
    %2634 = vmatprep.subr.mxu0 0.0
    %2635 = vmatpush1.xpose.msra.mxu0 0.0
    %2636 = vmatprep.subr.mxu0 0.0
    %2637 = vmatpush1.xpose.msra.mxu0 0.0
    %2638 = vmatprep.subr.mxu0 0.0
    %2639 = vmatpush1.xpose.msra.mxu0 0.0
    %2640 = vmatprep.subr.mxu0 0.0
    %2641 = vmatpush1.xpose.msra.mxu0 0.0
    %2642 = vmatprep.subr.mxu0 0.0
    %2643 = vmatpush1.xpose.msra.mxu0 0.0
    %2644 = vmatprep.subr.mxu0 0.0
    %2645 = vmatpush1.xpose.msra.mxu0 0.0
    %2646 = vmatprep.subr.mxu0 0.0
    %2647 = vmatpush1.xpose.msra.mxu0 %v1347
    %2648 = vmatprep.subr.mxu0 0.0
    %2649 = vmatpush1.xpose.msra.mxu0 %v1345
    %2650 = vmatprep.subr.mxu0 0.0
    %2651 = vmatpush1.xpose.msra.mxu0 %v1343
    %2652 = vmatprep.subr.mxu0 0.0
    %2653 = vmatpush1.xpose.msra.mxu0 %v1341
    %2654 = vmatprep.subr.mxu0 0.0
    %2655 = vmatpush2.xpose.msra.mxu0 0.0
    %2656 = vmatprep.subr.mxu0 0.0
    %2657 = vmatpush2.xpose.msra.mxu0 0.0
    %2658 = vmatprep.subr.mxu0 0.0
    %2659 = vmatpush2.xpose.msra.mxu0 0.0
    %2660 = vmatprep.subr.mxu0 0.0
    %2661 = vmatpush2.xpose.msra.mxu0 0.0
    %2662 = vmatprep.subr.mxu0 0.0
    %2663 = vmatpush2.xpose.msra.mxu0 0.0
    %2664 = vmatprep.subr.mxu0 0.0
    %2665 = vmatpush2.xpose.msra.mxu0 0.0
    %2666 = vmatprep.subr.mxu0 0.0
    %2667 = vmatpush2.xpose.msra.mxu0 0.0
    %2668 = vmatprep.subr.mxu0 0.0
    %2669 = vmatpush2.xpose.msra.mxu0 0.0
    %2670 = vmatprep.subr.mxu0 0.0
    %2671 = vmatpush2.xpose.msra.mxu0 0.0
    %2672 = vmatprep.subr.mxu0 0.0
    %2673 = vmatpush2.xpose.msra.mxu0 0.0
    %2674 = vmatprep.subr.mxu0 0.0
    %2675 = vmatpush2.xpose.msra.mxu0 0.0
    %2676 = vmatprep.subr.mxu0 0.0
    %2677 = vmatpush2.xpose.msra.mxu0 0.0
    %2678 = vmatprep.subr.mxu0 0.0
    %2679 = vmatpush2.xpose.msra.mxu0 0.0
    %2680 = vmatprep.subr.mxu0 0.0
    %2681 = vmatpush2.xpose.msra.mxu0 0.0
    %2682 = vmatprep.subr.mxu0 0.0
    %2683 = vmatpush2.xpose.msra.mxu0 0.0
    %2684 = vmatprep.subr.mxu0 0.0
    %2685 = vmatpush2.xpose.msra.mxu0 0.0
    %2686 = vmatprep.mubr.f32.mxu0 0.0
    %2687 = vmatmul.mubr.f32.gmra.mxu0 %v2620
    %v2688 = vpop.f32.mrf.mxu0
    %v2689 = vadd.f32 %v1333, %v2688
    %v2690 = vpop.f32.mrf.mxu0
    %2691 = vdwg.mxu0
    %v2692 = vadd.f32 %v2527, %v2689
    %v2693 = vmax.f32 %v2692, -1e+09
    %v2694 = vmin.f32 %v2693, 1e+09
    %v2695 = vsel %vm2512, %v2694, 0.0
    %2696 = vadd.xlane.f32.xlu0 %v2695
    %v2697 = vpop.xlane.xlu0 %2696
    %v2698 = vmul.f32 %v2697, %v99
    %v2699 = vsub.f32 %v2694, %v2698
    %v2700 = vmul.f32 %v2699, %v2699
    %v2701 = vsel %vm2512, %v2700, 0.0
    %2702 = vadd.xlane.f32.xlu0 %v2701
    %v2703 = vpop.xlane.xlu0 %2702
    %v2704 = vmul.f32 %v2703, %v99
    %v2705 = vadd.f32 %v2704, 1e-05
    %v2706 = vrsqrt.pop %v2705
    %v2707 = vmul.f32 %v2699, %v2706
    %v2708 = vmul.f32 %v2707, %v1224
    %v2709 = vadd.f32 %v2708, %v1229
    %v2710 = vsel %vm2512, %v2709, 0.0
    %2711 = vadd.xlane.f32.xlu0 %v2710
    %v2712 = vpop.xlane.xlu0 %2711
    %v2713 = vmul.f32 %v2712, %v99
    %v2714 = vsub.f32 %v2709, %v2713
    %v2715 = vmul.f32 %v2714, %v2714
    %v2716 = vsel %vm2512, %v2715, 0.0
    %2717 = vadd.xlane.f32.xlu0 %v2716
    %v2718 = vpop.xlane.xlu0 %2717
    %v2719 = vmul.f32 %v2718, %v99
    %v2720 = vadd.f32 %v2719, 1e-05
    %v2721 = vrsqrt.pop %v2720
    %v2722 = vmul.f32 %v2714, %v2721
    %v2723 = vmul.f32 %v2722, %v55
    %2724 = vrot.lane.b32.xlu0 %v55, 96
    %v2725 = vpop.permute.xlu0 %2724
    %v2727 = vadd.f32 %v2723, %v2725
    %v2728 = vmax.f32 %v2727, 0.0
    %v2730 = vsel %vm92, %v2728, 0
    %2732 = vmatprep.subr.mxu0 0.0
    %2733 = vmatpush1.msra.mxu0 0.0
    %2734 = vmatprep.subr.mxu0 0.0
    %2735 = vmatpush1.msra.mxu0 0.0
    %2736 = vmatprep.subr.mxu0 0.0
    %2737 = vmatpush1.msra.mxu0 0.0
    %2738 = vmatprep.subr.mxu0 0.0
    %2739 = vmatpush1.msra.mxu0 0.0
    %2740 = vmatprep.subr.mxu0 0.0
    %2741 = vmatpush1.msra.mxu0 0.0
    %2742 = vmatprep.subr.mxu0 0.0
    %2743 = vmatpush1.msra.mxu0 0.0
    %2744 = vmatprep.subr.mxu0 0.0
    %2745 = vmatpush1.msra.mxu0 0.0
    %2746 = vmatprep.subr.mxu0 0.0
    %2747 = vmatpush1.msra.mxu0 0.0
    %2748 = vmatprep.subr.mxu0 0.0
    %2749 = vmatpush1.msra.mxu0 0.0
    %2750 = vmatprep.subr.mxu0 0.0
    %2751 = vmatpush1.msra.mxu0 0.0
    %2752 = vmatprep.subr.mxu0 0.0
    %2753 = vmatpush1.msra.mxu0 0.0
    %2754 = vmatprep.subr.mxu0 0.0
    %2755 = vmatpush1.msra.mxu0 0.0
    %2756 = vmatprep.subr.mxu0 0.0
    %2757 = vmatpush1.msra.mxu0 %v48
    %2758 = vmatprep.subr.mxu0 0.0
    %2759 = vmatpush1.msra.mxu0 %v47
    %2760 = vmatprep.subr.mxu0 0.0
    %2761 = vmatpush1.msra.mxu0 %v46
    %2762 = vmatprep.subr.mxu0 0.0
    %2763 = vmatpush1.msra.mxu0 %v45
    %2764 = vmatprep.subr.mxu0 0.0
    %2765 = vmatpush2.msra.mxu0 0.0
    %2766 = vmatprep.subr.mxu0 0.0
    %2767 = vmatpush2.msra.mxu0 0.0
    %2768 = vmatprep.subr.mxu0 0.0
    %2769 = vmatpush2.msra.mxu0 0.0
    %2770 = vmatprep.subr.mxu0 0.0
    %2771 = vmatpush2.msra.mxu0 0.0
    %2772 = vmatprep.subr.mxu0 0.0
    %2773 = vmatpush2.msra.mxu0 0.0
    %2774 = vmatprep.subr.mxu0 0.0
    %2775 = vmatpush2.msra.mxu0 0.0
    %2776 = vmatprep.subr.mxu0 0.0
    %2777 = vmatpush2.msra.mxu0 0.0
    %2778 = vmatprep.subr.mxu0 0.0
    %2779 = vmatpush2.msra.mxu0 0.0
    %2780 = vmatprep.subr.mxu0 0.0
    %2781 = vmatpush2.msra.mxu0 0.0
    %2782 = vmatprep.subr.mxu0 0.0
    %2783 = vmatpush2.msra.mxu0 0.0
    %2784 = vmatprep.subr.mxu0 0.0
    %2785 = vmatpush2.msra.mxu0 0.0
    %2786 = vmatprep.subr.mxu0 0.0
    %2787 = vmatpush2.msra.mxu0 0.0
    %2788 = vmatprep.subr.mxu0 0.0
    %2789 = vmatpush2.msra.mxu0 0.0
    %2790 = vmatprep.subr.mxu0 0.0
    %2791 = vmatpush2.msra.mxu0 0.0
    %2792 = vmatprep.subr.mxu0 0.0
    %2793 = vmatpush2.msra.mxu0 0.0
    %2794 = vmatprep.subr.mxu0 0.0
    %2795 = vmatpush2.msra.mxu0 0.0
    %2796 = vmatprep.mubr.f32.mxu0 0.0
    %2797 = vmatmul.mubr.f32.gmra.mxu0 %v2730
    %v2798 = vpop.f32.mrf.mxu0
    %v2799 = vadd.f32 %v56, %v2798
    %v2800 = vpop.f32.mrf.mxu0
    %2801 = vdwg.mxu0
    %2802 = vst [vmem:[%s2] sm:$0x3] %v2799
    // Predicated region
    $region18: #{transformer_forward.1} parent=1 // pred_check
      _
    $region19: #{transformer_forward.1} parent=1 // pred_check_branch
      %2804 = sbr.rel (0) target = $region21
    $region20: #{transformer_forward.1} parent=1 // pred_region
      _
    $region21: #{transformer_forward.1} parent=1 // pred_fallthru
      _
    // Predicated region
    $region22: #{transformer_forward.1} parent=1 // pred_check
      _
    $region23: #{transformer_forward.1} parent=1 // pred_check_branch
      %2806 = sbr.rel (0) target = $region25
    $region24: #{transformer_forward.1} parent=1 // pred_region
      _
    $region25: #{transformer_forward.1} parent=1 // pred_fallthru
      _
    %2807 = vsyncpa [#allocation3], 1
    %2808 = vsyncpa [#allocation5], 1

</llo_original>
